<compile_context>
chip_gen: v5e
topology: v5e:2x2
jax: 0.10.0
libtpu: 0.0.40
codegen_flags: <defaults>
</compile_context>

<pallas_src>
import functools

import jax
import jax.numpy as jnp
import numpy as np
from jax.experimental import pallas as pl
from jax.experimental.pallas import tpu as pltpu


# ----------------------------------------------------------------------------
# Fused kernel: cv1 (1x1 conv+BN+SiLU) -> maxpool(5,9,13) cascade -> concat ->
#               cv2 (1x1 conv+BN+SiLU), one batch element per grid step.
# ----------------------------------------------------------------------------
def _spp_fused_kernel(x_ref, w1_ref, b1_ref, w2t_ref, b2_ref, o_ref,
                      ypad_ref, cat_ref, *,
                      H, W, C1, Cm, Cout, pad, k0, n_pools):
    # x_ref   : (1, C1, H*W)       raw NCHW input, spatial flattened (channel-major)
    # w1_ref  : (C1, Cm)           cv1 weight, BN folded, mxu dtype
    # b1_ref  : (1, Cm)  f32
    # w2t_ref : (Cout, (n_pools+1)*Cm)   cv2 weight transposed, BN folded, mxu dtype
    # b2_ref  : (Cout, 1) f32
    # o_ref   : (1, Cout, H*W)     output, channel-major (free reshape to NCHW outside)
    # ypad_ref: (H+2p, W+2p, Cm)   f32 VMEM scratch: -inf padded cv1 image
    # cat_ref : (H*W, (n_pools+1)*Cm)    VMEM staging scratch for the concat
    M = H * W
    mxu_dtype = cat_ref.dtype

    # --- cv1: contraction over the leading C1 dim absorbs the NCHW layout (no transpose).
    x2 = x_ref[0].astype(mxu_dtype)                               # (C1, M)
    y = jax.lax.dot_general(
        x2, w1_ref[...],
        dimension_numbers=(((0,), (0,)), ((), ())),               # x2.T @ w1
        preferred_element_type=jnp.float32)                       # (M, Cm) f32 acc
    y = y + b1_ref[...]
    y = y * jax.nn.sigmoid(y)                                     # SiLU (f32)

    # Un-pooled branch -> concat slot 0.
    cat_ref[:, 0:Cm] = y.astype(mxu_dtype)

    # --- -inf padded cv1 image lives only in VMEM (PyTorch MaxPool2d padding semantics).
    ypad_ref[...] = jnp.full(ypad_ref.shape, -jnp.inf, dtype=ypad_ref.dtype)
    ypad_ref[pad:pad + H, pad:pad + W, :] = y.reshape(H, W, Cm)
    a = ypad_ref[...]                                             # (H+2p, W+2p, Cm)

    def pool_valid(t):
        # k0 x k0, stride 1, VALID max pool, computed separably (H pass then W pass).
        Hh, Ww = t.shape[0], t.shape[1]
        r = k0 - 1
        h = t[0:Hh - r]
        for d in range(1, k0):
            h = jnp.maximum(h, t[d:Hh - r + d])
        o = h[:, 0:Ww - r]
        for d in range(1, k0):
            o = jnp.maximum(o, h[:, d:Ww - r + d])
        return o                                                  # (Hh-r, Ww-r, Cm)

    # Cascaded k0 x k0 pools: effective windows k0, 2*k0-1, 3*k0-2 (== 5, 9, 13).
    cur = a
    for i in range(n_pools):
        cur = pool_valid(cur)
        off = pad - (i + 1) * (k0 // 2)
        p = cur[off:off + H, off:off + W]                         # (H, W, Cm)
        cat_ref[:, (i + 1) * Cm:(i + 2) * Cm] = p.reshape(M, Cm).astype(mxu_dtype)

    # --- cv2: single MXU matmul over the concatenated K dim; output is produced
    #     channel-major (Cout, M) so no HBM permute is needed downstream.
    out_t = jax.lax.dot_general(
        w2t_ref[...], cat_ref[...],
        dimension_numbers=(((1,), (1,)), ((), ())),               # w2t @ cat.T
        preferred_element_type=jnp.float32)                       # (Cout, M)
    out_t = out_t + b2_ref[...]
    out_t = out_t * jax.nn.sigmoid(out_t)                         # SiLU
    o_ref[0] = out_t.astype(o_ref.dtype)


def spp_pallas(params, x_nchw, mxu_dtype=jnp.bfloat16):
    """SPP forward. NCHW in / NCHW out (PyTorch semantics), one fused Pallas kernel."""
    k = params['k']
    N, C1, H, W = x_nchw.shape
    w1 = params['cv1_w']                                          # (C1, Cm)
    Cm = w1.shape[1]
    w2 = params['cv2_w']                                          # (nb*Cm, Cout)
    Cout = w2.shape[1]
    nb = len(k) + 1
    assert w1.shape[0] == C1 and w2.shape[0] == nb * Cm
    k0 = k[0]
    # Cascade validity: k[i] == k0 + i*(k0-1) (holds for the SPP default (5, 9, 13)).
    assert k0 % 2 == 1 and all(ki == k0 + i * (k0 - 1) for i, ki in enumerate(k)), \
        "fused SPP kernel assumes nested pooling windows like (5, 9, 13)"
    pad = k[-1] // 2
    M = H * W

    x3 = x_nchw.reshape(N, C1, M)                 # contiguous -> free metadata reshape
    w1c = w1.astype(mxu_dtype)
    w2t = w2.T.astype(mxu_dtype)                  # (Cout, nb*Cm), tiny one-time weight prep
    b1 = params['cv1_b'].reshape(1, Cm).astype(jnp.float32)
    b2 = params['cv2_b'].reshape(Cout, 1).astype(jnp.float32)

    out = pl.pallas_call(
        functools.partial(_spp_fused_kernel, H=H, W=W, C1=C1, Cm=Cm, Cout=Cout,
                          pad=pad, k0=k0, n_pools=len(k)),
        out_shape=jax.ShapeDtypeStruct((N, Cout, M), x_nchw.dtype),
        grid_spec=pltpu.PrefetchScalarGridSpec(
            num_scalar_prefetch=0,
            grid=(N,),
            in_specs=[
                pl.BlockSpec((1, C1, M), lambda n: (n, 0, 0)),
                pl.BlockSpec((C1, Cm), lambda n: (0, 0)),
                pl.BlockSpec((1, Cm), lambda n: (0, 0)),
                pl.BlockSpec((Cout, nb * Cm), lambda n: (0, 0)),
                pl.BlockSpec((Cout, 1), lambda n: (0, 0)),
            ],
            out_specs=pl.BlockSpec((1, Cout, M), lambda n: (n, 0, 0)),
            scratch_shapes=[
                pltpu.VMEM((H + 2 * pad, W + 2 * pad, Cm), jnp.float32),   # padded cv1 img
                pltpu.VMEM((M, nb * Cm), mxu_dtype),                       # concat staging
            ],
        ),
        compiler_params=pltpu.CompilerParams(
            dimension_semantics=("parallel",)),
    )(x3, w1c, b1, w2t, b2)
    # TODO(synk): add an intra-image grid axis (Cout tiles or H row bands with a pad-row
    # halo) so N=1 inference uses both v7x TensorCores and gets >1-deep pipelining.
    return out.reshape(N, Cout, H, W)


# ----------------------------------------------------------------------------
# Parameter init (deterministic, BatchNorm folded into conv)
# ----------------------------------------------------------------------------
def _fold_bn(w_hwio, gamma, beta, mean, var, eps=1e-3):
    scale = gamma / jnp.sqrt(var + eps)
    return w_hwio * scale, beta - mean * scale


def _init_conv_bn(key, kh, kw, cin, cout):
    k1, k2, k3, k4, k5 = jax.random.split(key, 5)
    w = 0.1 * jax.random.normal(k1, (kh, kw, cin, cout), jnp.float32)
    gamma = 1.0 + 0.1 * jax.random.normal(k2, (cout,), jnp.float32)
    beta = 0.1 * jax.random.normal(k3, (cout,), jnp.float32)
    mean = 0.1 * jax.random.normal(k4, (cout,), jnp.float32)
    var = 0.5 + 0.1 * jnp.abs(jax.random.normal(k5, (cout,), jnp.float32))
    return _fold_bn(w, gamma, beta, mean, var)


def init_spp_params(key, c1, c2, k=(5, 9, 13)):
    c_ = c1 // 2
    k1, k2 = jax.random.split(key)
    w1, b1 = _init_conv_bn(k1, 1, 1, c1, c_)
    w2, b2 = _init_conv_bn(k2, 1, 1, c_ * (len(k) + 1), c2)
    return {
        'cv1_w': w1.reshape(c1, c_), 'cv1_b': b1,
        'cv2_w': w2.reshape(c_ * (len(k) + 1), c2), 'cv2_b': b2,
        'k': tuple(k),
    }


# ----------------------------------------------------------------------------
# Pure-JAX reference for verification
# ----------------------------------------------------------------------------
def spp_reference(params, x_nchw):
    x = jnp.transpose(x_nchw, (0, 2, 3, 1))

    def pw(z, w, b):
        y = jax.lax.conv_general_dilated(
            z, w.reshape(1, 1, *w.shape), (1, 1), 'VALID',
            dimension_numbers=('NHWC', 'HWIO', 'NHWC'),
            precision=jax.lax.Precision.HIGHEST) + b
        return y * jax.nn.sigmoid(y)

    y = pw(x, params['cv1_w'], params['cv1_b'])
    pools = []
    for kk in params['k']:
        pad = kk // 2
        pools.append(jax.lax.reduce_window(
            y, -jnp.inf, jax.lax.max,
            window_dimensions=(1, kk, kk, 1),
            window_strides=(1, 1, 1, 1),
            padding=((0, 0), (pad, pad), (pad, pad), (0, 0))))
    cat = jnp.concatenate([y] + pools, axis=-1)
    out = pw(cat, params['cv2_w'], params['cv2_b'])
    return jnp.transpose(out, (0, 3, 1, 2))


# ----------------------------------------------------------------------------
if __name__ == "__main__":
    key = jax.random.PRNGKey(0)
    kx, kp = jax.random.split(key)

    N, c1, c2, H, W = 2, 4, 8, 16, 16    # small shapes; k=(5, 9, 13) (module defaults)
    x = jax.random.normal(kx, (N, c1, H, W), jnp.float32)
    params = init_spp_params(kp, c1, c2, k=(5, 9, 13))

    ref = jax.block_until_ready(spp_reference(params, x))

    # Exact-precision path (f32 MXU operands) — tight tolerance.
    out_f32 = jax.block_until_ready(spp_pallas(params, x, mxu_dtype=jnp.float32))
    assert out_f32.shape == (N, c2, H, W) and out_f32.dtype == jnp.float32
    np.testing.assert_allclose(np.asarray(out_f32), np.asarray(ref), rtol=2e-3, atol=2e-3)

    # Default fast path: bf16 MXU operands, f32 accumulation (recommended on v5e/v6e/v7x).
    out_bf16 = jax.block_until_ready(spp_pallas(params, x))
    assert out_bf16.shape == (N, c2, H, W)
    np.testing.assert_allclose(np.asarray(out_bf16), np.asarray(ref), rtol=2e-2, atol=2e-2)

    print("KERNEL_OK")
</pallas_src>

<mosaic_0001>
module attributes {stable_mosaic.version = 11 : i64} {
  func.func @_spp_fused_kernel(%arg0: i32, %arg1: memref<1x4x256xf32, #tpu.memory_space<vmem>>, %arg2: memref<4x2xf32, #tpu.memory_space<vmem>>, %arg3: memref<1x2xf32, #tpu.memory_space<vmem>>, %arg4: memref<8x8xf32, #tpu.memory_space<vmem>>, %arg5: memref<8x1xf32, #tpu.memory_space<vmem>>, %arg6: memref<1x8x256xf32, #tpu.memory_space<vmem>>, %arg7: memref<28x28x2xf32, #tpu.memory_space<vmem>>, %arg8: memref<256x8xf32, #tpu.memory_space<vmem>>) attributes {dimension_semantics = [#tpu.dimension_semantics<parallel>], iteration_bounds = array<i64: 2>, scalar_prefetch = 0 : i64, scratch_operands = 2 : i64, tpu.core_type = #tpu.core_type<tc>, window_params = [{transform_indices = @transform_0, window_bounds = array<i64: 1, 4, 256>}, {pipeline_mode = #tpu.pipeline_mode<synchronous>, transform_indices = @transform_1, window_bounds = array<i64: 4, 2>}, {pipeline_mode = #tpu.pipeline_mode<synchronous>, transform_indices = @transform_2, window_bounds = array<i64: 1, 2>}, {pipeline_mode = #tpu.pipeline_mode<synchronous>, transform_indices = @transform_3, window_bounds = array<i64: 8, 8>}, {pipeline_mode = #tpu.pipeline_mode<synchronous>, transform_indices = @transform_4, window_bounds = array<i64: 8, 1>}, {transform_indices = @transform_5, window_bounds = array<i64: 1, 8, 256>}]} {
    %c0 = arith.constant 0 : index
    %c0_0 = arith.constant 0 : index
    %c0_1 = arith.constant 0 : index
    %0 = vector.load %arg1[%c0, %c0_0, %c0_1] : memref<1x4x256xf32, #tpu.memory_space<vmem>>, vector<1x4x256xf32>
    %1 = vector.shape_cast %0 : vector<1x4x256xf32> to vector<4x256xf32>
    %c0_2 = arith.constant 0 : index
    %c0_3 = arith.constant 0 : index
    %2 = vector.load %arg2[%c0_2, %c0_3] : memref<4x2xf32, #tpu.memory_space<vmem>>, vector<4x2xf32>
    %cst = arith.constant dense<0.000000e+00> : vector<256x2xf32>
    %3 = tpu.matmul %1, %2, %cst {dimension_numbers = #tpu.dot_dimension_numbers<[0], [0], [1], [1], [0, 1, 1, 1], [], []>} : vector<4x256xf32>, vector<4x2xf32>, vector<256x2xf32> -> vector<256x2xf32>
    %c0_4 = arith.constant 0 : index
    %c0_5 = arith.constant 0 : index
    %4 = vector.load %arg3[%c0_4, %c0_5] : memref<1x2xf32, #tpu.memory_space<vmem>>, vector<1x2xf32>
    %5 = vector.broadcast %4 : vector<1x2xf32> to vector<256x2xf32>
    %6 = arith.addf %3, %5 : vector<256x2xf32>
    %7 = arith.negf %6 : vector<256x2xf32>
    %8 = math.exp %7 : vector<256x2xf32>
    %cst_6 = arith.constant 1.000000e+00 : f32
    %9 = vector.broadcast %cst_6 : f32 to vector<256x2xf32>
    %10 = arith.addf %9, %8 : vector<256x2xf32>
    %11 = arith.divf %9, %10 : vector<256x2xf32>
    %12 = arith.mulf %6, %11 : vector<256x2xf32>
    %c0_7 = arith.constant 0 : index
    %c0_8 = arith.constant 0 : index
    %13 = vector.load %arg8[%c0_7, %c0_8] : memref<256x8xf32, #tpu.memory_space<vmem>>, vector<256x2xf32>
    tpu.vector_store %arg8[%c0_7, %c0_8], %12 {strides = array<i32>} : memref<256x8xf32, #tpu.memory_space<vmem>>, vector<256x2xf32>,
    %cst_9 = arith.constant 0xFF800000 : f32
    %14 = vector.broadcast %cst_9 : f32 to vector<28x28x2xf32>
    %c0_10 = arith.constant 0 : index
    %c0_11 = arith.constant 0 : index
    %c0_12 = arith.constant 0 : index
    %15 = vector.load %arg7[%c0_10, %c0_11, %c0_12] : memref<28x28x2xf32, #tpu.memory_space<vmem>>, vector<28x28x2xf32>
    tpu.vector_store %arg7[%c0_10, %c0_11, %c0_12], %14 {strides = array<i32>} : memref<28x28x2xf32, #tpu.memory_space<vmem>>, vector<28x28x2xf32>,
    %16 = vector.shape_cast %12 : vector<256x2xf32> to vector<16x16x2xf32>
    %c6 = arith.constant 6 : index
    %c6_13 = arith.constant 6 : index
    %c0_14 = arith.constant 0 : index
    %17 = vector.load %arg7[%c6, %c6_13, %c0_14] : memref<28x28x2xf32, #tpu.memory_space<vmem>>, vector<16x16x2xf32>
    tpu.vector_store %arg7[%c6, %c6_13, %c0_14], %16 {strides = array<i32>} : memref<28x28x2xf32, #tpu.memory_space<vmem>>, vector<16x16x2xf32>,
    %c0_15 = arith.constant 0 : index
    %c0_16 = arith.constant 0 : index
    %c0_17 = arith.constant 0 : index
    %18 = vector.load %arg7[%c0_15, %c0_16, %c0_17] : memref<28x28x2xf32, #tpu.memory_space<vmem>>, vector<28x28x2xf32>
    %19 = vector.extract_strided_slice %18 {offsets = [0, 0, 0], sizes = [24, 28, 2], strides = [1, 1, 1]} : vector<28x28x2xf32> to vector<24x28x2xf32>
    %20 = vector.extract_strided_slice %18 {offsets = [1, 0, 0], sizes = [24, 28, 2], strides = [1, 1, 1]} : vector<28x28x2xf32> to vector<24x28x2xf32>
    %21 = arith.maximumf %19, %20 : vector<24x28x2xf32>
    %22 = vector.extract_strided_slice %18 {offsets = [2, 0, 0], sizes = [24, 28, 2], strides = [1, 1, 1]} : vector<28x28x2xf32> to vector<24x28x2xf32>
    %23 = arith.maximumf %21, %22 : vector<24x28x2xf32>
    %24 = vector.extract_strided_slice %18 {offsets = [3, 0, 0], sizes = [24, 28, 2], strides = [1, 1, 1]} : vector<28x28x2xf32> to vector<24x28x2xf32>
    %25 = arith.maximumf %23, %24 : vector<24x28x2xf32>
    %26 = vector.extract_strided_slice %18 {offsets = [4, 0, 0], sizes = [24, 28, 2], strides = [1, 1, 1]} : vector<28x28x2xf32> to vector<24x28x2xf32>
    %27 = arith.maximumf %25, %26 : vector<24x28x2xf32>
    %28 = vector.extract_strided_slice %27 {offsets = [0, 0, 0], sizes = [24, 24, 2], strides = [1, 1, 1]} : vector<24x28x2xf32> to vector<24x24x2xf32>
    %29 = vector.extract_strided_slice %27 {offsets = [0, 1, 0], sizes = [24, 24, 2], strides = [1, 1, 1]} : vector<24x28x2xf32> to vector<24x24x2xf32>
    %30 = arith.maximumf %28, %29 : vector<24x24x2xf32>
    %31 = vector.extract_strided_slice %27 {offsets = [0, 2, 0], sizes = [24, 24, 2], strides = [1, 1, 1]} : vector<24x28x2xf32> to vector<24x24x2xf32>
    %32 = arith.maximumf %30, %31 : vector<24x24x2xf32>
    %33 = vector.extract_strided_slice %27 {offsets = [0, 3, 0], sizes = [24, 24, 2], strides = [1, 1, 1]} : vector<24x28x2xf32> to vector<24x24x2xf32>
    %34 = arith.maximumf %32, %33 : vector<24x24x2xf32>
    %35 = vector.extract_strided_slice %27 {offsets = [0, 4, 0], sizes = [24, 24, 2], strides = [1, 1, 1]} : vector<24x28x2xf32> to vector<24x24x2xf32>
    %36 = arith.maximumf %34, %35 : vector<24x24x2xf32>
    %37 = vector.extract_strided_slice %36 {offsets = [4, 4, 0], sizes = [16, 16, 2], strides = [1, 1, 1]} : vector<24x24x2xf32> to vector<16x16x2xf32>
    %38 = vector.shape_cast %37 : vector<16x16x2xf32> to vector<256x2xf32>
    %c0_18 = arith.constant 0 : index
    %c2 = arith.constant 2 : index
    %39 = vector.load %arg8[%c0_18, %c2] : memref<256x8xf32, #tpu.memory_space<vmem>>, vector<256x2xf32>
    tpu.vector_store %arg8[%c0_18, %c2], %38 {strides = array<i32>} : memref<256x8xf32, #tpu.memory_space<vmem>>, vector<256x2xf32>,
    %40 = vector.extract_strided_slice %36 {offsets = [0, 0, 0], sizes = [20, 24, 2], strides = [1, 1, 1]} : vector<24x24x2xf32> to vector<20x24x2xf32>
    %41 = vector.extract_strided_slice %36 {offsets = [1, 0, 0], sizes = [20, 24, 2], strides = [1, 1, 1]} : vector<24x24x2xf32> to vector<20x24x2xf32>
    %42 = arith.maximumf %40, %41 : vector<20x24x2xf32>
    %43 = vector.extract_strided_slice %36 {offsets = [2, 0, 0], sizes = [20, 24, 2], strides = [1, 1, 1]} : vector<24x24x2xf32> to vector<20x24x2xf32>
    %44 = arith.maximumf %42, %43 : vector<20x24x2xf32>
    %45 = vector.extract_strided_slice %36 {offsets = [3, 0, 0], sizes = [20, 24, 2], strides = [1, 1, 1]} : vector<24x24x2xf32> to vector<20x24x2xf32>
    %46 = arith.maximumf %44, %45 : vector<20x24x2xf32>
    %47 = vector.extract_strided_slice %36 {offsets = [4, 0, 0], sizes = [20, 24, 2], strides = [1, 1, 1]} : vector<24x24x2xf32> to vector<20x24x2xf32>
    %48 = arith.maximumf %46, %47 : vector<20x24x2xf32>
    %49 = vector.extract_strided_slice %48 {offsets = [0, 0, 0], sizes = [20, 20, 2], strides = [1, 1, 1]} : vector<20x24x2xf32> to vector<20x20x2xf32>
    %50 = vector.extract_strided_slice %48 {offsets = [0, 1, 0], sizes = [20, 20, 2], strides = [1, 1, 1]} : vector<20x24x2xf32> to vector<20x20x2xf32>
    %51 = arith.maximumf %49, %50 : vector<20x20x2xf32>
    %52 = vector.extract_strided_slice %48 {offsets = [0, 2, 0], sizes = [20, 20, 2], strides = [1, 1, 1]} : vector<20x24x2xf32> to vector<20x20x2xf32>
    %53 = arith.maximumf %51, %52 : vector<20x20x2xf32>
    %54 = vector.extract_strided_slice %48 {offsets = [0, 3, 0], sizes = [20, 20, 2], strides = [1, 1, 1]} : vector<20x24x2xf32> to vector<20x20x2xf32>
    %55 = arith.maximumf %53, %54 : vector<20x20x2xf32>
    %56 = vector.extract_strided_slice %48 {offsets = [0, 4, 0], sizes = [20, 20, 2], strides = [1, 1, 1]} : vector<20x24x2xf32> to vector<20x20x2xf32>
    %57 = arith.maximumf %55, %56 : vector<20x20x2xf32>
    %58 = vector.extract_strided_slice %57 {offsets = [2, 2, 0], sizes = [16, 16, 2], strides = [1, 1, 1]} : vector<20x20x2xf32> to vector<16x16x2xf32>
    %59 = vector.shape_cast %58 : vector<16x16x2xf32> to vector<256x2xf32>
    %c0_19 = arith.constant 0 : index
    %c4 = arith.constant 4 : index
    %60 = vector.load %arg8[%c0_19, %c4] : memref<256x8xf32, #tpu.memory_space<vmem>>, vector<256x2xf32>
    tpu.vector_store %arg8[%c0_19, %c4], %59 {strides = array<i32>} : memref<256x8xf32, #tpu.memory_space<vmem>>, vector<256x2xf32>,
    %61 = vector.extract_strided_slice %57 {offsets = [0, 0, 0], sizes = [16, 20, 2], strides = [1, 1, 1]} : vector<20x20x2xf32> to vector<16x20x2xf32>
    %62 = vector.extract_strided_slice %57 {offsets = [1, 0, 0], sizes = [16, 20, 2], strides = [1, 1, 1]} : vector<20x20x2xf32> to vector<16x20x2xf32>
    %63 = arith.maximumf %61, %62 : vector<16x20x2xf32>
    %64 = vector.extract_strided_slice %57 {offsets = [2, 0, 0], sizes = [16, 20, 2], strides = [1, 1, 1]} : vector<20x20x2xf32> to vector<16x20x2xf32>
    %65 = arith.maximumf %63, %64 : vector<16x20x2xf32>
    %66 = vector.extract_strided_slice %57 {offsets = [3, 0, 0], sizes = [16, 20, 2], strides = [1, 1, 1]} : vector<20x20x2xf32> to vector<16x20x2xf32>
    %67 = arith.maximumf %65, %66 : vector<16x20x2xf32>
    %68 = vector.extract_strided_slice %57 {offsets = [4, 0, 0], sizes = [16, 20, 2], strides = [1, 1, 1]} : vector<20x20x2xf32> to vector<16x20x2xf32>
    %69 = arith.maximumf %67, %68 : vector<16x20x2xf32>
    %70 = vector.extract_strided_slice %69 {offsets = [0, 0, 0], sizes = [16, 16, 2], strides = [1, 1, 1]} : vector<16x20x2xf32> to vector<16x16x2xf32>
    %71 = vector.extract_strided_slice %69 {offsets = [0, 1, 0], sizes = [16, 16, 2], strides = [1, 1, 1]} : vector<16x20x2xf32> to vector<16x16x2xf32>
    %72 = arith.maximumf %70, %71 : vector<16x16x2xf32>
    %73 = vector.extract_strided_slice %69 {offsets = [0, 2, 0], sizes = [16, 16, 2], strides = [1, 1, 1]} : vector<16x20x2xf32> to vector<16x16x2xf32>
    %74 = arith.maximumf %72, %73 : vector<16x16x2xf32>
    %75 = vector.extract_strided_slice %69 {offsets = [0, 3, 0], sizes = [16, 16, 2], strides = [1, 1, 1]} : vector<16x20x2xf32> to vector<16x16x2xf32>
    %76 = arith.maximumf %74, %75 : vector<16x16x2xf32>
    %77 = vector.extract_strided_slice %69 {offsets = [0, 4, 0], sizes = [16, 16, 2], strides = [1, 1, 1]} : vector<16x20x2xf32> to vector<16x16x2xf32>
    %78 = arith.maximumf %76, %77 : vector<16x16x2xf32>
    %79 = vector.shape_cast %78 : vector<16x16x2xf32> to vector<256x2xf32>
    %c0_20 = arith.constant 0 : index
    %c6_21 = arith.constant 6 : index
    %80 = vector.load %arg8[%c0_20, %c6_21] : memref<256x8xf32, #tpu.memory_space<vmem>>, vector<256x2xf32>
    tpu.vector_store %arg8[%c0_20, %c6_21], %79 {strides = array<i32>} : memref<256x8xf32, #tpu.memory_space<vmem>>, vector<256x2xf32>,
    %c0_22 = arith.constant 0 : index
    %c0_23 = arith.constant 0 : index
    %81 = vector.load %arg4[%c0_22, %c0_23] : memref<8x8xf32, #tpu.memory_space<vmem>>, vector<8x8xf32>
    %c0_24 = arith.constant 0 : index
    %c0_25 = arith.constant 0 : index
    %82 = vector.load %arg8[%c0_24, %c0_25] : memref<256x8xf32, #tpu.memory_space<vmem>>, vector<256x8xf32>
    %cst_26 = arith.constant dense<0.000000e+00> : vector<8x256xf32>
    %83 = tpu.matmul %81, %82, %cst_26 {dimension_numbers = #tpu.dot_dimension_numbers<[1], [1], [0], [0], [0, 0, 1, 0], [], []>} : vector<8x8xf32>, vector<256x8xf32>, vector<8x256xf32> -> vector<8x256xf32>
    %c0_27 = arith.constant 0 : index
    %c0_28 = arith.constant 0 : index
    %84 = vector.load %arg5[%c0_27, %c0_28] : memref<8x1xf32, #tpu.memory_space<vmem>>, vector<8x1xf32>
    %85 = vector.broadcast %84 : vector<8x1xf32> to vector<8x256xf32>
    %86 = arith.addf %83, %85 : vector<8x256xf32>
    %87 = arith.negf %86 : vector<8x256xf32>
    %88 = math.exp %87 : vector<8x256xf32>
    %cst_29 = arith.constant 1.000000e+00 : f32
    %89 = vector.broadcast %cst_29 : f32 to vector<8x256xf32>
    %90 = arith.addf %89, %88 : vector<8x256xf32>
    %91 = arith.divf %89, %90 : vector<8x256xf32>
    %92 = arith.mulf %86, %91 : vector<8x256xf32>
    %c0_30 = arith.constant 0 : index
    %c0_31 = arith.constant 0 : index
    %c0_32 = arith.constant 0 : index
    %93 = vector.load %arg6[%c0_30, %c0_31, %c0_32] : memref<1x8x256xf32, #tpu.memory_space<vmem>>, vector<1x8x256xf32>
    %94 = vector.shape_cast %93 : vector<1x8x256xf32> to vector<8x256xf32>
    %95 = vector.shape_cast %92 : vector<8x256xf32> to vector<1x8x256xf32>
    tpu.vector_store %arg6[%c0_30, %c0_31, %c0_32], %95 {strides = array<i32>} : memref<1x8x256xf32, #tpu.memory_space<vmem>>, vector<1x8x256xf32>,
    return
  }
  func.func @transform_0(%arg0: i32) -> (i32, i32, i32) {
    %c0_i32 = arith.constant 0 : i32
    %c0_i32_0 = arith.constant 0 : i32
    %c0_i32_1 = arith.constant 0 : i32
    return %arg0, %c0_i32, %c0_i32_0 : i32, i32, i32
  }
  func.func @transform_1(%arg0: i32) -> (i32, i32) {
    %c0_i32 = arith.constant 0 : i32
    %c0_i32_0 = arith.constant 0 : i32
    %c0_i32_1 = arith.constant 0 : i32
    return %c0_i32, %c0_i32_0 : i32, i32
  }
  func.func @transform_2(%arg0: i32) -> (i32, i32) {
    %c0_i32 = arith.constant 0 : i32
    %c0_i32_0 = arith.constant 0 : i32
    %c0_i32_1 = arith.constant 0 : i32
    return %c0_i32, %c0_i32_0 : i32, i32
  }
  func.func @transform_3(%arg0: i32) -> (i32, i32) {
    %c0_i32 = arith.constant 0 : i32
    %c0_i32_0 = arith.constant 0 : i32
    %c0_i32_1 = arith.constant 0 : i32
    return %c0_i32, %c0_i32_0 : i32, i32
  }
  func.func @transform_4(%arg0: i32) -> (i32, i32) {
    %c0_i32 = arith.constant 0 : i32
    %c0_i32_0 = arith.constant 0 : i32
    %c0_i32_1 = arith.constant 0 : i32
    return %c0_i32, %c0_i32_0 : i32, i32
  }
  func.func @transform_5(%arg0: i32) -> (i32, i32, i32) {
    %c0_i32 = arith.constant 0 : i32
    %c0_i32_0 = arith.constant 0 : i32
    %c0_i32_1 = arith.constant 0 : i32
    return %arg0, %c0_i32, %c0_i32_0 : i32, i32, i32
  }
}

</mosaic_0001>

<llo_original>
// kernel: tpu_custom_call.1
$region0: #{tpu_custom_call.1}
  #allocation0 [shape = 'u32[]', space=smem, size = 0x4, offset = 0x4, fixed_abs, tag = 'smem constant byte address 0x4 - core index']
  #allocation1 [shape = 'u32[72,128]{1,0:T(1,128)}', space=vmem, size = 0x9000, scoped, tag = 'internal scratch']
  #allocation2 [shape = 'f32[28,28,2]{2,1,0:T(8,128)}', space=vmem, size = 0x70000, scoped, tag = 'scratch operand']
  #allocation3 [shape = 'f32[256,8]{1,0:T(8,128)}', space=vmem, size = 0x20000, scoped, tag = 'scratch operand']
  %s0 = inlined_call_operand.hbm [shape: f32[2,4,256], index: 0, kind: input, shape index: {}]
  %s1 = inlined_call_operand.vmem [shape: f32[4,2], index: 1, kind: input, shape index: {}]
  %s2 = inlined_call_operand.vmem [shape: f32[1,2], index: 2, kind: input, shape index: {}]
  %s3 = inlined_call_operand.vmem [shape: f32[8,8], index: 3, kind: input, shape index: {}]
  %s4 = inlined_call_operand.vmem [shape: f32[8,1], index: 4, kind: input, shape index: {}]
  %s5 = inlined_call_operand.hbm [shape: f32[2,8,256], index: 5, kind: output, shape index: {}]
  %s6 = sld [smem:[#allocation0]]
  $region57: #{tpu_custom_call.1} parent=0
    _
  %s8 = ssub.s32 1, %s6
  %s9 = scalar_select 0, %s8, %s6
  $region1: #{tpu_custom_call.1} parent=0
    #allocation4 [shape = 'u8[8192]{0}', space=vmem, size = 0x2000, scoped, tag = 'input window, operand 0']
    #allocation5 [shape = 's32[2]{0}', space=sflag, size = 0x8, scoped, tag = 'scoped memory for tpu_custom_call.1']
    #allocation6 [shape = 's32[2]{0}', space=sflag, size = 0x8, scoped, tag = 'scoped memory for tpu_custom_call.1']
    #allocation7 [shape = 'u8[16384]{0}', space=vmem, size = 0x4000, scoped, tag = 'output window, operand 0']
    %10 = vsyncpa [#allocation5], 0
    %s11 = scalar_lea.sflag [#allocation5], 1
    %12 = vsyncpa %s11, 0
    %13 = vsyncpa [#allocation6], 0
    %s14 = scalar_lea.sflag [#allocation6], 1
    %15 = vsyncpa %s14, 0
    loop: start=0, step=1, limit=4
    $region2: #{tpu_custom_call.1} parent=1 // loop_pre_header
      _
    $region3: #{tpu_custom_call.1} parent=1 // loop_header
      %s17 = sphi 0, %s21
      %p18 = scmp.ge.s32.totalorder %s17, 4
      %s27 = sphi 0, %s29
      %s30 = sphi 0, %s27
      %s31 = sphi 0, %s30
      %s47 = sphi 0, %s31
      %s51 = sphi 0, %s51
      %s53 = sphi 0, %s51
      %s54 = sphi 0, %s53
      %s68 = sphi 0, %s54
      %s72 = sphi 0, %s72
      %s74 = sphi 0, %s72
      %s75 = sphi 0, %s74
      %s89 = sphi 0, %s75
      %s93 = sphi 0, %s93
      %s95 = sphi 0, %s93
      %s96 = sphi 0, %s95
      %s110 = sphi 0, %s96
      %s114 = sphi 0, %s114
      %s116 = sphi 0, %s114
      %s117 = sphi 0, %s116
      %s131 = sphi 0, %s117
      %s137 = sphi 0, %s139
      %s140 = sphi 0, %s137
      %s141 = sphi 0, %s140
      %s157 = sphi 0, %s141
    $region4: #{tpu_custom_call.1} parent=1 // loop_header_branch
      %20 = sbr.rel (%p18) target = $region8
    $region5: #{tpu_custom_call.1} parent=1 // loop_body
      %s22 = ssub.s32 %s17, 1
      %s23 = ssub.s32 %s17, 2
      %s24 = sadd.s32 %s17, 1
      %s25 = ssub.s32 %s17, %s24
      %p26 = scmp.eq.s32.totalorder %s25, 0
      %s28 = sadd.s32 %s27, 1
      %s29 = scalar_select %p26, %s27, %s28
      %p32 = pneg %p26
      %p33 = scmp.eq.s32.totalorder %s17, 1
      %p34 = por %p32, %p33
      %p35 = scmp.ne.s32.totalorder %s27, %s30
      %p36 = scmp.eq.s32.totalorder %s17, 0
      %p37 = por %p35, %p36
      %p38 = scmp.ne.s32.totalorder %s27, %s30
      %p39 = scmp.eq.s32.totalorder %s22, 1
      %p40 = por %p38, %p39
      %p41 = scmp.ne.s32.totalorder %s30, %s31
      %p42 = scmp.eq.s32.totalorder %s22, 0
      %p43 = por %p41, %p42
      %p44 = scmp.ne.s32.totalorder %s30, %s31
      %p45 = scmp.eq.s32.totalorder %s23, 1
      %p46 = por %p44, %p45
      %p48 = scmp.ne.s32.totalorder %s31, %s47
      %p49 = scmp.eq.s32.totalorder %s23, 0
      %p50 = por %p48, %p49
      %s52 = sadd.s32 %s51, 1
      %p55 = scmp.eq.s32.totalorder %s17, 1
      %p56 = scmp.ne.s32.totalorder %s51, %s53
      %p57 = scmp.eq.s32.totalorder %s17, 0
      %p58 = por %p56, %p57
      %p59 = scmp.ne.s32.totalorder %s51, %s53
      %p60 = scmp.eq.s32.totalorder %s22, 1
      %p61 = por %p59, %p60
      %p62 = scmp.ne.s32.totalorder %s53, %s54
      %p63 = scmp.eq.s32.totalorder %s22, 0
      %p64 = por %p62, %p63
      %p65 = scmp.ne.s32.totalorder %s53, %s54
      %p66 = scmp.eq.s32.totalorder %s23, 1
      %p67 = por %p65, %p66
      %p69 = scmp.ne.s32.totalorder %s54, %s68
      %p70 = scmp.eq.s32.totalorder %s23, 0
      %p71 = por %p69, %p70
      %s73 = sadd.s32 %s72, 1
      %p76 = scmp.eq.s32.totalorder %s17, 1
      %p77 = scmp.ne.s32.totalorder %s72, %s74
      %p78 = scmp.eq.s32.totalorder %s17, 0
      %p79 = por %p77, %p78
      %p80 = scmp.ne.s32.totalorder %s72, %s74
      %p81 = scmp.eq.s32.totalorder %s22, 1
      %p82 = por %p80, %p81
      %p83 = scmp.ne.s32.totalorder %s74, %s75
      %p84 = scmp.eq.s32.totalorder %s22, 0
      %p85 = por %p83, %p84
      %p86 = scmp.ne.s32.totalorder %s74, %s75
      %p87 = scmp.eq.s32.totalorder %s23, 1
      %p88 = por %p86, %p87
      %p90 = scmp.ne.s32.totalorder %s75, %s89
      %p91 = scmp.eq.s32.totalorder %s23, 0
      %p92 = por %p90, %p91
      %s94 = sadd.s32 %s93, 1
      %p97 = scmp.eq.s32.totalorder %s17, 1
      %p98 = scmp.ne.s32.totalorder %s93, %s95
      %p99 = scmp.eq.s32.totalorder %s17, 0
      %p100 = por %p98, %p99
      %p101 = scmp.ne.s32.totalorder %s93, %s95
      %p102 = scmp.eq.s32.totalorder %s22, 1
      %p103 = por %p101, %p102
      %p104 = scmp.ne.s32.totalorder %s95, %s96
      %p105 = scmp.eq.s32.totalorder %s22, 0
      %p106 = por %p104, %p105
      %p107 = scmp.ne.s32.totalorder %s95, %s96
      %p108 = scmp.eq.s32.totalorder %s23, 1
      %p109 = por %p107, %p108
      %p111 = scmp.ne.s32.totalorder %s96, %s110
      %p112 = scmp.eq.s32.totalorder %s23, 0
      %p113 = por %p111, %p112
      %s115 = sadd.s32 %s114, 1
      %p118 = scmp.eq.s32.totalorder %s17, 1
      %p119 = scmp.ne.s32.totalorder %s114, %s116
      %p120 = scmp.eq.s32.totalorder %s17, 0
      %p121 = por %p119, %p120
      %p122 = scmp.ne.s32.totalorder %s114, %s116
      %p123 = scmp.eq.s32.totalorder %s22, 1
      %p124 = por %p122, %p123
      %p125 = scmp.ne.s32.totalorder %s116, %s117
      %p126 = scmp.eq.s32.totalorder %s22, 0
      %p127 = por %p125, %p126
      %p128 = scmp.ne.s32.totalorder %s116, %s117
      %p129 = scmp.eq.s32.totalorder %s23, 1
      %p130 = por %p128, %p129
      %p132 = scmp.ne.s32.totalorder %s117, %s131
      %p133 = scmp.eq.s32.totalorder %s23, 0
      %p134 = por %p132, %p133
      %s135 = ssub.s32 %s17, %s24
      %p136 = scmp.eq.s32.totalorder %s135, 0
      %s138 = sadd.s32 %s137, 1
      %s139 = scalar_select %p136, %s137, %s138
      %p142 = pneg %p136
      %p143 = scmp.eq.s32.totalorder %s17, 1
      %p144 = por %p142, %p143
      %p145 = scmp.ne.s32.totalorder %s137, %s140
      %p146 = scmp.eq.s32.totalorder %s17, 0
      %p147 = por %p145, %p146
      %p148 = scmp.ne.s32.totalorder %s137, %s140
      %p149 = scmp.eq.s32.totalorder %s22, 1
      %p150 = por %p148, %p149
      %p151 = scmp.ne.s32.totalorder %s140, %s141
      %p152 = scmp.eq.s32.totalorder %s22, 0
      %p153 = por %p151, %p152
      %p154 = scmp.ne.s32.totalorder %s140, %s141
      %p155 = scmp.eq.s32.totalorder %s23, 1
      %p156 = por %p154, %p155
      %p158 = scmp.ne.s32.totalorder %s141, %s157
      %p159 = scmp.eq.s32.totalorder %s23, 0
      %p160 = por %p158, %p159
      %p161 = scmp.le.s32.totalorder 1, %s17
      %p162 = scmp.lt.s32.totalorder %s17, 3
      %p163 = pnand %p161, %p162
      %p164 = pneg %p163
      // Predicated region
      $region9: #{tpu_custom_call.1} parent=5 // pred_check
        _
      $region10: #{tpu_custom_call.1} parent=5 // pred_check_branch
        %166 = sbr.rel (%p163) target = $region12
      $region11: #{tpu_custom_call.1} parent=5 // pred_region
        %s167 = ssub.s32 %s17, 1
        // Predicated region
        $region13: #{tpu_custom_call.1} parent=11 // pred_check
          %p168 = pneg %p64
        $region14: #{tpu_custom_call.1} parent=11 // pred_check_branch
          %170 = sbr.rel (%p168) target = $region16
        $region15: #{tpu_custom_call.1} parent=11 // pred_region
          _
        $region16: #{tpu_custom_call.1} parent=11 // pred_fallthru
          _
        // Predicated region
        $region17: #{tpu_custom_call.1} parent=11 // pred_check
          %p171 = pneg %p85
        $region18: #{tpu_custom_call.1} parent=11 // pred_check_branch
          %173 = sbr.rel (%p171) target = $region20
        $region19: #{tpu_custom_call.1} parent=11 // pred_region
          _
        $region20: #{tpu_custom_call.1} parent=11 // pred_fallthru
          _
        // Predicated region
        $region21: #{tpu_custom_call.1} parent=11 // pred_check
          %p174 = pneg %p106
        $region22: #{tpu_custom_call.1} parent=11 // pred_check_branch
          %176 = sbr.rel (%p174) target = $region24
        $region23: #{tpu_custom_call.1} parent=11 // pred_region
          _
        $region24: #{tpu_custom_call.1} parent=11 // pred_fallthru
          _
        // Predicated region
        $region25: #{tpu_custom_call.1} parent=11 // pred_check
          %p177 = pneg %p127
        $region26: #{tpu_custom_call.1} parent=11 // pred_check_branch
          %179 = sbr.rel (%p177) target = $region28
        $region27: #{tpu_custom_call.1} parent=11 // pred_region
          _
        $region28: #{tpu_custom_call.1} parent=11 // pred_fallthru
          _
      $region12: #{tpu_custom_call.1} parent=5 // pred_fallthru
        _
      %p180 = scmp.lt.s32.totalorder %s17, 2
      // Predicated region
      $region29: #{tpu_custom_call.1} parent=5 // pred_check
        %p181 = pneg %p180
      $region30: #{tpu_custom_call.1} parent=5 // pred_check_branch
        %183 = sbr.rel (%p181) target = $region32
      $region31: #{tpu_custom_call.1} parent=5 // pred_region
        // Predicated region
        $region33: #{tpu_custom_call.1} parent=31 // pred_check
          %p184 = pneg %p37
        $region34: #{tpu_custom_call.1} parent=31 // pred_check_branch
          %186 = sbr.rel (%p184) target = $region36
        $region35: #{tpu_custom_call.1} parent=31 // pred_region
          %s187 = sand.u32 %s27, 1
          %s188 = scalar_lea.sflag [#allocation5], %s187
          %s189 = sand.u32 %s27, 1
          %s190 = smul.addr %s189, 8
          %s191 = scalar_lea.vmem [#allocation4], %s190
          %193 = vsyncadd %s188, 0
          %s194 = smul.addr %s17, 2
          %s195 = smul.addr %s194, 4
          %s196 = scalar_lea.hbm %s0, %s195
          %s198 = sshll.u32 %s196, 4
          %s199 = int_to_ptr.hbm [resolvable:$true] %s198
          %s200 = sshll.u32 %s191, 4
          %s201 = int_to_ptr.vmem [resolvable:$true] %s200
          %203 = dma.hbm_to_vmem [thread:$0]  %s199, 128, %s201, %s188
        $region36: #{tpu_custom_call.1} parent=31 // pred_fallthru
          _
      $region32: #{tpu_custom_call.1} parent=5 // pred_fallthru
        _
      %p204 = scmp.le.s32.totalorder 1, %s17
      %p205 = scmp.lt.s32.totalorder %s17, 3
      %p206 = pnand %p204, %p205
      %p207 = pneg %p206
      // Predicated region
      $region37: #{tpu_custom_call.1} parent=5 // pred_check
        _
      $region38: #{tpu_custom_call.1} parent=5 // pred_check_branch
        %209 = sbr.rel (%p206) target = $region40
      $region39: #{tpu_custom_call.1} parent=5 // pred_region
        %s210 = ssub.s32 %s17, 1
        %s211 = sand.u32 %s30, 1
        %s212 = scalar_lea.sflag [#allocation5], %s211
        %s213 = sand.u32 %s30, 1
        %s214 = smul.addr %s213, 8
        %s215 = scalar_lea.vmem [#allocation4], %s214
        // Predicated region
        $region41: #{tpu_custom_call.1} parent=39 // pred_check
          %p216 = pneg %p43
        $region42: #{tpu_custom_call.1} parent=39 // pred_check_branch
          %218 = sbr.rel (%p216) target = $region44
        $region43: #{tpu_custom_call.1} parent=39 // pred_region
          %220 = dma.done %s212, 128
        $region44: #{tpu_custom_call.1} parent=39 // pred_fallthru
          _
        %s221 = sand.u32 %s30, 1
        %s222 = scalar_lea.sflag [#allocation5], %s221
        %s223 = sand.u32 %s30, 1
        %s224 = smul.addr %s223, 8
        %s225 = scalar_lea.vmem [#allocation4], %s224
        %p226 = pneg %p43
        %p227 = pneg %p40
        %p228 = pneg %p64
        %p229 = pneg %p61
        %p230 = pneg %p85
        %p231 = pneg %p82
        %p232 = pneg %p106
        %p233 = pneg %p103
        %p234 = pneg %p127
        %p235 = pneg %p124
        %p236 = pneg %p153
        %p237 = pneg %p150
        %s238 = sand.u32 %s140, 1
        %s239 = scalar_lea.sflag [#allocation6], %s238
        %s240 = sand.u32 %s140, 1
        %s241 = smul.addr %s240, 16
        %s242 = scalar_lea.vmem [#allocation7], %s241
        %v243 = vld [vmem:[%s215] sm:$0xff]
        %v244 = vld [vmem:[%s1] sm:$0xf]
        %v245 = vld [vmem:[%s2] sm:$0x1]
        %v247 = vperm.slane %v245, 0
        %250 = vst [vmem:[#allocation1] ss:$2 sm:$0xff] %v243
        %v251 = vld.sshfl [vmem:[#allocation1] sm:$0xff pattern:$0x75316420]
        %v252 = vld.sshfl [vmem:[#allocation1 + $0x8] sm:$0xff pattern:$0x75316420]
        %255 = vxpose.xlu0.b32.start [1/16] %v251, 128
        %256 = vxpose.xlu0.b32.cont [2/16] 0.0, 128
        %257 = vxpose.xlu0.b32.cont [3/16] 0.0, 128
        %258 = vxpose.xlu0.b32.cont [4/16] 0.0, 128
        %259 = vxpose.xlu0.b32.cont [5/16] 0.0, 128
        %260 = vxpose.xlu0.b32.cont [6/16] 0.0, 128
        %261 = vxpose.xlu0.b32.cont [7/16] 0.0, 128
        %262 = vxpose.xlu0.b32.cont [8/16] 0.0, 128
        %263 = vxpose.xlu0.b32.cont [9/16] 0.0, 128
        %264 = vxpose.xlu0.b32.cont [10/16] 0.0, 128
        %265 = vxpose.xlu0.b32.cont [11/16] 0.0, 128
        %266 = vxpose.xlu0.b32.cont [12/16] 0.0, 128
        %267 = vxpose.xlu0.b32.cont [13/16] 0.0, 128
        %268 = vxpose.xlu0.b32.cont [14/16] 0.0, 128
        %269 = vxpose.xlu0.b32.cont [15/16] 0.0, 128
        %270 = vxpose.xlu0.b32.end [16/16] 0.0, 128
        %v271 = vpop.trf.xlu0
        %v272 = vpop.trf.xlu0
        %v273 = vpop.trf.xlu0
        %v274 = vpop.trf.xlu0
        %v275 = vpop.trf.xlu0
        %v276 = vpop.trf.xlu0
        %v277 = vpop.trf.xlu0
        %v278 = vpop.trf.xlu0
        %v279 = vpop.trf.xlu0
        %v280 = vpop.trf.xlu0
        %v281 = vpop.trf.xlu0
        %v282 = vpop.trf.xlu0
        %v283 = vpop.trf.xlu0
        %v284 = vpop.trf.xlu0
        %v285 = vpop.trf.xlu0
        %v286 = vpop.trf.xlu0
        %287 = vxpose.xlu0.b32.start [1/16] %v252, 128
        %288 = vxpose.xlu0.b32.cont [2/16] 0.0, 128
        %289 = vxpose.xlu0.b32.cont [3/16] 0.0, 128
        %290 = vxpose.xlu0.b32.cont [4/16] 0.0, 128
        %291 = vxpose.xlu0.b32.cont [5/16] 0.0, 128
        %292 = vxpose.xlu0.b32.cont [6/16] 0.0, 128
        %293 = vxpose.xlu0.b32.cont [7/16] 0.0, 128
        %294 = vxpose.xlu0.b32.cont [8/16] 0.0, 128
        %295 = vxpose.xlu0.b32.cont [9/16] 0.0, 128
        %296 = vxpose.xlu0.b32.cont [10/16] 0.0, 128
        %297 = vxpose.xlu0.b32.cont [11/16] 0.0, 128
        %298 = vxpose.xlu0.b32.cont [12/16] 0.0, 128
        %299 = vxpose.xlu0.b32.cont [13/16] 0.0, 128
        %300 = vxpose.xlu0.b32.cont [14/16] 0.0, 128
        %301 = vxpose.xlu0.b32.cont [15/16] 0.0, 128
        %302 = vxpose.xlu0.b32.end [16/16] 0.0, 128
        %v303 = vpop.trf.xlu0
        %v304 = vpop.trf.xlu0
        %v305 = vpop.trf.xlu0
        %v306 = vpop.trf.xlu0
        %v307 = vpop.trf.xlu0
        %v308 = vpop.trf.xlu0
        %v309 = vpop.trf.xlu0
        %v310 = vpop.trf.xlu0
        %v311 = vpop.trf.xlu0
        %v312 = vpop.trf.xlu0
        %v313 = vpop.trf.xlu0
        %v314 = vpop.trf.xlu0
        %v315 = vpop.trf.xlu0
        %v316 = vpop.trf.xlu0
        %v317 = vpop.trf.xlu0
        %v318 = vpop.trf.xlu0
        %vm319 = vcmask 31744
        %v321 = vsel %vm319, %v271, 0
        %v324 = vsel %vm319, %v272, 0
        %v327 = vsel %vm319, %v273, 0
        %v330 = vsel %vm319, %v274, 0
        %v333 = vsel %vm319, %v275, 0
        %v336 = vsel %vm319, %v276, 0
        %v339 = vsel %vm319, %v277, 0
        %v342 = vsel %vm319, %v278, 0
        %v345 = vsel %vm319, %v279, 0
        %v348 = vsel %vm319, %v280, 0
        %v351 = vsel %vm319, %v281, 0
        %v354 = vsel %vm319, %v282, 0
        %v357 = vsel %vm319, %v283, 0
        %v360 = vsel %vm319, %v284, 0
        %v363 = vsel %vm319, %v285, 0
        %v366 = vsel %vm319, %v286, 0
        %v369 = vsel %vm319, %v303, 0
        %v372 = vsel %vm319, %v304, 0
        %v375 = vsel %vm319, %v305, 0
        %v378 = vsel %vm319, %v306, 0
        %v381 = vsel %vm319, %v307, 0
        %v384 = vsel %vm319, %v308, 0
        %v387 = vsel %vm319, %v309, 0
        %v390 = vsel %vm319, %v310, 0
        %v393 = vsel %vm319, %v311, 0
        %v396 = vsel %vm319, %v312, 0
        %v399 = vsel %vm319, %v313, 0
        %v402 = vsel %vm319, %v314, 0
        %v405 = vsel %vm319, %v315, 0
        %v408 = vsel %vm319, %v316, 0
        %v411 = vsel %vm319, %v317, 0
        %v414 = vsel %vm319, %v318, 0
        %vm416 = vcmask 1043456
        %v418 = vsel %vm416, %v244, 0
        %420 = vmatpush.msra.mxu0 0.0
        %421 = vmatpush.msra.mxu0 0.0
        %422 = vmatpush.msra.mxu0 0.0
        %423 = vmatpush.msra.mxu0 0.0
        %424 = vmatpush.msra.mxu0 0.0
        %425 = vmatpush.msra.mxu0 0.0
        %426 = vmatpush.msra.mxu0 0.0
        %427 = vmatpush.msra.mxu0 0.0
        %428 = vmatpush.msra.mxu0 0.0
        %429 = vmatpush.msra.mxu0 0.0
        %430 = vmatpush.msra.mxu0 0.0
        %431 = vmatpush.msra.mxu0 0.0
        %432 = vmatpush.msra.mxu0 0.0
        %433 = vmatpush.msra.mxu0 0.0
        %434 = vmatpush.msra.mxu0 0.0
        %435 = vmatpush.msra.mxu0 %v418
        %436 = vmatmul.f32.gmra.mxu0 %v321
        %v437 = vpop.f32.mrf.mxu0
        %v438 = vadd.f32 %v247, %v437
        %439 = vmatmul.f32.gmra.mxu0 %v324
        %v440 = vpop.f32.mrf.mxu0
        %v441 = vadd.f32 %v247, %v440
        %442 = vmatmul.f32.gmra.mxu0 %v327
        %v443 = vpop.f32.mrf.mxu0
        %v444 = vadd.f32 %v247, %v443
        %445 = vmatmul.f32.gmra.mxu0 %v330
        %v446 = vpop.f32.mrf.mxu0
        %v447 = vadd.f32 %v247, %v446
        %448 = vmatmul.f32.gmra.mxu0 %v333
        %v449 = vpop.f32.mrf.mxu0
        %v450 = vadd.f32 %v247, %v449
        %451 = vmatmul.f32.gmra.mxu0 %v336
        %v452 = vpop.f32.mrf.mxu0
        %v453 = vadd.f32 %v247, %v452
        %454 = vmatmul.f32.gmra.mxu0 %v339
        %v455 = vpop.f32.mrf.mxu0
        %v456 = vadd.f32 %v247, %v455
        %457 = vmatmul.f32.gmra.mxu0 %v342
        %v458 = vpop.f32.mrf.mxu0
        %v459 = vadd.f32 %v247, %v458
        %460 = vmatmul.f32.gmra.mxu0 %v345
        %v461 = vpop.f32.mrf.mxu0
        %v462 = vadd.f32 %v247, %v461
        %463 = vmatmul.f32.gmra.mxu0 %v348
        %v464 = vpop.f32.mrf.mxu0
        %v465 = vadd.f32 %v247, %v464
        %466 = vmatmul.f32.gmra.mxu0 %v351
        %v467 = vpop.f32.mrf.mxu0
        %v468 = vadd.f32 %v247, %v467
        %469 = vmatmul.f32.gmra.mxu0 %v354
        %v470 = vpop.f32.mrf.mxu0
        %v471 = vadd.f32 %v247, %v470
        %472 = vmatmul.f32.gmra.mxu0 %v357
        %v473 = vpop.f32.mrf.mxu0
        %v474 = vadd.f32 %v247, %v473
        %475 = vmatmul.f32.gmra.mxu0 %v360
        %v476 = vpop.f32.mrf.mxu0
        %v477 = vadd.f32 %v247, %v476
        %478 = vmatmul.f32.gmra.mxu0 %v363
        %v479 = vpop.f32.mrf.mxu0
        %v480 = vadd.f32 %v247, %v479
        %481 = vmatmul.f32.gmra.mxu0 %v366
        %v482 = vpop.f32.mrf.mxu0
        %v483 = vadd.f32 %v247, %v482
        %484 = vmatmul.f32.gmra.mxu0 %v369
        %v485 = vpop.f32.mrf.mxu0
        %v486 = vadd.f32 %v247, %v485
        %487 = vmatmul.f32.gmra.mxu0 %v372
        %v488 = vpop.f32.mrf.mxu0
        %v489 = vadd.f32 %v247, %v488
        %490 = vmatmul.f32.gmra.mxu0 %v375
        %v491 = vpop.f32.mrf.mxu0
        %v492 = vadd.f32 %v247, %v491
        %493 = vmatmul.f32.gmra.mxu0 %v378
        %v494 = vpop.f32.mrf.mxu0
        %v495 = vadd.f32 %v247, %v494
        %496 = vmatmul.f32.gmra.mxu0 %v381
        %v497 = vpop.f32.mrf.mxu0
        %v498 = vadd.f32 %v247, %v497
        %499 = vmatmul.f32.gmra.mxu0 %v384
        %v500 = vpop.f32.mrf.mxu0
        %v501 = vadd.f32 %v247, %v500
        %502 = vmatmul.f32.gmra.mxu0 %v387
        %v503 = vpop.f32.mrf.mxu0
        %v504 = vadd.f32 %v247, %v503
        %505 = vmatmul.f32.gmra.mxu0 %v390
        %v506 = vpop.f32.mrf.mxu0
        %v507 = vadd.f32 %v247, %v506
        %508 = vmatmul.f32.gmra.mxu0 %v393
        %v509 = vpop.f32.mrf.mxu0
        %v510 = vadd.f32 %v247, %v509
        %511 = vmatmul.f32.gmra.mxu0 %v396
        %v512 = vpop.f32.mrf.mxu0
        %v513 = vadd.f32 %v247, %v512
        %514 = vmatmul.f32.gmra.mxu0 %v399
        %v515 = vpop.f32.mrf.mxu0
        %v516 = vadd.f32 %v247, %v515
        %517 = vmatmul.f32.gmra.mxu0 %v402
        %v518 = vpop.f32.mrf.mxu0
        %v519 = vadd.f32 %v247, %v518
        %520 = vmatmul.f32.gmra.mxu0 %v405
        %v521 = vpop.f32.mrf.mxu0
        %v522 = vadd.f32 %v247, %v521
        %523 = vmatmul.f32.gmra.mxu0 %v408
        %v524 = vpop.f32.mrf.mxu0
        %v525 = vadd.f32 %v247, %v524
        %526 = vmatmul.f32.gmra.mxu0 %v411
        %v527 = vpop.f32.mrf.mxu0
        %v528 = vadd.f32 %v247, %v527
        %529 = vmatmul.f32.gmra.mxu0 %v414
        %v530 = vpop.f32.mrf.mxu0
        %v531 = vadd.f32 %v247, %v530
        %532 = vdwg.mxu0
        %v533 = vxor.u32 %v438, 2147483648
        %v534 = vxor.u32 %v441, 2147483648
        %v535 = vxor.u32 %v444, 2147483648
        %v536 = vxor.u32 %v447, 2147483648
        %v537 = vxor.u32 %v450, 2147483648
        %v538 = vxor.u32 %v453, 2147483648
        %v539 = vxor.u32 %v456, 2147483648
        %v540 = vxor.u32 %v459, 2147483648
        %v541 = vxor.u32 %v462, 2147483648
        %v542 = vxor.u32 %v465, 2147483648
        %v543 = vxor.u32 %v468, 2147483648
        %v544 = vxor.u32 %v471, 2147483648
        %v545 = vxor.u32 %v474, 2147483648
        %v546 = vxor.u32 %v477, 2147483648
        %v547 = vxor.u32 %v480, 2147483648
        %v548 = vxor.u32 %v483, 2147483648
        %v549 = vxor.u32 %v486, 2147483648
        %v550 = vxor.u32 %v489, 2147483648
        %v551 = vxor.u32 %v492, 2147483648
        %v552 = vxor.u32 %v495, 2147483648
        %v553 = vxor.u32 %v498, 2147483648
        %v554 = vxor.u32 %v501, 2147483648
        %v555 = vxor.u32 %v504, 2147483648
        %v556 = vxor.u32 %v507, 2147483648
        %v557 = vxor.u32 %v510, 2147483648
        %v558 = vxor.u32 %v513, 2147483648
        %v559 = vxor.u32 %v516, 2147483648
        %v560 = vxor.u32 %v519, 2147483648
        %v561 = vxor.u32 %v522, 2147483648
        %v562 = vxor.u32 %v525, 2147483648
        %v563 = vxor.u32 %v528, 2147483648
        %v564 = vxor.u32 %v531, 2147483648
        %v565 = vmul.f32 %v533, 1.442695
        %v566 = vpow.pop %v565
        %v567 = vmul.f32 %v534, 1.442695
        %v568 = vpow.pop %v567
        %v569 = vmul.f32 %v535, 1.442695
        %v570 = vpow.pop %v569
        %v571 = vmul.f32 %v536, 1.442695
        %v572 = vpow.pop %v571
        %v573 = vmul.f32 %v537, 1.442695
        %v574 = vpow.pop %v573
        %v575 = vmul.f32 %v538, 1.442695
        %v576 = vpow.pop %v575
        %v577 = vmul.f32 %v539, 1.442695
        %v578 = vpow.pop %v577
        %v579 = vmul.f32 %v540, 1.442695
        %v580 = vpow.pop %v579
        %v581 = vmul.f32 %v541, 1.442695
        %v582 = vpow.pop %v581
        %v583 = vmul.f32 %v542, 1.442695
        %v584 = vpow.pop %v583
        %v585 = vmul.f32 %v543, 1.442695
        %v586 = vpow.pop %v585
        %v587 = vmul.f32 %v544, 1.442695
        %v588 = vpow.pop %v587
        %v589 = vmul.f32 %v545, 1.442695
        %v590 = vpow.pop %v589
        %v591 = vmul.f32 %v546, 1.442695
        %v592 = vpow.pop %v591
        %v593 = vmul.f32 %v547, 1.442695
        %v594 = vpow.pop %v593
        %v595 = vmul.f32 %v548, 1.442695
        %v596 = vpow.pop %v595
        %v597 = vmul.f32 %v549, 1.442695
        %v598 = vpow.pop %v597
        %v599 = vmul.f32 %v550, 1.442695
        %v600 = vpow.pop %v599
        %v601 = vmul.f32 %v551, 1.442695
        %v602 = vpow.pop %v601
        %v603 = vmul.f32 %v552, 1.442695
        %v604 = vpow.pop %v603
        %v605 = vmul.f32 %v553, 1.442695
        %v606 = vpow.pop %v605
        %v607 = vmul.f32 %v554, 1.442695
        %v608 = vpow.pop %v607
        %v609 = vmul.f32 %v555, 1.442695
        %v610 = vpow.pop %v609
        %v611 = vmul.f32 %v556, 1.442695
        %v612 = vpow.pop %v611
        %v613 = vmul.f32 %v557, 1.442695
        %v614 = vpow.pop %v613
        %v615 = vmul.f32 %v558, 1.442695
        %v616 = vpow.pop %v615
        %v617 = vmul.f32 %v559, 1.442695
        %v618 = vpow.pop %v617
        %v619 = vmul.f32 %v560, 1.442695
        %v620 = vpow.pop %v619
        %v621 = vmul.f32 %v561, 1.442695
        %v622 = vpow.pop %v621
        %v623 = vmul.f32 %v562, 1.442695
        %v624 = vpow.pop %v623
        %v625 = vmul.f32 %v563, 1.442695
        %v626 = vpow.pop %v625
        %v627 = vmul.f32 %v564, 1.442695
        %v628 = vpow.pop %v627
        %v629 = vadd.f32 %v566, 1.0
        %v630 = vadd.f32 %v568, 1.0
        %v631 = vadd.f32 %v570, 1.0
        %v632 = vadd.f32 %v572, 1.0
        %v633 = vadd.f32 %v574, 1.0
        %v634 = vadd.f32 %v576, 1.0
        %v635 = vadd.f32 %v578, 1.0
        %v636 = vadd.f32 %v580, 1.0
        %v637 = vadd.f32 %v582, 1.0
        %v638 = vadd.f32 %v584, 1.0
        %v639 = vadd.f32 %v586, 1.0
        %v640 = vadd.f32 %v588, 1.0
        %v641 = vadd.f32 %v590, 1.0
        %v642 = vadd.f32 %v592, 1.0
        %v643 = vadd.f32 %v594, 1.0
        %v644 = vadd.f32 %v596, 1.0
        %v645 = vadd.f32 %v598, 1.0
        %v646 = vadd.f32 %v600, 1.0
        %v647 = vadd.f32 %v602, 1.0
        %v648 = vadd.f32 %v604, 1.0
        %v649 = vadd.f32 %v606, 1.0
        %v650 = vadd.f32 %v608, 1.0
        %v651 = vadd.f32 %v610, 1.0
        %v652 = vadd.f32 %v612, 1.0
        %v653 = vadd.f32 %v614, 1.0
        %v654 = vadd.f32 %v616, 1.0
        %v655 = vadd.f32 %v618, 1.0
        %v656 = vadd.f32 %v620, 1.0
        %v657 = vadd.f32 %v622, 1.0
        %v658 = vadd.f32 %v624, 1.0
        %v659 = vadd.f32 %v626, 1.0
        %v660 = vadd.f32 %v628, 1.0
        %v661 = vrcp.pop %v629
        %v662 = vmul.f32 %v629, %v661
        %v663 = vsub.f32 1.0, %v662
        %v664 = vmul.f32 %v661, %v663
        %v665 = vadd.f32 %v661, %v664
        %vm666 = vweird.f32 %v629
        %vm667 = vweird.f32 %v661
        %vm668 = vmor %vm666, %vm667
        %v669 = vsel %vm668, %v661, %v665
        %v670 = vand.u32 2147483647, %v629
        %vm671 = vcmp.eq.f32.partialorder %v670, 8.507059e+37
        %v672 = vand.u32 %v629, 2147483648
        %v673 = vor.u32 1.1754944e-38, %v672
        %v674 = vsel %vm671, %v673, %v669
        %v675 = vmul.f32 1.0, %v674
        %v676 = vrcp.pop %v630
        %v677 = vmul.f32 %v630, %v676
        %v678 = vsub.f32 1.0, %v677
        %v679 = vmul.f32 %v676, %v678
        %v680 = vadd.f32 %v676, %v679
        %vm681 = vweird.f32 %v630
        %vm682 = vweird.f32 %v676
        %vm683 = vmor %vm681, %vm682
        %v684 = vsel %vm683, %v676, %v680
        %v685 = vand.u32 2147483647, %v630
        %vm686 = vcmp.eq.f32.partialorder %v685, 8.507059e+37
        %v687 = vand.u32 %v630, 2147483648
        %v688 = vor.u32 1.1754944e-38, %v687
        %v689 = vsel %vm686, %v688, %v684
        %v690 = vmul.f32 1.0, %v689
        %v691 = vrcp.pop %v631
        %v692 = vmul.f32 %v631, %v691
        %v693 = vsub.f32 1.0, %v692
        %v694 = vmul.f32 %v691, %v693
        %v695 = vadd.f32 %v691, %v694
        %vm696 = vweird.f32 %v631
        %vm697 = vweird.f32 %v691
        %vm698 = vmor %vm696, %vm697
        %v699 = vsel %vm698, %v691, %v695
        %v700 = vand.u32 2147483647, %v631
        %vm701 = vcmp.eq.f32.partialorder %v700, 8.507059e+37
        %v702 = vand.u32 %v631, 2147483648
        %v703 = vor.u32 1.1754944e-38, %v702
        %v704 = vsel %vm701, %v703, %v699
        %v705 = vmul.f32 1.0, %v704
        %v706 = vrcp.pop %v632
        %v707 = vmul.f32 %v632, %v706
        %v708 = vsub.f32 1.0, %v707
        %v709 = vmul.f32 %v706, %v708
        %v710 = vadd.f32 %v706, %v709
        %vm711 = vweird.f32 %v632
        %vm712 = vweird.f32 %v706
        %vm713 = vmor %vm711, %vm712
        %v714 = vsel %vm713, %v706, %v710
        %v715 = vand.u32 2147483647, %v632
        %vm716 = vcmp.eq.f32.partialorder %v715, 8.507059e+37
        %v717 = vand.u32 %v632, 2147483648
        %v718 = vor.u32 1.1754944e-38, %v717
        %v719 = vsel %vm716, %v718, %v714
        %v720 = vmul.f32 1.0, %v719
        %v721 = vrcp.pop %v633
        %v722 = vmul.f32 %v633, %v721
        %v723 = vsub.f32 1.0, %v722
        %v724 = vmul.f32 %v721, %v723
        %v725 = vadd.f32 %v721, %v724
        %vm726 = vweird.f32 %v633
        %vm727 = vweird.f32 %v721
        %vm728 = vmor %vm726, %vm727
        %v729 = vsel %vm728, %v721, %v725
        %v730 = vand.u32 2147483647, %v633
        %vm731 = vcmp.eq.f32.partialorder %v730, 8.507059e+37
        %v732 = vand.u32 %v633, 2147483648
        %v733 = vor.u32 1.1754944e-38, %v732
        %v734 = vsel %vm731, %v733, %v729
        %v735 = vmul.f32 1.0, %v734
        %v736 = vrcp.pop %v634
        %v737 = vmul.f32 %v634, %v736
        %v738 = vsub.f32 1.0, %v737
        %v739 = vmul.f32 %v736, %v738
        %v740 = vadd.f32 %v736, %v739
        %vm741 = vweird.f32 %v634
        %vm742 = vweird.f32 %v736
        %vm743 = vmor %vm741, %vm742
        %v744 = vsel %vm743, %v736, %v740
        %v745 = vand.u32 2147483647, %v634
        %vm746 = vcmp.eq.f32.partialorder %v745, 8.507059e+37
        %v747 = vand.u32 %v634, 2147483648
        %v748 = vor.u32 1.1754944e-38, %v747
        %v749 = vsel %vm746, %v748, %v744
        %v750 = vmul.f32 1.0, %v749
        %v751 = vrcp.pop %v635
        %v752 = vmul.f32 %v635, %v751
        %v753 = vsub.f32 1.0, %v752
        %v754 = vmul.f32 %v751, %v753
        %v755 = vadd.f32 %v751, %v754
        %vm756 = vweird.f32 %v635
        %vm757 = vweird.f32 %v751
        %vm758 = vmor %vm756, %vm757
        %v759 = vsel %vm758, %v751, %v755
        %v760 = vand.u32 2147483647, %v635
        %vm761 = vcmp.eq.f32.partialorder %v760, 8.507059e+37
        %v762 = vand.u32 %v635, 2147483648
        %v763 = vor.u32 1.1754944e-38, %v762
        %v764 = vsel %vm761, %v763, %v759
        %v765 = vmul.f32 1.0, %v764
        %v766 = vrcp.pop %v636
        %v767 = vmul.f32 %v636, %v766
        %v768 = vsub.f32 1.0, %v767
        %v769 = vmul.f32 %v766, %v768
        %v770 = vadd.f32 %v766, %v769
        %vm771 = vweird.f32 %v636
        %vm772 = vweird.f32 %v766
        %vm773 = vmor %vm771, %vm772
        %v774 = vsel %vm773, %v766, %v770
        %v775 = vand.u32 2147483647, %v636
        %vm776 = vcmp.eq.f32.partialorder %v775, 8.507059e+37
        %v777 = vand.u32 %v636, 2147483648
        %v778 = vor.u32 1.1754944e-38, %v777
        %v779 = vsel %vm776, %v778, %v774
        %v780 = vmul.f32 1.0, %v779
        %v781 = vrcp.pop %v637
        %v782 = vmul.f32 %v637, %v781
        %v783 = vsub.f32 1.0, %v782
        %v784 = vmul.f32 %v781, %v783
        %v785 = vadd.f32 %v781, %v784
        %vm786 = vweird.f32 %v637
        %vm787 = vweird.f32 %v781
        %vm788 = vmor %vm786, %vm787
        %v789 = vsel %vm788, %v781, %v785
        %v790 = vand.u32 2147483647, %v637
        %vm791 = vcmp.eq.f32.partialorder %v790, 8.507059e+37
        %v792 = vand.u32 %v637, 2147483648
        %v793 = vor.u32 1.1754944e-38, %v792
        %v794 = vsel %vm791, %v793, %v789
        %v795 = vmul.f32 1.0, %v794
        %v796 = vrcp.pop %v638
        %v797 = vmul.f32 %v638, %v796
        %v798 = vsub.f32 1.0, %v797
        %v799 = vmul.f32 %v796, %v798
        %v800 = vadd.f32 %v796, %v799
        %vm801 = vweird.f32 %v638
        %vm802 = vweird.f32 %v796
        %vm803 = vmor %vm801, %vm802
        %v804 = vsel %vm803, %v796, %v800
        %v805 = vand.u32 2147483647, %v638
        %vm806 = vcmp.eq.f32.partialorder %v805, 8.507059e+37
        %v807 = vand.u32 %v638, 2147483648
        %v808 = vor.u32 1.1754944e-38, %v807
        %v809 = vsel %vm806, %v808, %v804
        %v810 = vmul.f32 1.0, %v809
        %v811 = vrcp.pop %v639
        %v812 = vmul.f32 %v639, %v811
        %v813 = vsub.f32 1.0, %v812
        %v814 = vmul.f32 %v811, %v813
        %v815 = vadd.f32 %v811, %v814
        %vm816 = vweird.f32 %v639
        %vm817 = vweird.f32 %v811
        %vm818 = vmor %vm816, %vm817
        %v819 = vsel %vm818, %v811, %v815
        %v820 = vand.u32 2147483647, %v639
        %vm821 = vcmp.eq.f32.partialorder %v820, 8.507059e+37
        %v822 = vand.u32 %v639, 2147483648
        %v823 = vor.u32 1.1754944e-38, %v822
        %v824 = vsel %vm821, %v823, %v819
        %v825 = vmul.f32 1.0, %v824
        %v826 = vrcp.pop %v640
        %v827 = vmul.f32 %v640, %v826
        %v828 = vsub.f32 1.0, %v827
        %v829 = vmul.f32 %v826, %v828
        %v830 = vadd.f32 %v826, %v829
        %vm831 = vweird.f32 %v640
        %vm832 = vweird.f32 %v826
        %vm833 = vmor %vm831, %vm832
        %v834 = vsel %vm833, %v826, %v830
        %v835 = vand.u32 2147483647, %v640
        %vm836 = vcmp.eq.f32.partialorder %v835, 8.507059e+37
        %v837 = vand.u32 %v640, 2147483648
        %v838 = vor.u32 1.1754944e-38, %v837
        %v839 = vsel %vm836, %v838, %v834
        %v840 = vmul.f32 1.0, %v839
        %v841 = vrcp.pop %v641
        %v842 = vmul.f32 %v641, %v841
        %v843 = vsub.f32 1.0, %v842
        %v844 = vmul.f32 %v841, %v843
        %v845 = vadd.f32 %v841, %v844
        %vm846 = vweird.f32 %v641
        %vm847 = vweird.f32 %v841
        %vm848 = vmor %vm846, %vm847
        %v849 = vsel %vm848, %v841, %v845
        %v850 = vand.u32 2147483647, %v641
        %vm851 = vcmp.eq.f32.partialorder %v850, 8.507059e+37
        %v852 = vand.u32 %v641, 2147483648
        %v853 = vor.u32 1.1754944e-38, %v852
        %v854 = vsel %vm851, %v853, %v849
        %v855 = vmul.f32 1.0, %v854
        %v856 = vrcp.pop %v642
        %v857 = vmul.f32 %v642, %v856
        %v858 = vsub.f32 1.0, %v857
        %v859 = vmul.f32 %v856, %v858
        %v860 = vadd.f32 %v856, %v859
        %vm861 = vweird.f32 %v642
        %vm862 = vweird.f32 %v856
        %vm863 = vmor %vm861, %vm862
        %v864 = vsel %vm863, %v856, %v860
        %v865 = vand.u32 2147483647, %v642
        %vm866 = vcmp.eq.f32.partialorder %v865, 8.507059e+37
        %v867 = vand.u32 %v642, 2147483648
        %v868 = vor.u32 1.1754944e-38, %v867
        %v869 = vsel %vm866, %v868, %v864
        %v870 = vmul.f32 1.0, %v869
        %v871 = vrcp.pop %v643
        %v872 = vmul.f32 %v643, %v871
        %v873 = vsub.f32 1.0, %v872
        %v874 = vmul.f32 %v871, %v873
        %v875 = vadd.f32 %v871, %v874
        %vm876 = vweird.f32 %v643
        %vm877 = vweird.f32 %v871
        %vm878 = vmor %vm876, %vm877
        %v879 = vsel %vm878, %v871, %v875
        %v880 = vand.u32 2147483647, %v643
        %vm881 = vcmp.eq.f32.partialorder %v880, 8.507059e+37
        %v882 = vand.u32 %v643, 2147483648
        %v883 = vor.u32 1.1754944e-38, %v882
        %v884 = vsel %vm881, %v883, %v879
        %v885 = vmul.f32 1.0, %v884
        %v886 = vrcp.pop %v644
        %v887 = vmul.f32 %v644, %v886
        %v888 = vsub.f32 1.0, %v887
        %v889 = vmul.f32 %v886, %v888
        %v890 = vadd.f32 %v886, %v889
        %vm891 = vweird.f32 %v644
        %vm892 = vweird.f32 %v886
        %vm893 = vmor %vm891, %vm892
        %v894 = vsel %vm893, %v886, %v890
        %v895 = vand.u32 2147483647, %v644
        %vm896 = vcmp.eq.f32.partialorder %v895, 8.507059e+37
        %v897 = vand.u32 %v644, 2147483648
        %v898 = vor.u32 1.1754944e-38, %v897
        %v899 = vsel %vm896, %v898, %v894
        %v900 = vmul.f32 1.0, %v899
        %v901 = vrcp.pop %v645
        %v902 = vmul.f32 %v645, %v901
        %v903 = vsub.f32 1.0, %v902
        %v904 = vmul.f32 %v901, %v903
        %v905 = vadd.f32 %v901, %v904
        %vm906 = vweird.f32 %v645
        %vm907 = vweird.f32 %v901
        %vm908 = vmor %vm906, %vm907
        %v909 = vsel %vm908, %v901, %v905
        %v910 = vand.u32 2147483647, %v645
        %vm911 = vcmp.eq.f32.partialorder %v910, 8.507059e+37
        %v912 = vand.u32 %v645, 2147483648
        %v913 = vor.u32 1.1754944e-38, %v912
        %v914 = vsel %vm911, %v913, %v909
        %v915 = vmul.f32 1.0, %v914
        %v916 = vrcp.pop %v646
        %v917 = vmul.f32 %v646, %v916
        %v918 = vsub.f32 1.0, %v917
        %v919 = vmul.f32 %v916, %v918
        %v920 = vadd.f32 %v916, %v919
        %vm921 = vweird.f32 %v646
        %vm922 = vweird.f32 %v916
        %vm923 = vmor %vm921, %vm922
        %v924 = vsel %vm923, %v916, %v920
        %v925 = vand.u32 2147483647, %v646
        %vm926 = vcmp.eq.f32.partialorder %v925, 8.507059e+37
        %v927 = vand.u32 %v646, 2147483648
        %v928 = vor.u32 1.1754944e-38, %v927
        %v929 = vsel %vm926, %v928, %v924
        %v930 = vmul.f32 1.0, %v929
        %v931 = vrcp.pop %v647
        %v932 = vmul.f32 %v647, %v931
        %v933 = vsub.f32 1.0, %v932
        %v934 = vmul.f32 %v931, %v933
        %v935 = vadd.f32 %v931, %v934
        %vm936 = vweird.f32 %v647
        %vm937 = vweird.f32 %v931
        %vm938 = vmor %vm936, %vm937
        %v939 = vsel %vm938, %v931, %v935
        %v940 = vand.u32 2147483647, %v647
        %vm941 = vcmp.eq.f32.partialorder %v940, 8.507059e+37
        %v942 = vand.u32 %v647, 2147483648
        %v943 = vor.u32 1.1754944e-38, %v942
        %v944 = vsel %vm941, %v943, %v939
        %v945 = vmul.f32 1.0, %v944
        %v946 = vrcp.pop %v648
        %v947 = vmul.f32 %v648, %v946
        %v948 = vsub.f32 1.0, %v947
        %v949 = vmul.f32 %v946, %v948
        %v950 = vadd.f32 %v946, %v949
        %vm951 = vweird.f32 %v648
        %vm952 = vweird.f32 %v946
        %vm953 = vmor %vm951, %vm952
        %v954 = vsel %vm953, %v946, %v950
        %v955 = vand.u32 2147483647, %v648
        %vm956 = vcmp.eq.f32.partialorder %v955, 8.507059e+37
        %v957 = vand.u32 %v648, 2147483648
        %v958 = vor.u32 1.1754944e-38, %v957
        %v959 = vsel %vm956, %v958, %v954
        %v960 = vmul.f32 1.0, %v959
        %v961 = vrcp.pop %v649
        %v962 = vmul.f32 %v649, %v961
        %v963 = vsub.f32 1.0, %v962
        %v964 = vmul.f32 %v961, %v963
        %v965 = vadd.f32 %v961, %v964
        %vm966 = vweird.f32 %v649
        %vm967 = vweird.f32 %v961
        %vm968 = vmor %vm966, %vm967
        %v969 = vsel %vm968, %v961, %v965
        %v970 = vand.u32 2147483647, %v649
        %vm971 = vcmp.eq.f32.partialorder %v970, 8.507059e+37
        %v972 = vand.u32 %v649, 2147483648
        %v973 = vor.u32 1.1754944e-38, %v972
        %v974 = vsel %vm971, %v973, %v969
        %v975 = vmul.f32 1.0, %v974
        %v976 = vrcp.pop %v650
        %v977 = vmul.f32 %v650, %v976
        %v978 = vsub.f32 1.0, %v977
        %v979 = vmul.f32 %v976, %v978
        %v980 = vadd.f32 %v976, %v979
        %vm981 = vweird.f32 %v650
        %vm982 = vweird.f32 %v976
        %vm983 = vmor %vm981, %vm982
        %v984 = vsel %vm983, %v976, %v980
        %v985 = vand.u32 2147483647, %v650
        %vm986 = vcmp.eq.f32.partialorder %v985, 8.507059e+37
        %v987 = vand.u32 %v650, 2147483648
        %v988 = vor.u32 1.1754944e-38, %v987
        %v989 = vsel %vm986, %v988, %v984
        %v990 = vmul.f32 1.0, %v989
        %v991 = vrcp.pop %v651
        %v992 = vmul.f32 %v651, %v991
        %v993 = vsub.f32 1.0, %v992
        %v994 = vmul.f32 %v991, %v993
        %v995 = vadd.f32 %v991, %v994
        %vm996 = vweird.f32 %v651
        %vm997 = vweird.f32 %v991
        %vm998 = vmor %vm996, %vm997
        %v999 = vsel %vm998, %v991, %v995
        %v1000 = vand.u32 2147483647, %v651
        %vm1001 = vcmp.eq.f32.partialorder %v1000, 8.507059e+37
        %v1002 = vand.u32 %v651, 2147483648
        %v1003 = vor.u32 1.1754944e-38, %v1002
        %v1004 = vsel %vm1001, %v1003, %v999
        %v1005 = vmul.f32 1.0, %v1004
        %v1006 = vrcp.pop %v652
        %v1007 = vmul.f32 %v652, %v1006
        %v1008 = vsub.f32 1.0, %v1007
        %v1009 = vmul.f32 %v1006, %v1008
        %v1010 = vadd.f32 %v1006, %v1009
        %vm1011 = vweird.f32 %v652
        %vm1012 = vweird.f32 %v1006
        %vm1013 = vmor %vm1011, %vm1012
        %v1014 = vsel %vm1013, %v1006, %v1010
        %v1015 = vand.u32 2147483647, %v652
        %vm1016 = vcmp.eq.f32.partialorder %v1015, 8.507059e+37
        %v1017 = vand.u32 %v652, 2147483648
        %v1018 = vor.u32 1.1754944e-38, %v1017
        %v1019 = vsel %vm1016, %v1018, %v1014
        %v1020 = vmul.f32 1.0, %v1019
        %v1021 = vrcp.pop %v653
        %v1022 = vmul.f32 %v653, %v1021
        %v1023 = vsub.f32 1.0, %v1022
        %v1024 = vmul.f32 %v1021, %v1023
        %v1025 = vadd.f32 %v1021, %v1024
        %vm1026 = vweird.f32 %v653
        %vm1027 = vweird.f32 %v1021
        %vm1028 = vmor %vm1026, %vm1027
        %v1029 = vsel %vm1028, %v1021, %v1025
        %v1030 = vand.u32 2147483647, %v653
        %vm1031 = vcmp.eq.f32.partialorder %v1030, 8.507059e+37
        %v1032 = vand.u32 %v653, 2147483648
        %v1033 = vor.u32 1.1754944e-38, %v1032
        %v1034 = vsel %vm1031, %v1033, %v1029
        %v1035 = vmul.f32 1.0, %v1034
        %v1036 = vrcp.pop %v654
        %v1037 = vmul.f32 %v654, %v1036
        %v1038 = vsub.f32 1.0, %v1037
        %v1039 = vmul.f32 %v1036, %v1038
        %v1040 = vadd.f32 %v1036, %v1039
        %vm1041 = vweird.f32 %v654
        %vm1042 = vweird.f32 %v1036
        %vm1043 = vmor %vm1041, %vm1042
        %v1044 = vsel %vm1043, %v1036, %v1040
        %v1045 = vand.u32 2147483647, %v654
        %vm1046 = vcmp.eq.f32.partialorder %v1045, 8.507059e+37
        %v1047 = vand.u32 %v654, 2147483648
        %v1048 = vor.u32 1.1754944e-38, %v1047
        %v1049 = vsel %vm1046, %v1048, %v1044
        %v1050 = vmul.f32 1.0, %v1049
        %v1051 = vrcp.pop %v655
        %v1052 = vmul.f32 %v655, %v1051
        %v1053 = vsub.f32 1.0, %v1052
        %v1054 = vmul.f32 %v1051, %v1053
        %v1055 = vadd.f32 %v1051, %v1054
        %vm1056 = vweird.f32 %v655
        %vm1057 = vweird.f32 %v1051
        %vm1058 = vmor %vm1056, %vm1057
        %v1059 = vsel %vm1058, %v1051, %v1055
        %v1060 = vand.u32 2147483647, %v655
        %vm1061 = vcmp.eq.f32.partialorder %v1060, 8.507059e+37
        %v1062 = vand.u32 %v655, 2147483648
        %v1063 = vor.u32 1.1754944e-38, %v1062
        %v1064 = vsel %vm1061, %v1063, %v1059
        %v1065 = vmul.f32 1.0, %v1064
        %v1066 = vrcp.pop %v656
        %v1067 = vmul.f32 %v656, %v1066
        %v1068 = vsub.f32 1.0, %v1067
        %v1069 = vmul.f32 %v1066, %v1068
        %v1070 = vadd.f32 %v1066, %v1069
        %vm1071 = vweird.f32 %v656
        %vm1072 = vweird.f32 %v1066
        %vm1073 = vmor %vm1071, %vm1072
        %v1074 = vsel %vm1073, %v1066, %v1070
        %v1075 = vand.u32 2147483647, %v656
        %vm1076 = vcmp.eq.f32.partialorder %v1075, 8.507059e+37
        %v1077 = vand.u32 %v656, 2147483648
        %v1078 = vor.u32 1.1754944e-38, %v1077
        %v1079 = vsel %vm1076, %v1078, %v1074
        %v1080 = vmul.f32 1.0, %v1079
        %v1081 = vrcp.pop %v657
        %v1082 = vmul.f32 %v657, %v1081
        %v1083 = vsub.f32 1.0, %v1082
        %v1084 = vmul.f32 %v1081, %v1083
        %v1085 = vadd.f32 %v1081, %v1084
        %vm1086 = vweird.f32 %v657
        %vm1087 = vweird.f32 %v1081
        %vm1088 = vmor %vm1086, %vm1087
        %v1089 = vsel %vm1088, %v1081, %v1085
        %v1090 = vand.u32 2147483647, %v657
        %vm1091 = vcmp.eq.f32.partialorder %v1090, 8.507059e+37
        %v1092 = vand.u32 %v657, 2147483648
        %v1093 = vor.u32 1.1754944e-38, %v1092
        %v1094 = vsel %vm1091, %v1093, %v1089
        %v1095 = vmul.f32 1.0, %v1094
        %v1096 = vrcp.pop %v658
        %v1097 = vmul.f32 %v658, %v1096
        %v1098 = vsub.f32 1.0, %v1097
        %v1099 = vmul.f32 %v1096, %v1098
        %v1100 = vadd.f32 %v1096, %v1099
        %vm1101 = vweird.f32 %v658
        %vm1102 = vweird.f32 %v1096
        %vm1103 = vmor %vm1101, %vm1102
        %v1104 = vsel %vm1103, %v1096, %v1100
        %v1105 = vand.u32 2147483647, %v658
        %vm1106 = vcmp.eq.f32.partialorder %v1105, 8.507059e+37
        %v1107 = vand.u32 %v658, 2147483648
        %v1108 = vor.u32 1.1754944e-38, %v1107
        %v1109 = vsel %vm1106, %v1108, %v1104
        %v1110 = vmul.f32 1.0, %v1109
        %v1111 = vrcp.pop %v659
        %v1112 = vmul.f32 %v659, %v1111
        %v1113 = vsub.f32 1.0, %v1112
        %v1114 = vmul.f32 %v1111, %v1113
        %v1115 = vadd.f32 %v1111, %v1114
        %vm1116 = vweird.f32 %v659
        %vm1117 = vweird.f32 %v1111
        %vm1118 = vmor %vm1116, %vm1117
        %v1119 = vsel %vm1118, %v1111, %v1115
        %v1120 = vand.u32 2147483647, %v659
        %vm1121 = vcmp.eq.f32.partialorder %v1120, 8.507059e+37
        %v1122 = vand.u32 %v659, 2147483648
        %v1123 = vor.u32 1.1754944e-38, %v1122
        %v1124 = vsel %vm1121, %v1123, %v1119
        %v1125 = vmul.f32 1.0, %v1124
        %v1126 = vrcp.pop %v660
        %v1127 = vmul.f32 %v660, %v1126
        %v1128 = vsub.f32 1.0, %v1127
        %v1129 = vmul.f32 %v1126, %v1128
        %v1130 = vadd.f32 %v1126, %v1129
        %vm1131 = vweird.f32 %v660
        %vm1132 = vweird.f32 %v1126
        %vm1133 = vmor %vm1131, %vm1132
        %v1134 = vsel %vm1133, %v1126, %v1130
        %v1135 = vand.u32 2147483647, %v660
        %vm1136 = vcmp.eq.f32.partialorder %v1135, 8.507059e+37
        %v1137 = vand.u32 %v660, 2147483648
        %v1138 = vor.u32 1.1754944e-38, %v1137
        %v1139 = vsel %vm1136, %v1138, %v1134
        %v1140 = vmul.f32 1.0, %v1139
        %v1141 = vmul.f32 %v438, %v675
        %v1142 = vmul.f32 %v441, %v690
        %v1143 = vmul.f32 %v444, %v705
        %v1144 = vmul.f32 %v447, %v720
        %v1145 = vmul.f32 %v450, %v735
        %v1146 = vmul.f32 %v453, %v750
        %v1147 = vmul.f32 %v456, %v765
        %v1148 = vmul.f32 %v459, %v780
        %v1149 = vmul.f32 %v462, %v795
        %v1150 = vmul.f32 %v465, %v810
        %v1151 = vmul.f32 %v468, %v825
        %v1152 = vmul.f32 %v471, %v840
        %v1153 = vmul.f32 %v474, %v855
        %v1154 = vmul.f32 %v477, %v870
        %v1155 = vmul.f32 %v480, %v885
        %v1156 = vmul.f32 %v483, %v900
        %v1157 = vmul.f32 %v486, %v915
        %v1158 = vmul.f32 %v489, %v930
        %v1159 = vmul.f32 %v492, %v945
        %v1160 = vmul.f32 %v495, %v960
        %v1161 = vmul.f32 %v498, %v975
        %v1162 = vmul.f32 %v501, %v990
        %v1163 = vmul.f32 %v504, %v1005
        %v1164 = vmul.f32 %v507, %v1020
        %v1165 = vmul.f32 %v510, %v1035
        %v1166 = vmul.f32 %v513, %v1050
        %v1167 = vmul.f32 %v516, %v1065
        %v1168 = vmul.f32 %v519, %v1080
        %v1169 = vmul.f32 %v522, %v1095
        %v1170 = vmul.f32 %v525, %v1110
        %v1171 = vmul.f32 %v528, %v1125
        %v1172 = vmul.f32 %v531, %v1140
        %vm1173 = vcmask 15360
        %1174 = vst.msk [vmem:[#allocation3] sm:$0xff] %vm1173, %v1141
        %1175 = vst.msk [vmem:[#allocation3 + $0x8] sm:$0xff] %vm1173, %v1142
        %1176 = vst.msk [vmem:[#allocation3 + $0x10] sm:$0xff] %vm1173, %v1143
        %1177 = vst.msk [vmem:[#allocation3 + $0x18] sm:$0xff] %vm1173, %v1144
        %1178 = vst.msk [vmem:[#allocation3 + $0x20] sm:$0xff] %vm1173, %v1145
        %1179 = vst.msk [vmem:[#allocation3 + $0x28] sm:$0xff] %vm1173, %v1146
        %1180 = vst.msk [vmem:[#allocation3 + $0x30] sm:$0xff] %vm1173, %v1147
        %1181 = vst.msk [vmem:[#allocation3 + $0x38] sm:$0xff] %vm1173, %v1148
        %1182 = vst.msk [vmem:[#allocation3 + $0x40] sm:$0xff] %vm1173, %v1149
        %1183 = vst.msk [vmem:[#allocation3 + $0x48] sm:$0xff] %vm1173, %v1150
        %1184 = vst.msk [vmem:[#allocation3 + $0x50] sm:$0xff] %vm1173, %v1151
        %1185 = vst.msk [vmem:[#allocation3 + $0x58] sm:$0xff] %vm1173, %v1152
        %1186 = vst.msk [vmem:[#allocation3 + $0x60] sm:$0xff] %vm1173, %v1153
        %1187 = vst.msk [vmem:[#allocation3 + $0x68] sm:$0xff] %vm1173, %v1154
        %1188 = vst.msk [vmem:[#allocation3 + $0x70] sm:$0xff] %vm1173, %v1155
        %1189 = vst.msk [vmem:[#allocation3 + $0x78] sm:$0xff] %vm1173, %v1156
        %1190 = vst.msk [vmem:[#allocation3 + $0x80] sm:$0xff] %vm1173, %v1157
        %1191 = vst.msk [vmem:[#allocation3 + $0x88] sm:$0xff] %vm1173, %v1158
        %1192 = vst.msk [vmem:[#allocation3 + $0x90] sm:$0xff] %vm1173, %v1159
        %1193 = vst.msk [vmem:[#allocation3 + $0x98] sm:$0xff] %vm1173, %v1160
        %1194 = vst.msk [vmem:[#allocation3 + $0xa0] sm:$0xff] %vm1173, %v1161
        %1195 = vst.msk [vmem:[#allocation3 + $0xa8] sm:$0xff] %vm1173, %v1162
        %1196 = vst.msk [vmem:[#allocation3 + $0xb0] sm:$0xff] %vm1173, %v1163
        %1197 = vst.msk [vmem:[#allocation3 + $0xb8] sm:$0xff] %vm1173, %v1164
        %1198 = vst.msk [vmem:[#allocation3 + $0xc0] sm:$0xff] %vm1173, %v1165
        %1199 = vst.msk [vmem:[#allocation3 + $0xc8] sm:$0xff] %vm1173, %v1166
        %1200 = vst.msk [vmem:[#allocation3 + $0xd0] sm:$0xff] %vm1173, %v1167
        %1201 = vst.msk [vmem:[#allocation3 + $0xd8] sm:$0xff] %vm1173, %v1168
        %1202 = vst.msk [vmem:[#allocation3 + $0xe0] sm:$0xff] %vm1173, %v1169
        %1203 = vst.msk [vmem:[#allocation3 + $0xe8] sm:$0xff] %vm1173, %v1170
        %1204 = vst.msk [vmem:[#allocation3 + $0xf0] sm:$0xff] %vm1173, %v1171
        %1205 = vst.msk [vmem:[#allocation3 + $0xf8] sm:$0xff] %vm1173, %v1172
        %1206 = vst.msk [vmem:[#allocation2] sm:$0xff] %vm1173, -inf
        %1207 = vst.msk [vmem:[#allocation2 + $0x8] sm:$0xff] %vm1173, -inf
        %1208 = vst.msk [vmem:[#allocation2 + $0x10] sm:$0xff] %vm1173, -inf
        %vm1209 = vcmask 11264
        %1210 = vst.msk [vmem:[#allocation2 + $0x18] sm:$0xf] %vm1209, -inf
        %1211 = vst.msk [vmem:[#allocation2 + $0x20] sm:$0xff] %vm1173, -inf
        %1212 = vst.msk [vmem:[#allocation2 + $0x28] sm:$0xff] %vm1173, -inf
        %1213 = vst.msk [vmem:[#allocation2 + $0x30] sm:$0xff] %vm1173, -inf
        %1214 = vst.msk [vmem:[#allocation2 + $0x38] sm:$0xf] %vm1209, -inf
        %1215 = vst.msk [vmem:[#allocation2 + $0x40] sm:$0xff] %vm1173, -inf
        %1216 = vst.msk [vmem:[#allocation2 + $0x48] sm:$0xff] %vm1173, -inf
        %1217 = vst.msk [vmem:[#allocation2 + $0x50] sm:$0xff] %vm1173, -inf
        %1218 = vst.msk [vmem:[#allocation2 + $0x58] sm:$0xf] %vm1209, -inf
        %1219 = vst.msk [vmem:[#allocation2 + $0x60] sm:$0xff] %vm1173, -inf
        %1220 = vst.msk [vmem:[#allocation2 + $0x68] sm:$0xff] %vm1173, -inf
        %1221 = vst.msk [vmem:[#allocation2 + $0x70] sm:$0xff] %vm1173, -inf
        %1222 = vst.msk [vmem:[#allocation2 + $0x78] sm:$0xf] %vm1209, -inf
        %1223 = vst.msk [vmem:[#allocation2 + $0x80] sm:$0xff] %vm1173, -inf
        %1224 = vst.msk [vmem:[#allocation2 + $0x88] sm:$0xff] %vm1173, -inf
        %1225 = vst.msk [vmem:[#allocation2 + $0x90] sm:$0xff] %vm1173, -inf
        %1226 = vst.msk [vmem:[#allocation2 + $0x98] sm:$0xf] %vm1209, -inf
        %1227 = vst.msk [vmem:[#allocation2 + $0xa0] sm:$0xff] %vm1173, -inf
        %1228 = vst.msk [vmem:[#allocation2 + $0xa8] sm:$0xff] %vm1173, -inf
        %1229 = vst.msk [vmem:[#allocation2 + $0xb0] sm:$0xff] %vm1173, -inf
        %1230 = vst.msk [vmem:[#allocation2 + $0xb8] sm:$0xf] %vm1209, -inf
        %1231 = vst.msk [vmem:[#allocation2 + $0xc0] sm:$0xff] %vm1173, -inf
        %1232 = vst.msk [vmem:[#allocation2 + $0xc8] sm:$0xff] %vm1173, -inf
        %1233 = vst.msk [vmem:[#allocation2 + $0xd0] sm:$0xff] %vm1173, -inf
        %1234 = vst.msk [vmem:[#allocation2 + $0xd8] sm:$0xf] %vm1209, -inf
        %1235 = vst.msk [vmem:[#allocation2 + $0xe0] sm:$0xff] %vm1173, -inf
        %1236 = vst.msk [vmem:[#allocation2 + $0xe8] sm:$0xff] %vm1173, -inf
        %1237 = vst.msk [vmem:[#allocation2 + $0xf0] sm:$0xff] %vm1173, -inf
        %1238 = vst.msk [vmem:[#allocation2 + $0xf8] sm:$0xf] %vm1209, -inf
        %1239 = vst.msk [vmem:[#allocation2 + $0x100] sm:$0xff] %vm1173, -inf
        %1240 = vst.msk [vmem:[#allocation2 + $0x108] sm:$0xff] %vm1173, -inf
        %1241 = vst.msk [vmem:[#allocation2 + $0x110] sm:$0xff] %vm1173, -inf
        %1242 = vst.msk [vmem:[#allocation2 + $0x118] sm:$0xf] %vm1209, -inf
        %1243 = vst.msk [vmem:[#allocation2 + $0x120] sm:$0xff] %vm1173, -inf
        %1244 = vst.msk [vmem:[#allocation2 + $0x128] sm:$0xff] %vm1173, -inf
        %1245 = vst.msk [vmem:[#allocation2 + $0x130] sm:$0xff] %vm1173, -inf
        %1246 = vst.msk [vmem:[#allocation2 + $0x138] sm:$0xf] %vm1209, -inf
        %1247 = vst.msk [vmem:[#allocation2 + $0x140] sm:$0xff] %vm1173, -inf
        %1248 = vst.msk [vmem:[#allocation2 + $0x148] sm:$0xff] %vm1173, -inf
        %1249 = vst.msk [vmem:[#allocation2 + $0x150] sm:$0xff] %vm1173, -inf
        %1250 = vst.msk [vmem:[#allocation2 + $0x158] sm:$0xf] %vm1209, -inf
        %1251 = vst.msk [vmem:[#allocation2 + $0x160] sm:$0xff] %vm1173, -inf
        %1252 = vst.msk [vmem:[#allocation2 + $0x168] sm:$0xff] %vm1173, -inf
        %1253 = vst.msk [vmem:[#allocation2 + $0x170] sm:$0xff] %vm1173, -inf
        %1254 = vst.msk [vmem:[#allocation2 + $0x178] sm:$0xf] %vm1209, -inf
        %1255 = vst.msk [vmem:[#allocation2 + $0x180] sm:$0xff] %vm1173, -inf
        %1256 = vst.msk [vmem:[#allocation2 + $0x188] sm:$0xff] %vm1173, -inf
        %1257 = vst.msk [vmem:[#allocation2 + $0x190] sm:$0xff] %vm1173, -inf
        %1258 = vst.msk [vmem:[#allocation2 + $0x198] sm:$0xf] %vm1209, -inf
        %1259 = vst.msk [vmem:[#allocation2 + $0x1a0] sm:$0xff] %vm1173, -inf
        %1260 = vst.msk [vmem:[#allocation2 + $0x1a8] sm:$0xff] %vm1173, -inf
        %1261 = vst.msk [vmem:[#allocation2 + $0x1b0] sm:$0xff] %vm1173, -inf
        %1262 = vst.msk [vmem:[#allocation2 + $0x1b8] sm:$0xf] %vm1209, -inf
        %1263 = vst.msk [vmem:[#allocation2 + $0x1c0] sm:$0xff] %vm1173, -inf
        %1264 = vst.msk [vmem:[#allocation2 + $0x1c8] sm:$0xff] %vm1173, -inf
        %1265 = vst.msk [vmem:[#allocation2 + $0x1d0] sm:$0xff] %vm1173, -inf
        %1266 = vst.msk [vmem:[#allocation2 + $0x1d8] sm:$0xf] %vm1209, -inf
        %1267 = vst.msk [vmem:[#allocation2 + $0x1e0] sm:$0xff] %vm1173, -inf
        %1268 = vst.msk [vmem:[#allocation2 + $0x1e8] sm:$0xff] %vm1173, -inf
        %1269 = vst.msk [vmem:[#allocation2 + $0x1f0] sm:$0xff] %vm1173, -inf
        %1270 = vst.msk [vmem:[#allocation2 + $0x1f8] sm:$0xf] %vm1209, -inf
        %1271 = vst.msk [vmem:[#allocation2 + $0x200] sm:$0xff] %vm1173, -inf
        %1272 = vst.msk [vmem:[#allocation2 + $0x208] sm:$0xff] %vm1173, -inf
        %1273 = vst.msk [vmem:[#allocation2 + $0x210] sm:$0xff] %vm1173, -inf
        %1274 = vst.msk [vmem:[#allocation2 + $0x218] sm:$0xf] %vm1209, -inf
        %1275 = vst.msk [vmem:[#allocation2 + $0x220] sm:$0xff] %vm1173, -inf
        %1276 = vst.msk [vmem:[#allocation2 + $0x228] sm:$0xff] %vm1173, -inf
        %1277 = vst.msk [vmem:[#allocation2 + $0x230] sm:$0xff] %vm1173, -inf
        %1278 = vst.msk [vmem:[#allocation2 + $0x238] sm:$0xf] %vm1209, -inf
        %1279 = vst.msk [vmem:[#allocation2 + $0x240] sm:$0xff] %vm1173, -inf
        %1280 = vst.msk [vmem:[#allocation2 + $0x248] sm:$0xff] %vm1173, -inf
        %1281 = vst.msk [vmem:[#allocation2 + $0x250] sm:$0xff] %vm1173, -inf
        %1282 = vst.msk [vmem:[#allocation2 + $0x258] sm:$0xf] %vm1209, -inf
        %1283 = vst.msk [vmem:[#allocation2 + $0x260] sm:$0xff] %vm1173, -inf
        %1284 = vst.msk [vmem:[#allocation2 + $0x268] sm:$0xff] %vm1173, -inf
        %1285 = vst.msk [vmem:[#allocation2 + $0x270] sm:$0xff] %vm1173, -inf
        %1286 = vst.msk [vmem:[#allocation2 + $0x278] sm:$0xf] %vm1209, -inf
        %1287 = vst.msk [vmem:[#allocation2 + $0x280] sm:$0xff] %vm1173, -inf
        %1288 = vst.msk [vmem:[#allocation2 + $0x288] sm:$0xff] %vm1173, -inf
        %1289 = vst.msk [vmem:[#allocation2 + $0x290] sm:$0xff] %vm1173, -inf
        %1290 = vst.msk [vmem:[#allocation2 + $0x298] sm:$0xf] %vm1209, -inf
        %1291 = vst.msk [vmem:[#allocation2 + $0x2a0] sm:$0xff] %vm1173, -inf
        %1292 = vst.msk [vmem:[#allocation2 + $0x2a8] sm:$0xff] %vm1173, -inf
        %1293 = vst.msk [vmem:[#allocation2 + $0x2b0] sm:$0xff] %vm1173, -inf
        %1294 = vst.msk [vmem:[#allocation2 + $0x2b8] sm:$0xf] %vm1209, -inf
        %1295 = vst.msk [vmem:[#allocation2 + $0x2c0] sm:$0xff] %vm1173, -inf
        %1296 = vst.msk [vmem:[#allocation2 + $0x2c8] sm:$0xff] %vm1173, -inf
        %1297 = vst.msk [vmem:[#allocation2 + $0x2d0] sm:$0xff] %vm1173, -inf
        %1298 = vst.msk [vmem:[#allocation2 + $0x2d8] sm:$0xf] %vm1209, -inf
        %1299 = vst.msk [vmem:[#allocation2 + $0x2e0] sm:$0xff] %vm1173, -inf
        %1300 = vst.msk [vmem:[#allocation2 + $0x2e8] sm:$0xff] %vm1173, -inf
        %1301 = vst.msk [vmem:[#allocation2 + $0x2f0] sm:$0xff] %vm1173, -inf
        %1302 = vst.msk [vmem:[#allocation2 + $0x2f8] sm:$0xf] %vm1209, -inf
        %1303 = vst.msk [vmem:[#allocation2 + $0x300] sm:$0xff] %vm1173, -inf
        %1304 = vst.msk [vmem:[#allocation2 + $0x308] sm:$0xff] %vm1173, -inf
        %1305 = vst.msk [vmem:[#allocation2 + $0x310] sm:$0xff] %vm1173, -inf
        %1306 = vst.msk [vmem:[#allocation2 + $0x318] sm:$0xf] %vm1209, -inf
        %1307 = vst.msk [vmem:[#allocation2 + $0x320] sm:$0xff] %vm1173, -inf
        %1308 = vst.msk [vmem:[#allocation2 + $0x328] sm:$0xff] %vm1173, -inf
        %1309 = vst.msk [vmem:[#allocation2 + $0x330] sm:$0xff] %vm1173, -inf
        %1310 = vst.msk [vmem:[#allocation2 + $0x338] sm:$0xf] %vm1209, -inf
        %1311 = vst.msk [vmem:[#allocation2 + $0x340] sm:$0xff] %vm1173, -inf
        %1312 = vst.msk [vmem:[#allocation2 + $0x348] sm:$0xff] %vm1173, -inf
        %1313 = vst.msk [vmem:[#allocation2 + $0x350] sm:$0xff] %vm1173, -inf
        %1314 = vst.msk [vmem:[#allocation2 + $0x358] sm:$0xf] %vm1209, -inf
        %1315 = vst.msk [vmem:[#allocation2 + $0x360] sm:$0xff] %vm1173, -inf
        %1316 = vst.msk [vmem:[#allocation2 + $0x368] sm:$0xff] %vm1173, -inf
        %1317 = vst.msk [vmem:[#allocation2 + $0x370] sm:$0xff] %vm1173, -inf
        %1318 = vst.msk [vmem:[#allocation2 + $0x378] sm:$0xf] %vm1209, -inf
        %s1319 = scalar_lea.vmem [#allocation2], 192
        %1320 = vst.msk [vmem:[%s1319 + $0x6] sm:$0xff] %vm1173, %v1141
        %1321 = vst.msk [vmem:[%s1319 + $0xe] sm:$0xff] %vm1173, %v1142
        %1322 = vst.msk [vmem:[%s1319 + $0x26] sm:$0xff] %vm1173, %v1143
        %1323 = vst.msk [vmem:[%s1319 + $0x2e] sm:$0xff] %vm1173, %v1144
        %1324 = vst.msk [vmem:[%s1319 + $0x46] sm:$0xff] %vm1173, %v1145
        %1325 = vst.msk [vmem:[%s1319 + $0x4e] sm:$0xff] %vm1173, %v1146
        %1326 = vst.msk [vmem:[%s1319 + $0x66] sm:$0xff] %vm1173, %v1147
        %1327 = vst.msk [vmem:[%s1319 + $0x6e] sm:$0xff] %vm1173, %v1148
        %1328 = vst.msk [vmem:[%s1319 + $0x86] sm:$0xff] %vm1173, %v1149
        %1329 = vst.msk [vmem:[%s1319 + $0x8e] sm:$0xff] %vm1173, %v1150
        %1330 = vst.msk [vmem:[%s1319 + $0xa6] sm:$0xff] %vm1173, %v1151
        %1331 = vst.msk [vmem:[%s1319 + $0xae] sm:$0xff] %vm1173, %v1152
        %1332 = vst.msk [vmem:[%s1319 + $0xc6] sm:$0xff] %vm1173, %v1153
        %1333 = vst.msk [vmem:[%s1319 + $0xce] sm:$0xff] %vm1173, %v1154
        %1334 = vst.msk [vmem:[%s1319 + $0xe6] sm:$0xff] %vm1173, %v1155
        %1335 = vst.msk [vmem:[%s1319 + $0xee] sm:$0xff] %vm1173, %v1156
        %1336 = vst.msk [vmem:[%s1319 + $0x106] sm:$0xff] %vm1173, %v1157
        %1337 = vst.msk [vmem:[%s1319 + $0x10e] sm:$0xff] %vm1173, %v1158
        %1338 = vst.msk [vmem:[%s1319 + $0x126] sm:$0xff] %vm1173, %v1159
        %1339 = vst.msk [vmem:[%s1319 + $0x12e] sm:$0xff] %vm1173, %v1160
        %1340 = vst.msk [vmem:[%s1319 + $0x146] sm:$0xff] %vm1173, %v1161
        %1341 = vst.msk [vmem:[%s1319 + $0x14e] sm:$0xff] %vm1173, %v1162
        %1342 = vst.msk [vmem:[%s1319 + $0x166] sm:$0xff] %vm1173, %v1163
        %1343 = vst.msk [vmem:[%s1319 + $0x16e] sm:$0xff] %vm1173, %v1164
        %1344 = vst.msk [vmem:[%s1319 + $0x186] sm:$0xff] %vm1173, %v1165
        %1345 = vst.msk [vmem:[%s1319 + $0x18e] sm:$0xff] %vm1173, %v1166
        %1346 = vst.msk [vmem:[%s1319 + $0x1a6] sm:$0xff] %vm1173, %v1167
        %1347 = vst.msk [vmem:[%s1319 + $0x1ae] sm:$0xff] %vm1173, %v1168
        %1348 = vst.msk [vmem:[%s1319 + $0x1c6] sm:$0xff] %vm1173, %v1169
        %1349 = vst.msk [vmem:[%s1319 + $0x1ce] sm:$0xff] %vm1173, %v1170
        %1350 = vst.msk [vmem:[%s1319 + $0x1e6] sm:$0xff] %vm1173, %v1171
        %1351 = vst.msk [vmem:[%s1319 + $0x1ee] sm:$0xff] %vm1173, %v1172
        %v1352 = vld [vmem:[#allocation2] sm:$0xff]
        %v1353 = vld [vmem:[#allocation2 + $0x8] sm:$0xff]
        %v1354 = vld [vmem:[#allocation2 + $0x10] sm:$0xff]
        %v1355 = vld [vmem:[#allocation2 + $0x18] sm:$0xf]
        %v1356 = vld [vmem:[#allocation2 + $0x20] sm:$0xff]
        %v1357 = vld [vmem:[#allocation2 + $0x28] sm:$0xff]
        %v1358 = vld [vmem:[#allocation2 + $0x30] sm:$0xff]
        %v1359 = vld [vmem:[#allocation2 + $0x38] sm:$0xf]
        %v1360 = vld [vmem:[#allocation2 + $0x40] sm:$0xff]
        %v1361 = vld [vmem:[#allocation2 + $0x48] sm:$0xff]
        %v1362 = vld [vmem:[#allocation2 + $0x50] sm:$0xff]
        %v1363 = vld [vmem:[#allocation2 + $0x58] sm:$0xf]
        %v1364 = vld [vmem:[#allocation2 + $0x60] sm:$0xff]
        %v1365 = vld [vmem:[#allocation2 + $0x68] sm:$0xff]
        %v1366 = vld [vmem:[#allocation2 + $0x70] sm:$0xff]
        %v1367 = vld [vmem:[#allocation2 + $0x78] sm:$0xf]
        %v1368 = vld [vmem:[#allocation2 + $0x80] sm:$0xff]
        %v1369 = vld [vmem:[#allocation2 + $0x88] sm:$0xff]
        %v1370 = vld [vmem:[#allocation2 + $0x90] sm:$0xff]
        %v1371 = vld [vmem:[#allocation2 + $0x98] sm:$0xf]
        %v1372 = vld [vmem:[#allocation2 + $0xa0] sm:$0xff]
        %v1373 = vld [vmem:[#allocation2 + $0xa8] sm:$0xff]
        %v1374 = vld [vmem:[#allocation2 + $0xb0] sm:$0xff]
        %v1375 = vld [vmem:[#allocation2 + $0xb8] sm:$0xf]
        %v1376 = vld [vmem:[#allocation2 + $0xc0] sm:$0xff]
        %v1377 = vld [vmem:[#allocation2 + $0xc8] sm:$0xff]
        %v1378 = vld [vmem:[#allocation2 + $0xd0] sm:$0xff]
        %v1379 = vld [vmem:[#allocation2 + $0xd8] sm:$0xf]
        %v1380 = vld [vmem:[#allocation2 + $0xe0] sm:$0xff]
        %v1381 = vld [vmem:[#allocation2 + $0xe8] sm:$0xff]
        %v1382 = vld [vmem:[#allocation2 + $0xf0] sm:$0xff]
        %v1383 = vld [vmem:[#allocation2 + $0xf8] sm:$0xf]
        %v1384 = vld [vmem:[#allocation2 + $0x100] sm:$0xff]
        %v1385 = vld [vmem:[#allocation2 + $0x108] sm:$0xff]
        %v1386 = vld [vmem:[#allocation2 + $0x110] sm:$0xff]
        %v1387 = vld [vmem:[#allocation2 + $0x118] sm:$0xf]
        %v1388 = vld [vmem:[#allocation2 + $0x120] sm:$0xff]
        %v1389 = vld [vmem:[#allocation2 + $0x128] sm:$0xff]
        %v1390 = vld [vmem:[#allocation2 + $0x130] sm:$0xff]
        %v1391 = vld [vmem:[#allocation2 + $0x138] sm:$0xf]
        %v1392 = vld [vmem:[#allocation2 + $0x140] sm:$0xff]
        %v1393 = vld [vmem:[#allocation2 + $0x148] sm:$0xff]
        %v1394 = vld [vmem:[#allocation2 + $0x150] sm:$0xff]
        %v1395 = vld [vmem:[#allocation2 + $0x158] sm:$0xf]
        %v1396 = vld [vmem:[#allocation2 + $0x160] sm:$0xff]
        %v1397 = vld [vmem:[#allocation2 + $0x168] sm:$0xff]
        %v1398 = vld [vmem:[#allocation2 + $0x170] sm:$0xff]
        %v1399 = vld [vmem:[#allocation2 + $0x178] sm:$0xf]
        %v1400 = vld [vmem:[#allocation2 + $0x180] sm:$0xff]
        %v1401 = vld [vmem:[#allocation2 + $0x188] sm:$0xff]
        %v1402 = vld [vmem:[#allocation2 + $0x190] sm:$0xff]
        %v1403 = vld [vmem:[#allocation2 + $0x198] sm:$0xf]
        %v1404 = vld [vmem:[#allocation2 + $0x1a0] sm:$0xff]
        %v1405 = vld [vmem:[#allocation2 + $0x1a8] sm:$0xff]
        %v1406 = vld [vmem:[#allocation2 + $0x1b0] sm:$0xff]
        %v1407 = vld [vmem:[#allocation2 + $0x1b8] sm:$0xf]
        %v1408 = vld [vmem:[#allocation2 + $0x1c0] sm:$0xff]
        %v1409 = vld [vmem:[#allocation2 + $0x1c8] sm:$0xff]
        %v1410 = vld [vmem:[#allocation2 + $0x1d0] sm:$0xff]
        %v1411 = vld [vmem:[#allocation2 + $0x1d8] sm:$0xf]
        %v1412 = vld [vmem:[#allocation2 + $0x1e0] sm:$0xff]
        %v1413 = vld [vmem:[#allocation2 + $0x1e8] sm:$0xff]
        %v1414 = vld [vmem:[#allocation2 + $0x1f0] sm:$0xff]
        %v1415 = vld [vmem:[#allocation2 + $0x1f8] sm:$0xf]
        %v1416 = vld [vmem:[#allocation2 + $0x200] sm:$0xff]
        %v1417 = vld [vmem:[#allocation2 + $0x208] sm:$0xff]
        %v1418 = vld [vmem:[#allocation2 + $0x210] sm:$0xff]
        %v1419 = vld [vmem:[#allocation2 + $0x218] sm:$0xf]
        %v1420 = vld [vmem:[#allocation2 + $0x220] sm:$0xff]
        %v1421 = vld [vmem:[#allocation2 + $0x228] sm:$0xff]
        %v1422 = vld [vmem:[#allocation2 + $0x230] sm:$0xff]
        %v1423 = vld [vmem:[#allocation2 + $0x238] sm:$0xf]
        %v1424 = vld [vmem:[#allocation2 + $0x240] sm:$0xff]
        %v1425 = vld [vmem:[#allocation2 + $0x248] sm:$0xff]
        %v1426 = vld [vmem:[#allocation2 + $0x250] sm:$0xff]
        %v1427 = vld [vmem:[#allocation2 + $0x258] sm:$0xf]
        %v1428 = vld [vmem:[#allocation2 + $0x260] sm:$0xff]
        %v1429 = vld [vmem:[#allocation2 + $0x268] sm:$0xff]
        %v1430 = vld [vmem:[#allocation2 + $0x270] sm:$0xff]
        %v1431 = vld [vmem:[#allocation2 + $0x278] sm:$0xf]
        %v1432 = vld [vmem:[#allocation2 + $0x280] sm:$0xff]
        %v1433 = vld [vmem:[#allocation2 + $0x288] sm:$0xff]
        %v1434 = vld [vmem:[#allocation2 + $0x290] sm:$0xff]
        %v1435 = vld [vmem:[#allocation2 + $0x298] sm:$0xf]
        %v1436 = vld [vmem:[#allocation2 + $0x2a0] sm:$0xff]
        %v1437 = vld [vmem:[#allocation2 + $0x2a8] sm:$0xff]
        %v1438 = vld [vmem:[#allocation2 + $0x2b0] sm:$0xff]
        %v1439 = vld [vmem:[#allocation2 + $0x2b8] sm:$0xf]
        %v1440 = vld [vmem:[#allocation2 + $0x2c0] sm:$0xff]
        %v1441 = vld [vmem:[#allocation2 + $0x2c8] sm:$0xff]
        %v1442 = vld [vmem:[#allocation2 + $0x2d0] sm:$0xff]
        %v1443 = vld [vmem:[#allocation2 + $0x2d8] sm:$0xf]
        %v1444 = vld [vmem:[#allocation2 + $0x2e0] sm:$0xff]
        %v1445 = vld [vmem:[#allocation2 + $0x2e8] sm:$0xff]
        %v1446 = vld [vmem:[#allocation2 + $0x2f0] sm:$0xff]
        %v1447 = vld [vmem:[#allocation2 + $0x2f8] sm:$0xf]
        %v1448 = vld [vmem:[#allocation2 + $0x300] sm:$0xff]
        %v1449 = vld [vmem:[#allocation2 + $0x308] sm:$0xff]
        %v1450 = vld [vmem:[#allocation2 + $0x310] sm:$0xff]
        %v1451 = vld [vmem:[#allocation2 + $0x318] sm:$0xf]
        %v1452 = vld [vmem:[#allocation2 + $0x320] sm:$0xff]
        %v1453 = vld [vmem:[#allocation2 + $0x328] sm:$0xff]
        %v1454 = vld [vmem:[#allocation2 + $0x330] sm:$0xff]
        %v1455 = vld [vmem:[#allocation2 + $0x338] sm:$0xf]
        %v1456 = vld [vmem:[#allocation2 + $0x340] sm:$0xff]
        %v1457 = vld [vmem:[#allocation2 + $0x348] sm:$0xff]
        %v1458 = vld [vmem:[#allocation2 + $0x350] sm:$0xff]
        %v1459 = vld [vmem:[#allocation2 + $0x358] sm:$0xf]
        %v1460 = vld [vmem:[#allocation2 + $0x360] sm:$0xff]
        %v1461 = vld [vmem:[#allocation2 + $0x368] sm:$0xff]
        %v1462 = vld [vmem:[#allocation2 + $0x370] sm:$0xff]
        %v1463 = vld [vmem:[#allocation2 + $0x378] sm:$0xf]
        %v1464 = vmax.f32 %v1352, %v1356
        %v1465 = vmax.f32 %v1353, %v1357
        %v1466 = vmax.f32 %v1354, %v1358
        %v1467 = vmax.f32 %v1355, %v1359
        %v1468 = vmax.f32 %v1356, %v1360
        %v1469 = vmax.f32 %v1357, %v1361
        %v1470 = vmax.f32 %v1358, %v1362
        %v1471 = vmax.f32 %v1359, %v1363
        %v1472 = vmax.f32 %v1360, %v1364
        %v1473 = vmax.f32 %v1361, %v1365
        %v1474 = vmax.f32 %v1362, %v1366
        %v1475 = vmax.f32 %v1363, %v1367
        %v1476 = vmax.f32 %v1364, %v1368
        %v1477 = vmax.f32 %v1365, %v1369
        %v1478 = vmax.f32 %v1366, %v1370
        %v1479 = vmax.f32 %v1367, %v1371
        %v1480 = vmax.f32 %v1368, %v1372
        %v1481 = vmax.f32 %v1369, %v1373
        %v1482 = vmax.f32 %v1370, %v1374
        %v1483 = vmax.f32 %v1371, %v1375
        %v1484 = vmax.f32 %v1372, %v1376
        %v1485 = vmax.f32 %v1373, %v1377
        %v1486 = vmax.f32 %v1374, %v1378
        %v1487 = vmax.f32 %v1375, %v1379
        %v1488 = vmax.f32 %v1376, %v1380
        %v1489 = vmax.f32 %v1377, %v1381
        %v1490 = vmax.f32 %v1378, %v1382
        %v1491 = vmax.f32 %v1379, %v1383
        %v1492 = vmax.f32 %v1380, %v1384
        %v1493 = vmax.f32 %v1381, %v1385
        %v1494 = vmax.f32 %v1382, %v1386
        %v1495 = vmax.f32 %v1383, %v1387
        %v1496 = vmax.f32 %v1384, %v1388
        %v1497 = vmax.f32 %v1385, %v1389
        %v1498 = vmax.f32 %v1386, %v1390
        %v1499 = vmax.f32 %v1387, %v1391
        %v1500 = vmax.f32 %v1388, %v1392
        %v1501 = vmax.f32 %v1389, %v1393
        %v1502 = vmax.f32 %v1390, %v1394
        %v1503 = vmax.f32 %v1391, %v1395
        %v1504 = vmax.f32 %v1392, %v1396
        %v1505 = vmax.f32 %v1393, %v1397
        %v1506 = vmax.f32 %v1394, %v1398
        %v1507 = vmax.f32 %v1395, %v1399
        %v1508 = vmax.f32 %v1396, %v1400
        %v1509 = vmax.f32 %v1397, %v1401
        %v1510 = vmax.f32 %v1398, %v1402
        %v1511 = vmax.f32 %v1399, %v1403
        %v1512 = vmax.f32 %v1400, %v1404
        %v1513 = vmax.f32 %v1401, %v1405
        %v1514 = vmax.f32 %v1402, %v1406
        %v1515 = vmax.f32 %v1403, %v1407
        %v1516 = vmax.f32 %v1404, %v1408
        %v1517 = vmax.f32 %v1405, %v1409
        %v1518 = vmax.f32 %v1406, %v1410
        %v1519 = vmax.f32 %v1407, %v1411
        %v1520 = vmax.f32 %v1408, %v1412
        %v1521 = vmax.f32 %v1409, %v1413
        %v1522 = vmax.f32 %v1410, %v1414
        %v1523 = vmax.f32 %v1411, %v1415
        %v1524 = vmax.f32 %v1412, %v1416
        %v1525 = vmax.f32 %v1413, %v1417
        %v1526 = vmax.f32 %v1414, %v1418
        %v1527 = vmax.f32 %v1415, %v1419
        %v1528 = vmax.f32 %v1416, %v1420
        %v1529 = vmax.f32 %v1417, %v1421
        %v1530 = vmax.f32 %v1418, %v1422
        %v1531 = vmax.f32 %v1419, %v1423
        %v1532 = vmax.f32 %v1420, %v1424
        %v1533 = vmax.f32 %v1421, %v1425
        %v1534 = vmax.f32 %v1422, %v1426
        %v1535 = vmax.f32 %v1423, %v1427
        %v1536 = vmax.f32 %v1424, %v1428
        %v1537 = vmax.f32 %v1425, %v1429
        %v1538 = vmax.f32 %v1426, %v1430
        %v1539 = vmax.f32 %v1427, %v1431
        %v1540 = vmax.f32 %v1428, %v1432
        %v1541 = vmax.f32 %v1429, %v1433
        %v1542 = vmax.f32 %v1430, %v1434
        %v1543 = vmax.f32 %v1431, %v1435
        %v1544 = vmax.f32 %v1432, %v1436
        %v1545 = vmax.f32 %v1433, %v1437
        %v1546 = vmax.f32 %v1434, %v1438
        %v1547 = vmax.f32 %v1435, %v1439
        %v1548 = vmax.f32 %v1436, %v1440
        %v1549 = vmax.f32 %v1437, %v1441
        %v1550 = vmax.f32 %v1438, %v1442
        %v1551 = vmax.f32 %v1439, %v1443
        %v1552 = vmax.f32 %v1440, %v1444
        %v1553 = vmax.f32 %v1441, %v1445
        %v1554 = vmax.f32 %v1442, %v1446
        %v1555 = vmax.f32 %v1443, %v1447
        %v1556 = vmax.f32 %v1444, %v1448
        %v1557 = vmax.f32 %v1445, %v1449
        %v1558 = vmax.f32 %v1446, %v1450
        %v1559 = vmax.f32 %v1447, %v1451
        %v1560 = vmax.f32 %v1464, %v1360
        %v1561 = vmax.f32 %v1465, %v1361
        %v1562 = vmax.f32 %v1466, %v1362
        %v1563 = vmax.f32 %v1467, %v1363
        %v1564 = vmax.f32 %v1468, %v1364
        %v1565 = vmax.f32 %v1469, %v1365
        %v1566 = vmax.f32 %v1470, %v1366
        %v1567 = vmax.f32 %v1471, %v1367
        %v1568 = vmax.f32 %v1472, %v1368
        %v1569 = vmax.f32 %v1473, %v1369
        %v1570 = vmax.f32 %v1474, %v1370
        %v1571 = vmax.f32 %v1475, %v1371
        %v1572 = vmax.f32 %v1476, %v1372
        %v1573 = vmax.f32 %v1477, %v1373
        %v1574 = vmax.f32 %v1478, %v1374
        %v1575 = vmax.f32 %v1479, %v1375
        %v1576 = vmax.f32 %v1480, %v1376
        %v1577 = vmax.f32 %v1481, %v1377
        %v1578 = vmax.f32 %v1482, %v1378
        %v1579 = vmax.f32 %v1483, %v1379
        %v1580 = vmax.f32 %v1484, %v1380
        %v1581 = vmax.f32 %v1485, %v1381
        %v1582 = vmax.f32 %v1486, %v1382
        %v1583 = vmax.f32 %v1487, %v1383
        %v1584 = vmax.f32 %v1488, %v1384
        %v1585 = vmax.f32 %v1489, %v1385
        %v1586 = vmax.f32 %v1490, %v1386
        %v1587 = vmax.f32 %v1491, %v1387
        %v1588 = vmax.f32 %v1492, %v1388
        %v1589 = vmax.f32 %v1493, %v1389
        %v1590 = vmax.f32 %v1494, %v1390
        %v1591 = vmax.f32 %v1495, %v1391
        %v1592 = vmax.f32 %v1496, %v1392
        %v1593 = vmax.f32 %v1497, %v1393
        %v1594 = vmax.f32 %v1498, %v1394
        %v1595 = vmax.f32 %v1499, %v1395
        %v1596 = vmax.f32 %v1500, %v1396
        %v1597 = vmax.f32 %v1501, %v1397
        %v1598 = vmax.f32 %v1502, %v1398
        %v1599 = vmax.f32 %v1503, %v1399
        %v1600 = vmax.f32 %v1504, %v1400
        %v1601 = vmax.f32 %v1505, %v1401
        %v1602 = vmax.f32 %v1506, %v1402
        %v1603 = vmax.f32 %v1507, %v1403
        %v1604 = vmax.f32 %v1508, %v1404
        %v1605 = vmax.f32 %v1509, %v1405
        %v1606 = vmax.f32 %v1510, %v1406
        %v1607 = vmax.f32 %v1511, %v1407
        %v1608 = vmax.f32 %v1512, %v1408
        %v1609 = vmax.f32 %v1513, %v1409
        %v1610 = vmax.f32 %v1514, %v1410
        %v1611 = vmax.f32 %v1515, %v1411
        %v1612 = vmax.f32 %v1516, %v1412
        %v1613 = vmax.f32 %v1517, %v1413
        %v1614 = vmax.f32 %v1518, %v1414
        %v1615 = vmax.f32 %v1519, %v1415
        %v1616 = vmax.f32 %v1520, %v1416
        %v1617 = vmax.f32 %v1521, %v1417
        %v1618 = vmax.f32 %v1522, %v1418
        %v1619 = vmax.f32 %v1523, %v1419
        %v1620 = vmax.f32 %v1524, %v1420
        %v1621 = vmax.f32 %v1525, %v1421
        %v1622 = vmax.f32 %v1526, %v1422
        %v1623 = vmax.f32 %v1527, %v1423
        %v1624 = vmax.f32 %v1528, %v1424
        %v1625 = vmax.f32 %v1529, %v1425
        %v1626 = vmax.f32 %v1530, %v1426
        %v1627 = vmax.f32 %v1531, %v1427
        %v1628 = vmax.f32 %v1532, %v1428
        %v1629 = vmax.f32 %v1533, %v1429
        %v1630 = vmax.f32 %v1534, %v1430
        %v1631 = vmax.f32 %v1535, %v1431
        %v1632 = vmax.f32 %v1536, %v1432
        %v1633 = vmax.f32 %v1537, %v1433
        %v1634 = vmax.f32 %v1538, %v1434
        %v1635 = vmax.f32 %v1539, %v1435
        %v1636 = vmax.f32 %v1540, %v1436
        %v1637 = vmax.f32 %v1541, %v1437
        %v1638 = vmax.f32 %v1542, %v1438
        %v1639 = vmax.f32 %v1543, %v1439
        %v1640 = vmax.f32 %v1544, %v1440
        %v1641 = vmax.f32 %v1545, %v1441
        %v1642 = vmax.f32 %v1546, %v1442
        %v1643 = vmax.f32 %v1547, %v1443
        %v1644 = vmax.f32 %v1548, %v1444
        %v1645 = vmax.f32 %v1549, %v1445
        %v1646 = vmax.f32 %v1550, %v1446
        %v1647 = vmax.f32 %v1551, %v1447
        %v1648 = vmax.f32 %v1552, %v1448
        %v1649 = vmax.f32 %v1553, %v1449
        %v1650 = vmax.f32 %v1554, %v1450
        %v1651 = vmax.f32 %v1555, %v1451
        %v1652 = vmax.f32 %v1556, %v1452
        %v1653 = vmax.f32 %v1557, %v1453
        %v1654 = vmax.f32 %v1558, %v1454
        %v1655 = vmax.f32 %v1559, %v1455
        %v1656 = vmax.f32 %v1560, %v1364
        %v1657 = vmax.f32 %v1561, %v1365
        %v1658 = vmax.f32 %v1562, %v1366
        %v1659 = vmax.f32 %v1563, %v1367
        %v1660 = vmax.f32 %v1564, %v1368
        %v1661 = vmax.f32 %v1565, %v1369
        %v1662 = vmax.f32 %v1566, %v1370
        %v1663 = vmax.f32 %v1567, %v1371
        %v1664 = vmax.f32 %v1568, %v1372
        %v1665 = vmax.f32 %v1569, %v1373
        %v1666 = vmax.f32 %v1570, %v1374
        %v1667 = vmax.f32 %v1571, %v1375
        %v1668 = vmax.f32 %v1572, %v1376
        %v1669 = vmax.f32 %v1573, %v1377
        %v1670 = vmax.f32 %v1574, %v1378
        %v1671 = vmax.f32 %v1575, %v1379
        %v1672 = vmax.f32 %v1576, %v1380
        %v1673 = vmax.f32 %v1577, %v1381
        %v1674 = vmax.f32 %v1578, %v1382
        %v1675 = vmax.f32 %v1579, %v1383
        %v1676 = vmax.f32 %v1580, %v1384
        %v1677 = vmax.f32 %v1581, %v1385
        %v1678 = vmax.f32 %v1582, %v1386
        %v1679 = vmax.f32 %v1583, %v1387
        %v1680 = vmax.f32 %v1584, %v1388
        %v1681 = vmax.f32 %v1585, %v1389
        %v1682 = vmax.f32 %v1586, %v1390
        %v1683 = vmax.f32 %v1587, %v1391
        %v1684 = vmax.f32 %v1588, %v1392
        %v1685 = vmax.f32 %v1589, %v1393
        %v1686 = vmax.f32 %v1590, %v1394
        %v1687 = vmax.f32 %v1591, %v1395
        %v1688 = vmax.f32 %v1592, %v1396
        %v1689 = vmax.f32 %v1593, %v1397
        %v1690 = vmax.f32 %v1594, %v1398
        %v1691 = vmax.f32 %v1595, %v1399
        %v1692 = vmax.f32 %v1596, %v1400
        %v1693 = vmax.f32 %v1597, %v1401
        %v1694 = vmax.f32 %v1598, %v1402
        %v1695 = vmax.f32 %v1599, %v1403
        %v1696 = vmax.f32 %v1600, %v1404
        %v1697 = vmax.f32 %v1601, %v1405
        %v1698 = vmax.f32 %v1602, %v1406
        %v1699 = vmax.f32 %v1603, %v1407
        %v1700 = vmax.f32 %v1604, %v1408
        %v1701 = vmax.f32 %v1605, %v1409
        %v1702 = vmax.f32 %v1606, %v1410
        %v1703 = vmax.f32 %v1607, %v1411
        %v1704 = vmax.f32 %v1608, %v1412
        %v1705 = vmax.f32 %v1609, %v1413
        %v1706 = vmax.f32 %v1610, %v1414
        %v1707 = vmax.f32 %v1611, %v1415
        %v1708 = vmax.f32 %v1612, %v1416
        %v1709 = vmax.f32 %v1613, %v1417
        %v1710 = vmax.f32 %v1614, %v1418
        %v1711 = vmax.f32 %v1615, %v1419
        %v1712 = vmax.f32 %v1616, %v1420
        %v1713 = vmax.f32 %v1617, %v1421
        %v1714 = vmax.f32 %v1618, %v1422
        %v1715 = vmax.f32 %v1619, %v1423
        %v1716 = vmax.f32 %v1620, %v1424
        %v1717 = vmax.f32 %v1621, %v1425
        %v1718 = vmax.f32 %v1622, %v1426
        %v1719 = vmax.f32 %v1623, %v1427
        %v1720 = vmax.f32 %v1624, %v1428
        %v1721 = vmax.f32 %v1625, %v1429
        %v1722 = vmax.f32 %v1626, %v1430
        %v1723 = vmax.f32 %v1627, %v1431
        %v1724 = vmax.f32 %v1628, %v1432
        %v1725 = vmax.f32 %v1629, %v1433
        %v1726 = vmax.f32 %v1630, %v1434
        %v1727 = vmax.f32 %v1631, %v1435
        %v1728 = vmax.f32 %v1632, %v1436
        %v1729 = vmax.f32 %v1633, %v1437
        %v1730 = vmax.f32 %v1634, %v1438
        %v1731 = vmax.f32 %v1635, %v1439
        %v1732 = vmax.f32 %v1636, %v1440
        %v1733 = vmax.f32 %v1637, %v1441
        %v1734 = vmax.f32 %v1638, %v1442
        %v1735 = vmax.f32 %v1639, %v1443
        %v1736 = vmax.f32 %v1640, %v1444
        %v1737 = vmax.f32 %v1641, %v1445
        %v1738 = vmax.f32 %v1642, %v1446
        %v1739 = vmax.f32 %v1643, %v1447
        %v1740 = vmax.f32 %v1644, %v1448
        %v1741 = vmax.f32 %v1645, %v1449
        %v1742 = vmax.f32 %v1646, %v1450
        %v1743 = vmax.f32 %v1647, %v1451
        %v1744 = vmax.f32 %v1648, %v1452
        %v1745 = vmax.f32 %v1649, %v1453
        %v1746 = vmax.f32 %v1650, %v1454
        %v1747 = vmax.f32 %v1651, %v1455
        %v1748 = vmax.f32 %v1652, %v1456
        %v1749 = vmax.f32 %v1653, %v1457
        %v1750 = vmax.f32 %v1654, %v1458
        %v1751 = vmax.f32 %v1655, %v1459
        %v1752 = vmax.f32 %v1656, %v1368
        %v1753 = vmax.f32 %v1657, %v1369
        %v1754 = vmax.f32 %v1658, %v1370
        %v1755 = vmax.f32 %v1659, %v1371
        %v1756 = vmax.f32 %v1660, %v1372
        %v1757 = vmax.f32 %v1661, %v1373
        %v1758 = vmax.f32 %v1662, %v1374
        %v1759 = vmax.f32 %v1663, %v1375
        %v1760 = vmax.f32 %v1664, %v1376
        %v1761 = vmax.f32 %v1665, %v1377
        %v1762 = vmax.f32 %v1666, %v1378
        %v1763 = vmax.f32 %v1667, %v1379
        %v1764 = vmax.f32 %v1668, %v1380
        %v1765 = vmax.f32 %v1669, %v1381
        %v1766 = vmax.f32 %v1670, %v1382
        %v1767 = vmax.f32 %v1671, %v1383
        %v1768 = vmax.f32 %v1672, %v1384
        %v1769 = vmax.f32 %v1673, %v1385
        %v1770 = vmax.f32 %v1674, %v1386
        %v1771 = vmax.f32 %v1675, %v1387
        %v1772 = vmax.f32 %v1676, %v1388
        %v1773 = vmax.f32 %v1677, %v1389
        %v1774 = vmax.f32 %v1678, %v1390
        %v1775 = vmax.f32 %v1679, %v1391
        %v1776 = vmax.f32 %v1680, %v1392
        %v1777 = vmax.f32 %v1681, %v1393
        %v1778 = vmax.f32 %v1682, %v1394
        %v1779 = vmax.f32 %v1683, %v1395
        %v1780 = vmax.f32 %v1684, %v1396
        %v1781 = vmax.f32 %v1685, %v1397
        %v1782 = vmax.f32 %v1686, %v1398
        %v1783 = vmax.f32 %v1687, %v1399
        %v1784 = vmax.f32 %v1688, %v1400
        %v1785 = vmax.f32 %v1689, %v1401
        %v1786 = vmax.f32 %v1690, %v1402
        %v1787 = vmax.f32 %v1691, %v1403
        %v1788 = vmax.f32 %v1692, %v1404
        %v1789 = vmax.f32 %v1693, %v1405
        %v1790 = vmax.f32 %v1694, %v1406
        %v1791 = vmax.f32 %v1695, %v1407
        %v1792 = vmax.f32 %v1696, %v1408
        %v1793 = vmax.f32 %v1697, %v1409
        %v1794 = vmax.f32 %v1698, %v1410
        %v1795 = vmax.f32 %v1699, %v1411
        %v1796 = vmax.f32 %v1700, %v1412
        %v1797 = vmax.f32 %v1701, %v1413
        %v1798 = vmax.f32 %v1702, %v1414
        %v1799 = vmax.f32 %v1703, %v1415
        %v1800 = vmax.f32 %v1704, %v1416
        %v1801 = vmax.f32 %v1705, %v1417
        %v1802 = vmax.f32 %v1706, %v1418
        %v1803 = vmax.f32 %v1707, %v1419
        %v1804 = vmax.f32 %v1708, %v1420
        %v1805 = vmax.f32 %v1709, %v1421
        %v1806 = vmax.f32 %v1710, %v1422
        %v1807 = vmax.f32 %v1711, %v1423
        %v1808 = vmax.f32 %v1712, %v1424
        %v1809 = vmax.f32 %v1713, %v1425
        %v1810 = vmax.f32 %v1714, %v1426
        %v1811 = vmax.f32 %v1715, %v1427
        %v1812 = vmax.f32 %v1716, %v1428
        %v1813 = vmax.f32 %v1717, %v1429
        %v1814 = vmax.f32 %v1718, %v1430
        %v1815 = vmax.f32 %v1719, %v1431
        %v1816 = vmax.f32 %v1720, %v1432
        %v1817 = vmax.f32 %v1721, %v1433
        %v1818 = vmax.f32 %v1722, %v1434
        %v1819 = vmax.f32 %v1723, %v1435
        %v1820 = vmax.f32 %v1724, %v1436
        %v1821 = vmax.f32 %v1725, %v1437
        %v1822 = vmax.f32 %v1726, %v1438
        %v1823 = vmax.f32 %v1727, %v1439
        %v1824 = vmax.f32 %v1728, %v1440
        %v1825 = vmax.f32 %v1729, %v1441
        %v1826 = vmax.f32 %v1730, %v1442
        %v1827 = vmax.f32 %v1731, %v1443
        %v1828 = vmax.f32 %v1732, %v1444
        %v1829 = vmax.f32 %v1733, %v1445
        %v1830 = vmax.f32 %v1734, %v1446
        %v1831 = vmax.f32 %v1735, %v1447
        %v1832 = vmax.f32 %v1736, %v1448
        %v1833 = vmax.f32 %v1737, %v1449
        %v1834 = vmax.f32 %v1738, %v1450
        %v1835 = vmax.f32 %v1739, %v1451
        %v1836 = vmax.f32 %v1740, %v1452
        %v1837 = vmax.f32 %v1741, %v1453
        %v1838 = vmax.f32 %v1742, %v1454
        %v1839 = vmax.f32 %v1743, %v1455
        %v1840 = vmax.f32 %v1744, %v1456
        %v1841 = vmax.f32 %v1745, %v1457
        %v1842 = vmax.f32 %v1746, %v1458
        %v1843 = vmax.f32 %v1747, %v1459
        %v1844 = vmax.f32 %v1748, %v1460
        %v1845 = vmax.f32 %v1749, %v1461
        %v1846 = vmax.f32 %v1750, %v1462
        %v1847 = vmax.f32 %v1751, %v1463
        %vm1944 = vcmask 1046528
        %v1945 = vrot.slane %v1752, 1
        %v1946 = vrot.slane %v1753, 1
        %v1947 = vsel %vm1944, %v1945, %v1946
        %v1948 = vrot.slane %v1754, 1
        %v1949 = vsel %vm1944, %v1946, %v1948
        %v1950 = vrot.slane %v1755, 1
        %v1951 = vsel %vm1944, %v1948, %v1950
        %v1952 = vrot.slane %v1756, 1
        %v1953 = vrot.slane %v1757, 1
        %v1954 = vsel %vm1944, %v1952, %v1953
        %v1955 = vrot.slane %v1758, 1
        %v1956 = vsel %vm1944, %v1953, %v1955
        %v1957 = vrot.slane %v1759, 1
        %v1958 = vsel %vm1944, %v1955, %v1957
        %v1959 = vrot.slane %v1760, 1
        %v1960 = vrot.slane %v1761, 1
        %v1961 = vsel %vm1944, %v1959, %v1960
        %v1962 = vrot.slane %v1762, 1
        %v1963 = vsel %vm1944, %v1960, %v1962
        %v1964 = vrot.slane %v1763, 1
        %v1965 = vsel %vm1944, %v1962, %v1964
        %v1966 = vrot.slane %v1764, 1
        %v1967 = vrot.slane %v1765, 1
        %v1968 = vsel %vm1944, %v1966, %v1967
        %v1969 = vrot.slane %v1766, 1
        %v1970 = vsel %vm1944, %v1967, %v1969
        %v1971 = vrot.slane %v1767, 1
        %v1972 = vsel %vm1944, %v1969, %v1971
        %v1973 = vrot.slane %v1768, 1
        %v1974 = vrot.slane %v1769, 1
        %v1975 = vsel %vm1944, %v1973, %v1974
        %v1976 = vrot.slane %v1770, 1
        %v1977 = vsel %vm1944, %v1974, %v1976
        %v1978 = vrot.slane %v1771, 1
        %v1979 = vsel %vm1944, %v1976, %v1978
        %v1980 = vrot.slane %v1772, 1
        %v1981 = vrot.slane %v1773, 1
        %v1982 = vsel %vm1944, %v1980, %v1981
        %v1983 = vrot.slane %v1774, 1
        %v1984 = vsel %vm1944, %v1981, %v1983
        %v1985 = vrot.slane %v1775, 1
        %v1986 = vsel %vm1944, %v1983, %v1985
        %v1987 = vrot.slane %v1776, 1
        %v1988 = vrot.slane %v1777, 1
        %v1989 = vsel %vm1944, %v1987, %v1988
        %v1990 = vrot.slane %v1778, 1
        %v1991 = vsel %vm1944, %v1988, %v1990
        %v1992 = vrot.slane %v1779, 1
        %v1993 = vsel %vm1944, %v1990, %v1992
        %v1994 = vrot.slane %v1780, 1
        %v1995 = vrot.slane %v1781, 1
        %v1996 = vsel %vm1944, %v1994, %v1995
        %v1997 = vrot.slane %v1782, 1
        %v1998 = vsel %vm1944, %v1995, %v1997
        %v1999 = vrot.slane %v1783, 1
        %v2000 = vsel %vm1944, %v1997, %v1999
        %v2001 = vrot.slane %v1784, 1
        %v2002 = vrot.slane %v1785, 1
        %v2003 = vsel %vm1944, %v2001, %v2002
        %v2004 = vrot.slane %v1786, 1
        %v2005 = vsel %vm1944, %v2002, %v2004
        %v2006 = vrot.slane %v1787, 1
        %v2007 = vsel %vm1944, %v2004, %v2006
        %v2008 = vrot.slane %v1788, 1
        %v2009 = vrot.slane %v1789, 1
        %v2010 = vsel %vm1944, %v2008, %v2009
        %v2011 = vrot.slane %v1790, 1
        %v2012 = vsel %vm1944, %v2009, %v2011
        %v2013 = vrot.slane %v1791, 1
        %v2014 = vsel %vm1944, %v2011, %v2013
        %v2015 = vrot.slane %v1792, 1
        %v2016 = vrot.slane %v1793, 1
        %v2017 = vsel %vm1944, %v2015, %v2016
        %v2018 = vrot.slane %v1794, 1
        %v2019 = vsel %vm1944, %v2016, %v2018
        %v2020 = vrot.slane %v1795, 1
        %v2021 = vsel %vm1944, %v2018, %v2020
        %v2022 = vrot.slane %v1796, 1
        %v2023 = vrot.slane %v1797, 1
        %v2024 = vsel %vm1944, %v2022, %v2023
        %v2025 = vrot.slane %v1798, 1
        %v2026 = vsel %vm1944, %v2023, %v2025
        %v2027 = vrot.slane %v1799, 1
        %v2028 = vsel %vm1944, %v2025, %v2027
        %v2029 = vrot.slane %v1800, 1
        %v2030 = vrot.slane %v1801, 1
        %v2031 = vsel %vm1944, %v2029, %v2030
        %v2032 = vrot.slane %v1802, 1
        %v2033 = vsel %vm1944, %v2030, %v2032
        %v2034 = vrot.slane %v1803, 1
        %v2035 = vsel %vm1944, %v2032, %v2034
        %v2036 = vrot.slane %v1804, 1
        %v2037 = vrot.slane %v1805, 1
        %v2038 = vsel %vm1944, %v2036, %v2037
        %v2039 = vrot.slane %v1806, 1
        %v2040 = vsel %vm1944, %v2037, %v2039
        %v2041 = vrot.slane %v1807, 1
        %v2042 = vsel %vm1944, %v2039, %v2041
        %v2043 = vrot.slane %v1808, 1
        %v2044 = vrot.slane %v1809, 1
        %v2045 = vsel %vm1944, %v2043, %v2044
        %v2046 = vrot.slane %v1810, 1
        %v2047 = vsel %vm1944, %v2044, %v2046
        %v2048 = vrot.slane %v1811, 1
        %v2049 = vsel %vm1944, %v2046, %v2048
        %v2050 = vrot.slane %v1812, 1
        %v2051 = vrot.slane %v1813, 1
        %v2052 = vsel %vm1944, %v2050, %v2051
        %v2053 = vrot.slane %v1814, 1
        %v2054 = vsel %vm1944, %v2051, %v2053
        %v2055 = vrot.slane %v1815, 1
        %v2056 = vsel %vm1944, %v2053, %v2055
        %v2057 = vrot.slane %v1816, 1
        %v2058 = vrot.slane %v1817, 1
        %v2059 = vsel %vm1944, %v2057, %v2058
        %v2060 = vrot.slane %v1818, 1
        %v2061 = vsel %vm1944, %v2058, %v2060
        %v2062 = vrot.slane %v1819, 1
        %v2063 = vsel %vm1944, %v2060, %v2062
        %v2064 = vrot.slane %v1820, 1
        %v2065 = vrot.slane %v1821, 1
        %v2066 = vsel %vm1944, %v2064, %v2065
        %v2067 = vrot.slane %v1822, 1
        %v2068 = vsel %vm1944, %v2065, %v2067
        %v2069 = vrot.slane %v1823, 1
        %v2070 = vsel %vm1944, %v2067, %v2069
        %v2071 = vrot.slane %v1824, 1
        %v2072 = vrot.slane %v1825, 1
        %v2073 = vsel %vm1944, %v2071, %v2072
        %v2074 = vrot.slane %v1826, 1
        %v2075 = vsel %vm1944, %v2072, %v2074
        %v2076 = vrot.slane %v1827, 1
        %v2077 = vsel %vm1944, %v2074, %v2076
        %v2078 = vrot.slane %v1828, 1
        %v2079 = vrot.slane %v1829, 1
        %v2080 = vsel %vm1944, %v2078, %v2079
        %v2081 = vrot.slane %v1830, 1
        %v2082 = vsel %vm1944, %v2079, %v2081
        %v2083 = vrot.slane %v1831, 1
        %v2084 = vsel %vm1944, %v2081, %v2083
        %v2085 = vrot.slane %v1832, 1
        %v2086 = vrot.slane %v1833, 1
        %v2087 = vsel %vm1944, %v2085, %v2086
        %v2088 = vrot.slane %v1834, 1
        %v2089 = vsel %vm1944, %v2086, %v2088
        %v2090 = vrot.slane %v1835, 1
        %v2091 = vsel %vm1944, %v2088, %v2090
        %v2092 = vrot.slane %v1836, 1
        %v2093 = vrot.slane %v1837, 1
        %v2094 = vsel %vm1944, %v2092, %v2093
        %v2095 = vrot.slane %v1838, 1
        %v2096 = vsel %vm1944, %v2093, %v2095
        %v2097 = vrot.slane %v1839, 1
        %v2098 = vsel %vm1944, %v2095, %v2097
        %v2099 = vrot.slane %v1840, 1
        %v2100 = vrot.slane %v1841, 1
        %v2101 = vsel %vm1944, %v2099, %v2100
        %v2102 = vrot.slane %v1842, 1
        %v2103 = vsel %vm1944, %v2100, %v2102
        %v2104 = vrot.slane %v1843, 1
        %v2105 = vsel %vm1944, %v2102, %v2104
        %v2106 = vrot.slane %v1844, 1
        %v2107 = vrot.slane %v1845, 1
        %v2108 = vsel %vm1944, %v2106, %v2107
        %v2109 = vrot.slane %v1846, 1
        %v2110 = vsel %vm1944, %v2107, %v2109
        %v2111 = vrot.slane %v1847, 1
        %v2112 = vsel %vm1944, %v2109, %v2111
        %v2185 = vmax.f32 %v1752, %v1947
        %v2186 = vmax.f32 %v1753, %v1949
        %v2187 = vmax.f32 %v1754, %v1951
        %v2188 = vmax.f32 %v1756, %v1954
        %v2189 = vmax.f32 %v1757, %v1956
        %v2190 = vmax.f32 %v1758, %v1958
        %v2191 = vmax.f32 %v1760, %v1961
        %v2192 = vmax.f32 %v1761, %v1963
        %v2193 = vmax.f32 %v1762, %v1965
        %v2194 = vmax.f32 %v1764, %v1968
        %v2195 = vmax.f32 %v1765, %v1970
        %v2196 = vmax.f32 %v1766, %v1972
        %v2197 = vmax.f32 %v1768, %v1975
        %v2198 = vmax.f32 %v1769, %v1977
        %v2199 = vmax.f32 %v1770, %v1979
        %v2200 = vmax.f32 %v1772, %v1982
        %v2201 = vmax.f32 %v1773, %v1984
        %v2202 = vmax.f32 %v1774, %v1986
        %v2203 = vmax.f32 %v1776, %v1989
        %v2204 = vmax.f32 %v1777, %v1991
        %v2205 = vmax.f32 %v1778, %v1993
        %v2206 = vmax.f32 %v1780, %v1996
        %v2207 = vmax.f32 %v1781, %v1998
        %v2208 = vmax.f32 %v1782, %v2000
        %v2209 = vmax.f32 %v1784, %v2003
        %v2210 = vmax.f32 %v1785, %v2005
        %v2211 = vmax.f32 %v1786, %v2007
        %v2212 = vmax.f32 %v1788, %v2010
        %v2213 = vmax.f32 %v1789, %v2012
        %v2214 = vmax.f32 %v1790, %v2014
        %v2215 = vmax.f32 %v1792, %v2017
        %v2216 = vmax.f32 %v1793, %v2019
        %v2217 = vmax.f32 %v1794, %v2021
        %v2218 = vmax.f32 %v1796, %v2024
        %v2219 = vmax.f32 %v1797, %v2026
        %v2220 = vmax.f32 %v1798, %v2028
        %v2221 = vmax.f32 %v1800, %v2031
        %v2222 = vmax.f32 %v1801, %v2033
        %v2223 = vmax.f32 %v1802, %v2035
        %v2224 = vmax.f32 %v1804, %v2038
        %v2225 = vmax.f32 %v1805, %v2040
        %v2226 = vmax.f32 %v1806, %v2042
        %v2227 = vmax.f32 %v1808, %v2045
        %v2228 = vmax.f32 %v1809, %v2047
        %v2229 = vmax.f32 %v1810, %v2049
        %v2230 = vmax.f32 %v1812, %v2052
        %v2231 = vmax.f32 %v1813, %v2054
        %v2232 = vmax.f32 %v1814, %v2056
        %v2233 = vmax.f32 %v1816, %v2059
        %v2234 = vmax.f32 %v1817, %v2061
        %v2235 = vmax.f32 %v1818, %v2063
        %v2236 = vmax.f32 %v1820, %v2066
        %v2237 = vmax.f32 %v1821, %v2068
        %v2238 = vmax.f32 %v1822, %v2070
        %v2239 = vmax.f32 %v1824, %v2073
        %v2240 = vmax.f32 %v1825, %v2075
        %v2241 = vmax.f32 %v1826, %v2077
        %v2242 = vmax.f32 %v1828, %v2080
        %v2243 = vmax.f32 %v1829, %v2082
        %v2244 = vmax.f32 %v1830, %v2084
        %v2245 = vmax.f32 %v1832, %v2087
        %v2246 = vmax.f32 %v1833, %v2089
        %v2247 = vmax.f32 %v1834, %v2091
        %v2248 = vmax.f32 %v1836, %v2094
        %v2249 = vmax.f32 %v1837, %v2096
        %v2250 = vmax.f32 %v1838, %v2098
        %v2251 = vmax.f32 %v1840, %v2101
        %v2252 = vmax.f32 %v1841, %v2103
        %v2253 = vmax.f32 %v1842, %v2105
        %v2254 = vmax.f32 %v1844, %v2108
        %v2255 = vmax.f32 %v1845, %v2110
        %v2256 = vmax.f32 %v1846, %v2112
        %vm2257 = vcmask 1045504
        %v2258 = vrot.slane %v1752, 2
        %v2259 = vrot.slane %v1753, 2
        %v2260 = vsel %vm2257, %v2258, %v2259
        %v2261 = vrot.slane %v1754, 2
        %v2262 = vsel %vm2257, %v2259, %v2261
        %v2263 = vrot.slane %v1755, 2
        %v2264 = vsel %vm2257, %v2261, %v2263
        %v2265 = vrot.slane %v1756, 2
        %v2266 = vrot.slane %v1757, 2
        %v2267 = vsel %vm2257, %v2265, %v2266
        %v2268 = vrot.slane %v1758, 2
        %v2269 = vsel %vm2257, %v2266, %v2268
        %v2270 = vrot.slane %v1759, 2
        %v2271 = vsel %vm2257, %v2268, %v2270
        %v2272 = vrot.slane %v1760, 2
        %v2273 = vrot.slane %v1761, 2
        %v2274 = vsel %vm2257, %v2272, %v2273
        %v2275 = vrot.slane %v1762, 2
        %v2276 = vsel %vm2257, %v2273, %v2275
        %v2277 = vrot.slane %v1763, 2
        %v2278 = vsel %vm2257, %v2275, %v2277
        %v2279 = vrot.slane %v1764, 2
        %v2280 = vrot.slane %v1765, 2
        %v2281 = vsel %vm2257, %v2279, %v2280
        %v2282 = vrot.slane %v1766, 2
        %v2283 = vsel %vm2257, %v2280, %v2282
        %v2284 = vrot.slane %v1767, 2
        %v2285 = vsel %vm2257, %v2282, %v2284
        %v2286 = vrot.slane %v1768, 2
        %v2287 = vrot.slane %v1769, 2
        %v2288 = vsel %vm2257, %v2286, %v2287
        %v2289 = vrot.slane %v1770, 2
        %v2290 = vsel %vm2257, %v2287, %v2289
        %v2291 = vrot.slane %v1771, 2
        %v2292 = vsel %vm2257, %v2289, %v2291
        %v2293 = vrot.slane %v1772, 2
        %v2294 = vrot.slane %v1773, 2
        %v2295 = vsel %vm2257, %v2293, %v2294
        %v2296 = vrot.slane %v1774, 2
        %v2297 = vsel %vm2257, %v2294, %v2296
        %v2298 = vrot.slane %v1775, 2
        %v2299 = vsel %vm2257, %v2296, %v2298
        %v2300 = vrot.slane %v1776, 2
        %v2301 = vrot.slane %v1777, 2
        %v2302 = vsel %vm2257, %v2300, %v2301
        %v2303 = vrot.slane %v1778, 2
        %v2304 = vsel %vm2257, %v2301, %v2303
        %v2305 = vrot.slane %v1779, 2
        %v2306 = vsel %vm2257, %v2303, %v2305
        %v2307 = vrot.slane %v1780, 2
        %v2308 = vrot.slane %v1781, 2
        %v2309 = vsel %vm2257, %v2307, %v2308
        %v2310 = vrot.slane %v1782, 2
        %v2311 = vsel %vm2257, %v2308, %v2310
        %v2312 = vrot.slane %v1783, 2
        %v2313 = vsel %vm2257, %v2310, %v2312
        %v2314 = vrot.slane %v1784, 2
        %v2315 = vrot.slane %v1785, 2
        %v2316 = vsel %vm2257, %v2314, %v2315
        %v2317 = vrot.slane %v1786, 2
        %v2318 = vsel %vm2257, %v2315, %v2317
        %v2319 = vrot.slane %v1787, 2
        %v2320 = vsel %vm2257, %v2317, %v2319
        %v2321 = vrot.slane %v1788, 2
        %v2322 = vrot.slane %v1789, 2
        %v2323 = vsel %vm2257, %v2321, %v2322
        %v2324 = vrot.slane %v1790, 2
        %v2325 = vsel %vm2257, %v2322, %v2324
        %v2326 = vrot.slane %v1791, 2
        %v2327 = vsel %vm2257, %v2324, %v2326
        %v2328 = vrot.slane %v1792, 2
        %v2329 = vrot.slane %v1793, 2
        %v2330 = vsel %vm2257, %v2328, %v2329
        %v2331 = vrot.slane %v1794, 2
        %v2332 = vsel %vm2257, %v2329, %v2331
        %v2333 = vrot.slane %v1795, 2
        %v2334 = vsel %vm2257, %v2331, %v2333
        %v2335 = vrot.slane %v1796, 2
        %v2336 = vrot.slane %v1797, 2
        %v2337 = vsel %vm2257, %v2335, %v2336
        %v2338 = vrot.slane %v1798, 2
        %v2339 = vsel %vm2257, %v2336, %v2338
        %v2340 = vrot.slane %v1799, 2
        %v2341 = vsel %vm2257, %v2338, %v2340
        %v2342 = vrot.slane %v1800, 2
        %v2343 = vrot.slane %v1801, 2
        %v2344 = vsel %vm2257, %v2342, %v2343
        %v2345 = vrot.slane %v1802, 2
        %v2346 = vsel %vm2257, %v2343, %v2345
        %v2347 = vrot.slane %v1803, 2
        %v2348 = vsel %vm2257, %v2345, %v2347
        %v2349 = vrot.slane %v1804, 2
        %v2350 = vrot.slane %v1805, 2
        %v2351 = vsel %vm2257, %v2349, %v2350
        %v2352 = vrot.slane %v1806, 2
        %v2353 = vsel %vm2257, %v2350, %v2352
        %v2354 = vrot.slane %v1807, 2
        %v2355 = vsel %vm2257, %v2352, %v2354
        %v2356 = vrot.slane %v1808, 2
        %v2357 = vrot.slane %v1809, 2
        %v2358 = vsel %vm2257, %v2356, %v2357
        %v2359 = vrot.slane %v1810, 2
        %v2360 = vsel %vm2257, %v2357, %v2359
        %v2361 = vrot.slane %v1811, 2
        %v2362 = vsel %vm2257, %v2359, %v2361
        %v2363 = vrot.slane %v1812, 2
        %v2364 = vrot.slane %v1813, 2
        %v2365 = vsel %vm2257, %v2363, %v2364
        %v2366 = vrot.slane %v1814, 2
        %v2367 = vsel %vm2257, %v2364, %v2366
        %v2368 = vrot.slane %v1815, 2
        %v2369 = vsel %vm2257, %v2366, %v2368
        %v2370 = vrot.slane %v1816, 2
        %v2371 = vrot.slane %v1817, 2
        %v2372 = vsel %vm2257, %v2370, %v2371
        %v2373 = vrot.slane %v1818, 2
        %v2374 = vsel %vm2257, %v2371, %v2373
        %v2375 = vrot.slane %v1819, 2
        %v2376 = vsel %vm2257, %v2373, %v2375
        %v2377 = vrot.slane %v1820, 2
        %v2378 = vrot.slane %v1821, 2
        %v2379 = vsel %vm2257, %v2377, %v2378
        %v2380 = vrot.slane %v1822, 2
        %v2381 = vsel %vm2257, %v2378, %v2380
        %v2382 = vrot.slane %v1823, 2
        %v2383 = vsel %vm2257, %v2380, %v2382
        %v2384 = vrot.slane %v1824, 2
        %v2385 = vrot.slane %v1825, 2
        %v2386 = vsel %vm2257, %v2384, %v2385
        %v2387 = vrot.slane %v1826, 2
        %v2388 = vsel %vm2257, %v2385, %v2387
        %v2389 = vrot.slane %v1827, 2
        %v2390 = vsel %vm2257, %v2387, %v2389
        %v2391 = vrot.slane %v1828, 2
        %v2392 = vrot.slane %v1829, 2
        %v2393 = vsel %vm2257, %v2391, %v2392
        %v2394 = vrot.slane %v1830, 2
        %v2395 = vsel %vm2257, %v2392, %v2394
        %v2396 = vrot.slane %v1831, 2
        %v2397 = vsel %vm2257, %v2394, %v2396
        %v2398 = vrot.slane %v1832, 2
        %v2399 = vrot.slane %v1833, 2
        %v2400 = vsel %vm2257, %v2398, %v2399
        %v2401 = vrot.slane %v1834, 2
        %v2402 = vsel %vm2257, %v2399, %v2401
        %v2403 = vrot.slane %v1835, 2
        %v2404 = vsel %vm2257, %v2401, %v2403
        %v2405 = vrot.slane %v1836, 2
        %v2406 = vrot.slane %v1837, 2
        %v2407 = vsel %vm2257, %v2405, %v2406
        %v2408 = vrot.slane %v1838, 2
        %v2409 = vsel %vm2257, %v2406, %v2408
        %v2410 = vrot.slane %v1839, 2
        %v2411 = vsel %vm2257, %v2408, %v2410
        %v2412 = vrot.slane %v1840, 2
        %v2413 = vrot.slane %v1841, 2
        %v2414 = vsel %vm2257, %v2412, %v2413
        %v2415 = vrot.slane %v1842, 2
        %v2416 = vsel %vm2257, %v2413, %v2415
        %v2417 = vrot.slane %v1843, 2
        %v2418 = vsel %vm2257, %v2415, %v2417
        %v2419 = vrot.slane %v1844, 2
        %v2420 = vrot.slane %v1845, 2
        %v2421 = vsel %vm2257, %v2419, %v2420
        %v2422 = vrot.slane %v1846, 2
        %v2423 = vsel %vm2257, %v2420, %v2422
        %v2424 = vrot.slane %v1847, 2
        %v2425 = vsel %vm2257, %v2422, %v2424
        %v2498 = vmax.f32 %v2185, %v2260
        %v2499 = vmax.f32 %v2186, %v2262
        %v2500 = vmax.f32 %v2187, %v2264
        %v2501 = vmax.f32 %v2188, %v2267
        %v2502 = vmax.f32 %v2189, %v2269
        %v2503 = vmax.f32 %v2190, %v2271
        %v2504 = vmax.f32 %v2191, %v2274
        %v2505 = vmax.f32 %v2192, %v2276
        %v2506 = vmax.f32 %v2193, %v2278
        %v2507 = vmax.f32 %v2194, %v2281
        %v2508 = vmax.f32 %v2195, %v2283
        %v2509 = vmax.f32 %v2196, %v2285
        %v2510 = vmax.f32 %v2197, %v2288
        %v2511 = vmax.f32 %v2198, %v2290
        %v2512 = vmax.f32 %v2199, %v2292
        %v2513 = vmax.f32 %v2200, %v2295
        %v2514 = vmax.f32 %v2201, %v2297
        %v2515 = vmax.f32 %v2202, %v2299
        %v2516 = vmax.f32 %v2203, %v2302
        %v2517 = vmax.f32 %v2204, %v2304
        %v2518 = vmax.f32 %v2205, %v2306
        %v2519 = vmax.f32 %v2206, %v2309
        %v2520 = vmax.f32 %v2207, %v2311
        %v2521 = vmax.f32 %v2208, %v2313
        %v2522 = vmax.f32 %v2209, %v2316
        %v2523 = vmax.f32 %v2210, %v2318
        %v2524 = vmax.f32 %v2211, %v2320
        %v2525 = vmax.f32 %v2212, %v2323
        %v2526 = vmax.f32 %v2213, %v2325
        %v2527 = vmax.f32 %v2214, %v2327
        %v2528 = vmax.f32 %v2215, %v2330
        %v2529 = vmax.f32 %v2216, %v2332
        %v2530 = vmax.f32 %v2217, %v2334
        %v2531 = vmax.f32 %v2218, %v2337
        %v2532 = vmax.f32 %v2219, %v2339
        %v2533 = vmax.f32 %v2220, %v2341
        %v2534 = vmax.f32 %v2221, %v2344
        %v2535 = vmax.f32 %v2222, %v2346
        %v2536 = vmax.f32 %v2223, %v2348
        %v2537 = vmax.f32 %v2224, %v2351
        %v2538 = vmax.f32 %v2225, %v2353
        %v2539 = vmax.f32 %v2226, %v2355
        %v2540 = vmax.f32 %v2227, %v2358
        %v2541 = vmax.f32 %v2228, %v2360
        %v2542 = vmax.f32 %v2229, %v2362
        %v2543 = vmax.f32 %v2230, %v2365
        %v2544 = vmax.f32 %v2231, %v2367
        %v2545 = vmax.f32 %v2232, %v2369
        %v2546 = vmax.f32 %v2233, %v2372
        %v2547 = vmax.f32 %v2234, %v2374
        %v2548 = vmax.f32 %v2235, %v2376
        %v2549 = vmax.f32 %v2236, %v2379
        %v2550 = vmax.f32 %v2237, %v2381
        %v2551 = vmax.f32 %v2238, %v2383
        %v2552 = vmax.f32 %v2239, %v2386
        %v2553 = vmax.f32 %v2240, %v2388
        %v2554 = vmax.f32 %v2241, %v2390
        %v2555 = vmax.f32 %v2242, %v2393
        %v2556 = vmax.f32 %v2243, %v2395
        %v2557 = vmax.f32 %v2244, %v2397
        %v2558 = vmax.f32 %v2245, %v2400
        %v2559 = vmax.f32 %v2246, %v2402
        %v2560 = vmax.f32 %v2247, %v2404
        %v2561 = vmax.f32 %v2248, %v2407
        %v2562 = vmax.f32 %v2249, %v2409
        %v2563 = vmax.f32 %v2250, %v2411
        %v2564 = vmax.f32 %v2251, %v2414
        %v2565 = vmax.f32 %v2252, %v2416
        %v2566 = vmax.f32 %v2253, %v2418
        %v2567 = vmax.f32 %v2254, %v2421
        %v2568 = vmax.f32 %v2255, %v2423
        %v2569 = vmax.f32 %v2256, %v2425
        %vm2570 = vcmask 1044480
        %v2571 = vrot.slane %v1752, 3
        %v2572 = vrot.slane %v1753, 3
        %v2573 = vsel %vm2570, %v2571, %v2572
        %v2574 = vrot.slane %v1754, 3
        %v2575 = vsel %vm2570, %v2572, %v2574
        %v2576 = vrot.slane %v1755, 3
        %v2577 = vsel %vm2570, %v2574, %v2576
        %v2578 = vrot.slane %v1756, 3
        %v2579 = vrot.slane %v1757, 3
        %v2580 = vsel %vm2570, %v2578, %v2579
        %v2581 = vrot.slane %v1758, 3
        %v2582 = vsel %vm2570, %v2579, %v2581
        %v2583 = vrot.slane %v1759, 3
        %v2584 = vsel %vm2570, %v2581, %v2583
        %v2585 = vrot.slane %v1760, 3
        %v2586 = vrot.slane %v1761, 3
        %v2587 = vsel %vm2570, %v2585, %v2586
        %v2588 = vrot.slane %v1762, 3
        %v2589 = vsel %vm2570, %v2586, %v2588
        %v2590 = vrot.slane %v1763, 3
        %v2591 = vsel %vm2570, %v2588, %v2590
        %v2592 = vrot.slane %v1764, 3
        %v2593 = vrot.slane %v1765, 3
        %v2594 = vsel %vm2570, %v2592, %v2593
        %v2595 = vrot.slane %v1766, 3
        %v2596 = vsel %vm2570, %v2593, %v2595
        %v2597 = vrot.slane %v1767, 3
        %v2598 = vsel %vm2570, %v2595, %v2597
        %v2599 = vrot.slane %v1768, 3
        %v2600 = vrot.slane %v1769, 3
        %v2601 = vsel %vm2570, %v2599, %v2600
        %v2602 = vrot.slane %v1770, 3
        %v2603 = vsel %vm2570, %v2600, %v2602
        %v2604 = vrot.slane %v1771, 3
        %v2605 = vsel %vm2570, %v2602, %v2604
        %v2606 = vrot.slane %v1772, 3
        %v2607 = vrot.slane %v1773, 3
        %v2608 = vsel %vm2570, %v2606, %v2607
        %v2609 = vrot.slane %v1774, 3
        %v2610 = vsel %vm2570, %v2607, %v2609
        %v2611 = vrot.slane %v1775, 3
        %v2612 = vsel %vm2570, %v2609, %v2611
        %v2613 = vrot.slane %v1776, 3
        %v2614 = vrot.slane %v1777, 3
        %v2615 = vsel %vm2570, %v2613, %v2614
        %v2616 = vrot.slane %v1778, 3
        %v2617 = vsel %vm2570, %v2614, %v2616
        %v2618 = vrot.slane %v1779, 3
        %v2619 = vsel %vm2570, %v2616, %v2618
        %v2620 = vrot.slane %v1780, 3
        %v2621 = vrot.slane %v1781, 3
        %v2622 = vsel %vm2570, %v2620, %v2621
        %v2623 = vrot.slane %v1782, 3
        %v2624 = vsel %vm2570, %v2621, %v2623
        %v2625 = vrot.slane %v1783, 3
        %v2626 = vsel %vm2570, %v2623, %v2625
        %v2627 = vrot.slane %v1784, 3
        %v2628 = vrot.slane %v1785, 3
        %v2629 = vsel %vm2570, %v2627, %v2628
        %v2630 = vrot.slane %v1786, 3
        %v2631 = vsel %vm2570, %v2628, %v2630
        %v2632 = vrot.slane %v1787, 3
        %v2633 = vsel %vm2570, %v2630, %v2632
        %v2634 = vrot.slane %v1788, 3
        %v2635 = vrot.slane %v1789, 3
        %v2636 = vsel %vm2570, %v2634, %v2635
        %v2637 = vrot.slane %v1790, 3
        %v2638 = vsel %vm2570, %v2635, %v2637
        %v2639 = vrot.slane %v1791, 3
        %v2640 = vsel %vm2570, %v2637, %v2639
        %v2641 = vrot.slane %v1792, 3
        %v2642 = vrot.slane %v1793, 3
        %v2643 = vsel %vm2570, %v2641, %v2642
        %v2644 = vrot.slane %v1794, 3
        %v2645 = vsel %vm2570, %v2642, %v2644
        %v2646 = vrot.slane %v1795, 3
        %v2647 = vsel %vm2570, %v2644, %v2646
        %v2648 = vrot.slane %v1796, 3
        %v2649 = vrot.slane %v1797, 3
        %v2650 = vsel %vm2570, %v2648, %v2649
        %v2651 = vrot.slane %v1798, 3
        %v2652 = vsel %vm2570, %v2649, %v2651
        %v2653 = vrot.slane %v1799, 3
        %v2654 = vsel %vm2570, %v2651, %v2653
        %v2655 = vrot.slane %v1800, 3
        %v2656 = vrot.slane %v1801, 3
        %v2657 = vsel %vm2570, %v2655, %v2656
        %v2658 = vrot.slane %v1802, 3
        %v2659 = vsel %vm2570, %v2656, %v2658
        %v2660 = vrot.slane %v1803, 3
        %v2661 = vsel %vm2570, %v2658, %v2660
        %v2662 = vrot.slane %v1804, 3
        %v2663 = vrot.slane %v1805, 3
        %v2664 = vsel %vm2570, %v2662, %v2663
        %v2665 = vrot.slane %v1806, 3
        %v2666 = vsel %vm2570, %v2663, %v2665
        %v2667 = vrot.slane %v1807, 3
        %v2668 = vsel %vm2570, %v2665, %v2667
        %v2669 = vrot.slane %v1808, 3
        %v2670 = vrot.slane %v1809, 3
        %v2671 = vsel %vm2570, %v2669, %v2670
        %v2672 = vrot.slane %v1810, 3
        %v2673 = vsel %vm2570, %v2670, %v2672
        %v2674 = vrot.slane %v1811, 3
        %v2675 = vsel %vm2570, %v2672, %v2674
        %v2676 = vrot.slane %v1812, 3
        %v2677 = vrot.slane %v1813, 3
        %v2678 = vsel %vm2570, %v2676, %v2677
        %v2679 = vrot.slane %v1814, 3
        %v2680 = vsel %vm2570, %v2677, %v2679
        %v2681 = vrot.slane %v1815, 3
        %v2682 = vsel %vm2570, %v2679, %v2681
        %v2683 = vrot.slane %v1816, 3
        %v2684 = vrot.slane %v1817, 3
        %v2685 = vsel %vm2570, %v2683, %v2684
        %v2686 = vrot.slane %v1818, 3
        %v2687 = vsel %vm2570, %v2684, %v2686
        %v2688 = vrot.slane %v1819, 3
        %v2689 = vsel %vm2570, %v2686, %v2688
        %v2690 = vrot.slane %v1820, 3
        %v2691 = vrot.slane %v1821, 3
        %v2692 = vsel %vm2570, %v2690, %v2691
        %v2693 = vrot.slane %v1822, 3
        %v2694 = vsel %vm2570, %v2691, %v2693
        %v2695 = vrot.slane %v1823, 3
        %v2696 = vsel %vm2570, %v2693, %v2695
        %v2697 = vrot.slane %v1824, 3
        %v2698 = vrot.slane %v1825, 3
        %v2699 = vsel %vm2570, %v2697, %v2698
        %v2700 = vrot.slane %v1826, 3
        %v2701 = vsel %vm2570, %v2698, %v2700
        %v2702 = vrot.slane %v1827, 3
        %v2703 = vsel %vm2570, %v2700, %v2702
        %v2704 = vrot.slane %v1828, 3
        %v2705 = vrot.slane %v1829, 3
        %v2706 = vsel %vm2570, %v2704, %v2705
        %v2707 = vrot.slane %v1830, 3
        %v2708 = vsel %vm2570, %v2705, %v2707
        %v2709 = vrot.slane %v1831, 3
        %v2710 = vsel %vm2570, %v2707, %v2709
        %v2711 = vrot.slane %v1832, 3
        %v2712 = vrot.slane %v1833, 3
        %v2713 = vsel %vm2570, %v2711, %v2712
        %v2714 = vrot.slane %v1834, 3
        %v2715 = vsel %vm2570, %v2712, %v2714
        %v2716 = vrot.slane %v1835, 3
        %v2717 = vsel %vm2570, %v2714, %v2716
        %v2718 = vrot.slane %v1836, 3
        %v2719 = vrot.slane %v1837, 3
        %v2720 = vsel %vm2570, %v2718, %v2719
        %v2721 = vrot.slane %v1838, 3
        %v2722 = vsel %vm2570, %v2719, %v2721
        %v2723 = vrot.slane %v1839, 3
        %v2724 = vsel %vm2570, %v2721, %v2723
        %v2725 = vrot.slane %v1840, 3
        %v2726 = vrot.slane %v1841, 3
        %v2727 = vsel %vm2570, %v2725, %v2726
        %v2728 = vrot.slane %v1842, 3
        %v2729 = vsel %vm2570, %v2726, %v2728
        %v2730 = vrot.slane %v1843, 3
        %v2731 = vsel %vm2570, %v2728, %v2730
        %v2732 = vrot.slane %v1844, 3
        %v2733 = vrot.slane %v1845, 3
        %v2734 = vsel %vm2570, %v2732, %v2733
        %v2735 = vrot.slane %v1846, 3
        %v2736 = vsel %vm2570, %v2733, %v2735
        %v2737 = vrot.slane %v1847, 3
        %v2738 = vsel %vm2570, %v2735, %v2737
        %v2811 = vmax.f32 %v2498, %v2573
        %v2812 = vmax.f32 %v2499, %v2575
        %v2813 = vmax.f32 %v2500, %v2577
        %v2814 = vmax.f32 %v2501, %v2580
        %v2815 = vmax.f32 %v2502, %v2582
        %v2816 = vmax.f32 %v2503, %v2584
        %v2817 = vmax.f32 %v2504, %v2587
        %v2818 = vmax.f32 %v2505, %v2589
        %v2819 = vmax.f32 %v2506, %v2591
        %v2820 = vmax.f32 %v2507, %v2594
        %v2821 = vmax.f32 %v2508, %v2596
        %v2822 = vmax.f32 %v2509, %v2598
        %v2823 = vmax.f32 %v2510, %v2601
        %v2824 = vmax.f32 %v2511, %v2603
        %v2825 = vmax.f32 %v2512, %v2605
        %v2826 = vmax.f32 %v2513, %v2608
        %v2827 = vmax.f32 %v2514, %v2610
        %v2828 = vmax.f32 %v2515, %v2612
        %v2829 = vmax.f32 %v2516, %v2615
        %v2830 = vmax.f32 %v2517, %v2617
        %v2831 = vmax.f32 %v2518, %v2619
        %v2832 = vmax.f32 %v2519, %v2622
        %v2833 = vmax.f32 %v2520, %v2624
        %v2834 = vmax.f32 %v2521, %v2626
        %v2835 = vmax.f32 %v2522, %v2629
        %v2836 = vmax.f32 %v2523, %v2631
        %v2837 = vmax.f32 %v2524, %v2633
        %v2838 = vmax.f32 %v2525, %v2636
        %v2839 = vmax.f32 %v2526, %v2638
        %v2840 = vmax.f32 %v2527, %v2640
        %v2841 = vmax.f32 %v2528, %v2643
        %v2842 = vmax.f32 %v2529, %v2645
        %v2843 = vmax.f32 %v2530, %v2647
        %v2844 = vmax.f32 %v2531, %v2650
        %v2845 = vmax.f32 %v2532, %v2652
        %v2846 = vmax.f32 %v2533, %v2654
        %v2847 = vmax.f32 %v2534, %v2657
        %v2848 = vmax.f32 %v2535, %v2659
        %v2849 = vmax.f32 %v2536, %v2661
        %v2850 = vmax.f32 %v2537, %v2664
        %v2851 = vmax.f32 %v2538, %v2666
        %v2852 = vmax.f32 %v2539, %v2668
        %v2853 = vmax.f32 %v2540, %v2671
        %v2854 = vmax.f32 %v2541, %v2673
        %v2855 = vmax.f32 %v2542, %v2675
        %v2856 = vmax.f32 %v2543, %v2678
        %v2857 = vmax.f32 %v2544, %v2680
        %v2858 = vmax.f32 %v2545, %v2682
        %v2859 = vmax.f32 %v2546, %v2685
        %v2860 = vmax.f32 %v2547, %v2687
        %v2861 = vmax.f32 %v2548, %v2689
        %v2862 = vmax.f32 %v2549, %v2692
        %v2863 = vmax.f32 %v2550, %v2694
        %v2864 = vmax.f32 %v2551, %v2696
        %v2865 = vmax.f32 %v2552, %v2699
        %v2866 = vmax.f32 %v2553, %v2701
        %v2867 = vmax.f32 %v2554, %v2703
        %v2868 = vmax.f32 %v2555, %v2706
        %v2869 = vmax.f32 %v2556, %v2708
        %v2870 = vmax.f32 %v2557, %v2710
        %v2871 = vmax.f32 %v2558, %v2713
        %v2872 = vmax.f32 %v2559, %v2715
        %v2873 = vmax.f32 %v2560, %v2717
        %v2874 = vmax.f32 %v2561, %v2720
        %v2875 = vmax.f32 %v2562, %v2722
        %v2876 = vmax.f32 %v2563, %v2724
        %v2877 = vmax.f32 %v2564, %v2727
        %v2878 = vmax.f32 %v2565, %v2729
        %v2879 = vmax.f32 %v2566, %v2731
        %v2880 = vmax.f32 %v2567, %v2734
        %v2881 = vmax.f32 %v2568, %v2736
        %v2882 = vmax.f32 %v2569, %v2738
        %v2883 = vrot.slane %v1752, 4
        %v2884 = vrot.slane %v1753, 4
        %v2885 = vsel %vm416, %v2883, %v2884
        %v2886 = vrot.slane %v1754, 4
        %v2887 = vsel %vm416, %v2884, %v2886
        %v2888 = vrot.slane %v1755, 4
        %v2889 = vsel %vm416, %v2886, %v2888
        %v2890 = vrot.slane %v1756, 4
        %v2891 = vrot.slane %v1757, 4
        %v2892 = vsel %vm416, %v2890, %v2891
        %v2893 = vrot.slane %v1758, 4
        %v2894 = vsel %vm416, %v2891, %v2893
        %v2895 = vrot.slane %v1759, 4
        %v2896 = vsel %vm416, %v2893, %v2895
        %v2897 = vrot.slane %v1760, 4
        %v2898 = vrot.slane %v1761, 4
        %v2899 = vsel %vm416, %v2897, %v2898
        %v2900 = vrot.slane %v1762, 4
        %v2901 = vsel %vm416, %v2898, %v2900
        %v2902 = vrot.slane %v1763, 4
        %v2903 = vsel %vm416, %v2900, %v2902
        %v2904 = vrot.slane %v1764, 4
        %v2905 = vrot.slane %v1765, 4
        %v2906 = vsel %vm416, %v2904, %v2905
        %v2907 = vrot.slane %v1766, 4
        %v2908 = vsel %vm416, %v2905, %v2907
        %v2909 = vrot.slane %v1767, 4
        %v2910 = vsel %vm416, %v2907, %v2909
        %v2911 = vrot.slane %v1768, 4
        %v2912 = vrot.slane %v1769, 4
        %v2913 = vsel %vm416, %v2911, %v2912
        %v2914 = vrot.slane %v1770, 4
        %v2915 = vsel %vm416, %v2912, %v2914
        %v2916 = vrot.slane %v1771, 4
        %v2917 = vsel %vm416, %v2914, %v2916
        %v2918 = vrot.slane %v1772, 4
        %v2919 = vrot.slane %v1773, 4
        %v2920 = vsel %vm416, %v2918, %v2919
        %v2921 = vrot.slane %v1774, 4
        %v2922 = vsel %vm416, %v2919, %v2921
        %v2923 = vrot.slane %v1775, 4
        %v2924 = vsel %vm416, %v2921, %v2923
        %v2925 = vrot.slane %v1776, 4
        %v2926 = vrot.slane %v1777, 4
        %v2927 = vsel %vm416, %v2925, %v2926
        %v2928 = vrot.slane %v1778, 4
        %v2929 = vsel %vm416, %v2926, %v2928
        %v2930 = vrot.slane %v1779, 4
        %v2931 = vsel %vm416, %v2928, %v2930
        %v2932 = vrot.slane %v1780, 4
        %v2933 = vrot.slane %v1781, 4
        %v2934 = vsel %vm416, %v2932, %v2933
        %v2935 = vrot.slane %v1782, 4
        %v2936 = vsel %vm416, %v2933, %v2935
        %v2937 = vrot.slane %v1783, 4
        %v2938 = vsel %vm416, %v2935, %v2937
        %v2939 = vrot.slane %v1784, 4
        %v2940 = vrot.slane %v1785, 4
        %v2941 = vsel %vm416, %v2939, %v2940
        %v2942 = vrot.slane %v1786, 4
        %v2943 = vsel %vm416, %v2940, %v2942
        %v2944 = vrot.slane %v1787, 4
        %v2945 = vsel %vm416, %v2942, %v2944
        %v2946 = vrot.slane %v1788, 4
        %v2947 = vrot.slane %v1789, 4
        %v2948 = vsel %vm416, %v2946, %v2947
        %v2949 = vrot.slane %v1790, 4
        %v2950 = vsel %vm416, %v2947, %v2949
        %v2951 = vrot.slane %v1791, 4
        %v2952 = vsel %vm416, %v2949, %v2951
        %v2953 = vrot.slane %v1792, 4
        %v2954 = vrot.slane %v1793, 4
        %v2955 = vsel %vm416, %v2953, %v2954
        %v2956 = vrot.slane %v1794, 4
        %v2957 = vsel %vm416, %v2954, %v2956
        %v2958 = vrot.slane %v1795, 4
        %v2959 = vsel %vm416, %v2956, %v2958
        %v2960 = vrot.slane %v1796, 4
        %v2961 = vrot.slane %v1797, 4
        %v2962 = vsel %vm416, %v2960, %v2961
        %v2963 = vrot.slane %v1798, 4
        %v2964 = vsel %vm416, %v2961, %v2963
        %v2965 = vrot.slane %v1799, 4
        %v2966 = vsel %vm416, %v2963, %v2965
        %v2967 = vrot.slane %v1800, 4
        %v2968 = vrot.slane %v1801, 4
        %v2969 = vsel %vm416, %v2967, %v2968
        %v2970 = vrot.slane %v1802, 4
        %v2971 = vsel %vm416, %v2968, %v2970
        %v2972 = vrot.slane %v1803, 4
        %v2973 = vsel %vm416, %v2970, %v2972
        %v2974 = vrot.slane %v1804, 4
        %v2975 = vrot.slane %v1805, 4
        %v2976 = vsel %vm416, %v2974, %v2975
        %v2977 = vrot.slane %v1806, 4
        %v2978 = vsel %vm416, %v2975, %v2977
        %v2979 = vrot.slane %v1807, 4
        %v2980 = vsel %vm416, %v2977, %v2979
        %v2981 = vrot.slane %v1808, 4
        %v2982 = vrot.slane %v1809, 4
        %v2983 = vsel %vm416, %v2981, %v2982
        %v2984 = vrot.slane %v1810, 4
        %v2985 = vsel %vm416, %v2982, %v2984
        %v2986 = vrot.slane %v1811, 4
        %v2987 = vsel %vm416, %v2984, %v2986
        %v2988 = vrot.slane %v1812, 4
        %v2989 = vrot.slane %v1813, 4
        %v2990 = vsel %vm416, %v2988, %v2989
        %v2991 = vrot.slane %v1814, 4
        %v2992 = vsel %vm416, %v2989, %v2991
        %v2993 = vrot.slane %v1815, 4
        %v2994 = vsel %vm416, %v2991, %v2993
        %v2995 = vrot.slane %v1816, 4
        %v2996 = vrot.slane %v1817, 4
        %v2997 = vsel %vm416, %v2995, %v2996
        %v2998 = vrot.slane %v1818, 4
        %v2999 = vsel %vm416, %v2996, %v2998
        %v3000 = vrot.slane %v1819, 4
        %v3001 = vsel %vm416, %v2998, %v3000
        %v3002 = vrot.slane %v1820, 4
        %v3003 = vrot.slane %v1821, 4
        %v3004 = vsel %vm416, %v3002, %v3003
        %v3005 = vrot.slane %v1822, 4
        %v3006 = vsel %vm416, %v3003, %v3005
        %v3007 = vrot.slane %v1823, 4
        %v3008 = vsel %vm416, %v3005, %v3007
        %v3009 = vrot.slane %v1824, 4
        %v3010 = vrot.slane %v1825, 4
        %v3011 = vsel %vm416, %v3009, %v3010
        %v3012 = vrot.slane %v1826, 4
        %v3013 = vsel %vm416, %v3010, %v3012
        %v3014 = vrot.slane %v1827, 4
        %v3015 = vsel %vm416, %v3012, %v3014
        %v3016 = vrot.slane %v1828, 4
        %v3017 = vrot.slane %v1829, 4
        %v3018 = vsel %vm416, %v3016, %v3017
        %v3019 = vrot.slane %v1830, 4
        %v3020 = vsel %vm416, %v3017, %v3019
        %v3021 = vrot.slane %v1831, 4
        %v3022 = vsel %vm416, %v3019, %v3021
        %v3023 = vrot.slane %v1832, 4
        %v3024 = vrot.slane %v1833, 4
        %v3025 = vsel %vm416, %v3023, %v3024
        %v3026 = vrot.slane %v1834, 4
        %v3027 = vsel %vm416, %v3024, %v3026
        %v3028 = vrot.slane %v1835, 4
        %v3029 = vsel %vm416, %v3026, %v3028
        %v3030 = vrot.slane %v1836, 4
        %v3031 = vrot.slane %v1837, 4
        %v3032 = vsel %vm416, %v3030, %v3031
        %v3033 = vrot.slane %v1838, 4
        %v3034 = vsel %vm416, %v3031, %v3033
        %v3035 = vrot.slane %v1839, 4
        %v3036 = vsel %vm416, %v3033, %v3035
        %v3037 = vrot.slane %v1840, 4
        %v3038 = vrot.slane %v1841, 4
        %v3039 = vsel %vm416, %v3037, %v3038
        %v3040 = vrot.slane %v1842, 4
        %v3041 = vsel %vm416, %v3038, %v3040
        %v3042 = vrot.slane %v1843, 4
        %v3043 = vsel %vm416, %v3040, %v3042
        %v3044 = vrot.slane %v1844, 4
        %v3045 = vrot.slane %v1845, 4
        %v3046 = vsel %vm416, %v3044, %v3045
        %v3047 = vrot.slane %v1846, 4
        %v3048 = vsel %vm416, %v3045, %v3047
        %v3049 = vrot.slane %v1847, 4
        %v3050 = vsel %vm416, %v3047, %v3049
        %v3123 = vmax.f32 %v2811, %v2885
        %v3124 = vmax.f32 %v2812, %v2887
        %v3125 = vmax.f32 %v2813, %v2889
        %v3126 = vmax.f32 %v2814, %v2892
        %v3127 = vmax.f32 %v2815, %v2894
        %v3128 = vmax.f32 %v2816, %v2896
        %v3129 = vmax.f32 %v2817, %v2899
        %v3130 = vmax.f32 %v2818, %v2901
        %v3131 = vmax.f32 %v2819, %v2903
        %v3132 = vmax.f32 %v2820, %v2906
        %v3133 = vmax.f32 %v2821, %v2908
        %v3134 = vmax.f32 %v2822, %v2910
        %v3135 = vmax.f32 %v2823, %v2913
        %v3136 = vmax.f32 %v2824, %v2915
        %v3137 = vmax.f32 %v2825, %v2917
        %v3138 = vmax.f32 %v2826, %v2920
        %v3139 = vmax.f32 %v2827, %v2922
        %v3140 = vmax.f32 %v2828, %v2924
        %v3141 = vmax.f32 %v2829, %v2927
        %v3142 = vmax.f32 %v2830, %v2929
        %v3143 = vmax.f32 %v2831, %v2931
        %v3144 = vmax.f32 %v2832, %v2934
        %v3145 = vmax.f32 %v2833, %v2936
        %v3146 = vmax.f32 %v2834, %v2938
        %v3147 = vmax.f32 %v2835, %v2941
        %v3148 = vmax.f32 %v2836, %v2943
        %v3149 = vmax.f32 %v2837, %v2945
        %v3150 = vmax.f32 %v2838, %v2948
        %v3151 = vmax.f32 %v2839, %v2950
        %v3152 = vmax.f32 %v2840, %v2952
        %v3153 = vmax.f32 %v2841, %v2955
        %v3154 = vmax.f32 %v2842, %v2957
        %v3155 = vmax.f32 %v2843, %v2959
        %v3156 = vmax.f32 %v2844, %v2962
        %v3157 = vmax.f32 %v2845, %v2964
        %v3158 = vmax.f32 %v2846, %v2966
        %v3159 = vmax.f32 %v2847, %v2969
        %v3160 = vmax.f32 %v2848, %v2971
        %v3161 = vmax.f32 %v2849, %v2973
        %v3162 = vmax.f32 %v2850, %v2976
        %v3163 = vmax.f32 %v2851, %v2978
        %v3164 = vmax.f32 %v2852, %v2980
        %v3165 = vmax.f32 %v2853, %v2983
        %v3166 = vmax.f32 %v2854, %v2985
        %v3167 = vmax.f32 %v2855, %v2987
        %v3168 = vmax.f32 %v2856, %v2990
        %v3169 = vmax.f32 %v2857, %v2992
        %v3170 = vmax.f32 %v2858, %v2994
        %v3171 = vmax.f32 %v2859, %v2997
        %v3172 = vmax.f32 %v2860, %v2999
        %v3173 = vmax.f32 %v2861, %v3001
        %v3174 = vmax.f32 %v2862, %v3004
        %v3175 = vmax.f32 %v2863, %v3006
        %v3176 = vmax.f32 %v2864, %v3008
        %v3177 = vmax.f32 %v2865, %v3011
        %v3178 = vmax.f32 %v2866, %v3013
        %v3179 = vmax.f32 %v2867, %v3015
        %v3180 = vmax.f32 %v2868, %v3018
        %v3181 = vmax.f32 %v2869, %v3020
        %v3182 = vmax.f32 %v2870, %v3022
        %v3183 = vmax.f32 %v2871, %v3025
        %v3184 = vmax.f32 %v2872, %v3027
        %v3185 = vmax.f32 %v2873, %v3029
        %v3186 = vmax.f32 %v2874, %v3032
        %v3187 = vmax.f32 %v2875, %v3034
        %v3188 = vmax.f32 %v2876, %v3036
        %v3189 = vmax.f32 %v2877, %v3039
        %v3190 = vmax.f32 %v2878, %v3041
        %v3191 = vmax.f32 %v2879, %v3043
        %v3192 = vmax.f32 %v2880, %v3046
        %v3193 = vmax.f32 %v2881, %v3048
        %v3194 = vmax.f32 %v2882, %v3050
        %v3243 = vrot.slane %v3135, 4
        %v3244 = vrot.slane %v3136, 4
        %v3245 = vsel %vm416, %v3243, %v3244
        %v3246 = vrot.slane %v3137, 4
        %v3247 = vsel %vm416, %v3244, %v3246
        %v3248 = vrot.slane %v3138, 4
        %v3249 = vrot.slane %v3139, 4
        %v3250 = vsel %vm416, %v3248, %v3249
        %v3251 = vrot.slane %v3140, 4
        %v3252 = vsel %vm416, %v3249, %v3251
        %v3253 = vrot.slane %v3141, 4
        %v3254 = vrot.slane %v3142, 4
        %v3255 = vsel %vm416, %v3253, %v3254
        %v3256 = vrot.slane %v3143, 4
        %v3257 = vsel %vm416, %v3254, %v3256
        %v3258 = vrot.slane %v3144, 4
        %v3259 = vrot.slane %v3145, 4
        %v3260 = vsel %vm416, %v3258, %v3259
        %v3261 = vrot.slane %v3146, 4
        %v3262 = vsel %vm416, %v3259, %v3261
        %v3263 = vrot.slane %v3147, 4
        %v3264 = vrot.slane %v3148, 4
        %v3265 = vsel %vm416, %v3263, %v3264
        %v3266 = vrot.slane %v3149, 4
        %v3267 = vsel %vm416, %v3264, %v3266
        %v3268 = vrot.slane %v3150, 4
        %v3269 = vrot.slane %v3151, 4
        %v3270 = vsel %vm416, %v3268, %v3269
        %v3271 = vrot.slane %v3152, 4
        %v3272 = vsel %vm416, %v3269, %v3271
        %v3273 = vrot.slane %v3153, 4
        %v3274 = vrot.slane %v3154, 4
        %v3275 = vsel %vm416, %v3273, %v3274
        %v3276 = vrot.slane %v3155, 4
        %v3277 = vsel %vm416, %v3274, %v3276
        %v3278 = vrot.slane %v3156, 4
        %v3279 = vrot.slane %v3157, 4
        %v3280 = vsel %vm416, %v3278, %v3279
        %v3281 = vrot.slane %v3158, 4
        %v3282 = vsel %vm416, %v3279, %v3281
        %v3283 = vrot.slane %v3159, 4
        %v3284 = vrot.slane %v3160, 4
        %v3285 = vsel %vm416, %v3283, %v3284
        %v3286 = vrot.slane %v3161, 4
        %v3287 = vsel %vm416, %v3284, %v3286
        %v3288 = vrot.slane %v3162, 4
        %v3289 = vrot.slane %v3163, 4
        %v3290 = vsel %vm416, %v3288, %v3289
        %v3291 = vrot.slane %v3164, 4
        %v3292 = vsel %vm416, %v3289, %v3291
        %v3293 = vrot.slane %v3165, 4
        %v3294 = vrot.slane %v3166, 4
        %v3295 = vsel %vm416, %v3293, %v3294
        %v3296 = vrot.slane %v3167, 4
        %v3297 = vsel %vm416, %v3294, %v3296
        %v3298 = vrot.slane %v3168, 4
        %v3299 = vrot.slane %v3169, 4
        %v3300 = vsel %vm416, %v3298, %v3299
        %v3301 = vrot.slane %v3170, 4
        %v3302 = vsel %vm416, %v3299, %v3301
        %v3303 = vrot.slane %v3171, 4
        %v3304 = vrot.slane %v3172, 4
        %v3305 = vsel %vm416, %v3303, %v3304
        %v3306 = vrot.slane %v3173, 4
        %v3307 = vsel %vm416, %v3304, %v3306
        %v3308 = vrot.slane %v3174, 4
        %v3309 = vrot.slane %v3175, 4
        %v3310 = vsel %vm416, %v3308, %v3309
        %v3311 = vrot.slane %v3176, 4
        %v3312 = vsel %vm416, %v3309, %v3311
        %v3313 = vrot.slane %v3177, 4
        %v3314 = vrot.slane %v3178, 4
        %v3315 = vsel %vm416, %v3313, %v3314
        %v3316 = vrot.slane %v3179, 4
        %v3317 = vsel %vm416, %v3314, %v3316
        %v3318 = vrot.slane %v3180, 4
        %v3319 = vrot.slane %v3181, 4
        %v3320 = vsel %vm416, %v3318, %v3319
        %v3321 = vrot.slane %v3182, 4
        %v3322 = vsel %vm416, %v3319, %v3321
        %3323 = vrot.lane.b32.xlu0 %v3245, 2
        %v3324 = vpop.permute.xlu0 %3323
        %3325 = vrot.lane.b32.xlu0 %v3247, 2
        %v3326 = vpop.permute.xlu0 %3325
        %3327 = vrot.lane.b32.xlu0 %v3250, 2
        %v3328 = vpop.permute.xlu0 %3327
        %3329 = vrot.lane.b32.xlu0 %v3252, 2
        %v3330 = vpop.permute.xlu0 %3329
        %3331 = vrot.lane.b32.xlu0 %v3255, 2
        %v3332 = vpop.permute.xlu0 %3331
        %3333 = vrot.lane.b32.xlu0 %v3257, 2
        %v3334 = vpop.permute.xlu0 %3333
        %3335 = vrot.lane.b32.xlu0 %v3260, 2
        %v3336 = vpop.permute.xlu0 %3335
        %3337 = vrot.lane.b32.xlu0 %v3262, 2
        %v3338 = vpop.permute.xlu0 %3337
        %3339 = vrot.lane.b32.xlu0 %v3265, 2
        %v3340 = vpop.permute.xlu0 %3339
        %3341 = vrot.lane.b32.xlu0 %v3267, 2
        %v3342 = vpop.permute.xlu0 %3341
        %3343 = vrot.lane.b32.xlu0 %v3270, 2
        %v3344 = vpop.permute.xlu0 %3343
        %3345 = vrot.lane.b32.xlu0 %v3272, 2
        %v3346 = vpop.permute.xlu0 %3345
        %3347 = vrot.lane.b32.xlu0 %v3275, 2
        %v3348 = vpop.permute.xlu0 %3347
        %3349 = vrot.lane.b32.xlu0 %v3277, 2
        %v3350 = vpop.permute.xlu0 %3349
        %3351 = vrot.lane.b32.xlu0 %v3280, 2
        %v3352 = vpop.permute.xlu0 %3351
        %3353 = vrot.lane.b32.xlu0 %v3282, 2
        %v3354 = vpop.permute.xlu0 %3353
        %3355 = vrot.lane.b32.xlu0 %v3285, 2
        %v3356 = vpop.permute.xlu0 %3355
        %3357 = vrot.lane.b32.xlu0 %v3287, 2
        %v3358 = vpop.permute.xlu0 %3357
        %3359 = vrot.lane.b32.xlu0 %v3290, 2
        %v3360 = vpop.permute.xlu0 %3359
        %3361 = vrot.lane.b32.xlu0 %v3292, 2
        %v3362 = vpop.permute.xlu0 %3361
        %3363 = vrot.lane.b32.xlu0 %v3295, 2
        %v3364 = vpop.permute.xlu0 %3363
        %3365 = vrot.lane.b32.xlu0 %v3297, 2
        %v3366 = vpop.permute.xlu0 %3365
        %3367 = vrot.lane.b32.xlu0 %v3300, 2
        %v3368 = vpop.permute.xlu0 %3367
        %3369 = vrot.lane.b32.xlu0 %v3302, 2
        %v3370 = vpop.permute.xlu0 %3369
        %3371 = vrot.lane.b32.xlu0 %v3305, 2
        %v3372 = vpop.permute.xlu0 %3371
        %3373 = vrot.lane.b32.xlu0 %v3307, 2
        %v3374 = vpop.permute.xlu0 %3373
        %3375 = vrot.lane.b32.xlu0 %v3310, 2
        %v3376 = vpop.permute.xlu0 %3375
        %3377 = vrot.lane.b32.xlu0 %v3312, 2
        %v3378 = vpop.permute.xlu0 %3377
        %3379 = vrot.lane.b32.xlu0 %v3315, 2
        %v3380 = vpop.permute.xlu0 %3379
        %3381 = vrot.lane.b32.xlu0 %v3317, 2
        %v3382 = vpop.permute.xlu0 %3381
        %3383 = vrot.lane.b32.xlu0 %v3320, 2
        %v3384 = vpop.permute.xlu0 %3383
        %3385 = vrot.lane.b32.xlu0 %v3322, 2
        %v3386 = vpop.permute.xlu0 %3385
        %vm3419 = vcmask 31760
        %3420 = vst.msk [vmem:[#allocation3] sm:$0xff] %vm3419, %v3324
        %3421 = vst.msk [vmem:[#allocation3 + $0x8] sm:$0xff] %vm3419, %v3326
        %3422 = vst.msk [vmem:[#allocation3 + $0x10] sm:$0xff] %vm3419, %v3328
        %3423 = vst.msk [vmem:[#allocation3 + $0x18] sm:$0xff] %vm3419, %v3330
        %3424 = vst.msk [vmem:[#allocation3 + $0x20] sm:$0xff] %vm3419, %v3332
        %3425 = vst.msk [vmem:[#allocation3 + $0x28] sm:$0xff] %vm3419, %v3334
        %3426 = vst.msk [vmem:[#allocation3 + $0x30] sm:$0xff] %vm3419, %v3336
        %3427 = vst.msk [vmem:[#allocation3 + $0x38] sm:$0xff] %vm3419, %v3338
        %3428 = vst.msk [vmem:[#allocation3 + $0x40] sm:$0xff] %vm3419, %v3340
        %3429 = vst.msk [vmem:[#allocation3 + $0x48] sm:$0xff] %vm3419, %v3342
        %3430 = vst.msk [vmem:[#allocation3 + $0x50] sm:$0xff] %vm3419, %v3344
        %3431 = vst.msk [vmem:[#allocation3 + $0x58] sm:$0xff] %vm3419, %v3346
        %3432 = vst.msk [vmem:[#allocation3 + $0x60] sm:$0xff] %vm3419, %v3348
        %3433 = vst.msk [vmem:[#allocation3 + $0x68] sm:$0xff] %vm3419, %v3350
        %3434 = vst.msk [vmem:[#allocation3 + $0x70] sm:$0xff] %vm3419, %v3352
        %3435 = vst.msk [vmem:[#allocation3 + $0x78] sm:$0xff] %vm3419, %v3354
        %3436 = vst.msk [vmem:[#allocation3 + $0x80] sm:$0xff] %vm3419, %v3356
        %3437 = vst.msk [vmem:[#allocation3 + $0x88] sm:$0xff] %vm3419, %v3358
        %3438 = vst.msk [vmem:[#allocation3 + $0x90] sm:$0xff] %vm3419, %v3360
        %3439 = vst.msk [vmem:[#allocation3 + $0x98] sm:$0xff] %vm3419, %v3362
        %3440 = vst.msk [vmem:[#allocation3 + $0xa0] sm:$0xff] %vm3419, %v3364
        %3441 = vst.msk [vmem:[#allocation3 + $0xa8] sm:$0xff] %vm3419, %v3366
        %3442 = vst.msk [vmem:[#allocation3 + $0xb0] sm:$0xff] %vm3419, %v3368
        %3443 = vst.msk [vmem:[#allocation3 + $0xb8] sm:$0xff] %vm3419, %v3370
        %3444 = vst.msk [vmem:[#allocation3 + $0xc0] sm:$0xff] %vm3419, %v3372
        %3445 = vst.msk [vmem:[#allocation3 + $0xc8] sm:$0xff] %vm3419, %v3374
        %3446 = vst.msk [vmem:[#allocation3 + $0xd0] sm:$0xff] %vm3419, %v3376
        %3447 = vst.msk [vmem:[#allocation3 + $0xd8] sm:$0xff] %vm3419, %v3378
        %3448 = vst.msk [vmem:[#allocation3 + $0xe0] sm:$0xff] %vm3419, %v3380
        %3449 = vst.msk [vmem:[#allocation3 + $0xe8] sm:$0xff] %vm3419, %v3382
        %3450 = vst.msk [vmem:[#allocation3 + $0xf0] sm:$0xff] %vm3419, %v3384
        %3451 = vst.msk [vmem:[#allocation3 + $0xf8] sm:$0xff] %vm3419, %v3386
        %v3452 = vmax.f32 %v3123, %v3126
        %v3453 = vmax.f32 %v3124, %v3127
        %v3454 = vmax.f32 %v3125, %v3128
        %v3455 = vmax.f32 %v3126, %v3129
        %v3456 = vmax.f32 %v3127, %v3130
        %v3457 = vmax.f32 %v3128, %v3131
        %v3458 = vmax.f32 %v3129, %v3132
        %v3459 = vmax.f32 %v3130, %v3133
        %v3460 = vmax.f32 %v3131, %v3134
        %v3461 = vmax.f32 %v3132, %v3135
        %v3462 = vmax.f32 %v3133, %v3136
        %v3463 = vmax.f32 %v3134, %v3137
        %v3464 = vmax.f32 %v3135, %v3138
        %v3465 = vmax.f32 %v3136, %v3139
        %v3466 = vmax.f32 %v3137, %v3140
        %v3467 = vmax.f32 %v3138, %v3141
        %v3468 = vmax.f32 %v3139, %v3142
        %v3469 = vmax.f32 %v3140, %v3143
        %v3470 = vmax.f32 %v3141, %v3144
        %v3471 = vmax.f32 %v3142, %v3145
        %v3472 = vmax.f32 %v3143, %v3146
        %v3473 = vmax.f32 %v3144, %v3147
        %v3474 = vmax.f32 %v3145, %v3148
        %v3475 = vmax.f32 %v3146, %v3149
        %v3476 = vmax.f32 %v3147, %v3150
        %v3477 = vmax.f32 %v3148, %v3151
        %v3478 = vmax.f32 %v3149, %v3152
        %v3479 = vmax.f32 %v3150, %v3153
        %v3480 = vmax.f32 %v3151, %v3154
        %v3481 = vmax.f32 %v3152, %v3155
        %v3482 = vmax.f32 %v3153, %v3156
        %v3483 = vmax.f32 %v3154, %v3157
        %v3484 = vmax.f32 %v3155, %v3158
        %v3485 = vmax.f32 %v3156, %v3159
        %v3486 = vmax.f32 %v3157, %v3160
        %v3487 = vmax.f32 %v3158, %v3161
        %v3488 = vmax.f32 %v3159, %v3162
        %v3489 = vmax.f32 %v3160, %v3163
        %v3490 = vmax.f32 %v3161, %v3164
        %v3491 = vmax.f32 %v3162, %v3165
        %v3492 = vmax.f32 %v3163, %v3166
        %v3493 = vmax.f32 %v3164, %v3167
        %v3494 = vmax.f32 %v3165, %v3168
        %v3495 = vmax.f32 %v3166, %v3169
        %v3496 = vmax.f32 %v3167, %v3170
        %v3497 = vmax.f32 %v3168, %v3171
        %v3498 = vmax.f32 %v3169, %v3172
        %v3499 = vmax.f32 %v3170, %v3173
        %v3500 = vmax.f32 %v3171, %v3174
        %v3501 = vmax.f32 %v3172, %v3175
        %v3502 = vmax.f32 %v3173, %v3176
        %v3503 = vmax.f32 %v3174, %v3177
        %v3504 = vmax.f32 %v3175, %v3178
        %v3505 = vmax.f32 %v3176, %v3179
        %v3506 = vmax.f32 %v3177, %v3180
        %v3507 = vmax.f32 %v3178, %v3181
        %v3508 = vmax.f32 %v3179, %v3182
        %v3509 = vmax.f32 %v3180, %v3183
        %v3510 = vmax.f32 %v3181, %v3184
        %v3511 = vmax.f32 %v3182, %v3185
        %v3512 = vmax.f32 %v3452, %v3129
        %v3513 = vmax.f32 %v3453, %v3130
        %v3514 = vmax.f32 %v3454, %v3131
        %v3515 = vmax.f32 %v3455, %v3132
        %v3516 = vmax.f32 %v3456, %v3133
        %v3517 = vmax.f32 %v3457, %v3134
        %v3518 = vmax.f32 %v3458, %v3135
        %v3519 = vmax.f32 %v3459, %v3136
        %v3520 = vmax.f32 %v3460, %v3137
        %v3521 = vmax.f32 %v3461, %v3138
        %v3522 = vmax.f32 %v3462, %v3139
        %v3523 = vmax.f32 %v3463, %v3140
        %v3524 = vmax.f32 %v3464, %v3141
        %v3525 = vmax.f32 %v3465, %v3142
        %v3526 = vmax.f32 %v3466, %v3143
        %v3527 = vmax.f32 %v3467, %v3144
        %v3528 = vmax.f32 %v3468, %v3145
        %v3529 = vmax.f32 %v3469, %v3146
        %v3530 = vmax.f32 %v3470, %v3147
        %v3531 = vmax.f32 %v3471, %v3148
        %v3532 = vmax.f32 %v3472, %v3149
        %v3533 = vmax.f32 %v3473, %v3150
        %v3534 = vmax.f32 %v3474, %v3151
        %v3535 = vmax.f32 %v3475, %v3152
        %v3536 = vmax.f32 %v3476, %v3153
        %v3537 = vmax.f32 %v3477, %v3154
        %v3538 = vmax.f32 %v3478, %v3155
        %v3539 = vmax.f32 %v3479, %v3156
        %v3540 = vmax.f32 %v3480, %v3157
        %v3541 = vmax.f32 %v3481, %v3158
        %v3542 = vmax.f32 %v3482, %v3159
        %v3543 = vmax.f32 %v3483, %v3160
        %v3544 = vmax.f32 %v3484, %v3161
        %v3545 = vmax.f32 %v3485, %v3162
        %v3546 = vmax.f32 %v3486, %v3163
        %v3547 = vmax.f32 %v3487, %v3164
        %v3548 = vmax.f32 %v3488, %v3165
        %v3549 = vmax.f32 %v3489, %v3166
        %v3550 = vmax.f32 %v3490, %v3167
        %v3551 = vmax.f32 %v3491, %v3168
        %v3552 = vmax.f32 %v3492, %v3169
        %v3553 = vmax.f32 %v3493, %v3170
        %v3554 = vmax.f32 %v3494, %v3171
        %v3555 = vmax.f32 %v3495, %v3172
        %v3556 = vmax.f32 %v3496, %v3173
        %v3557 = vmax.f32 %v3497, %v3174
        %v3558 = vmax.f32 %v3498, %v3175
        %v3559 = vmax.f32 %v3499, %v3176
        %v3560 = vmax.f32 %v3500, %v3177
        %v3561 = vmax.f32 %v3501, %v3178
        %v3562 = vmax.f32 %v3502, %v3179
        %v3563 = vmax.f32 %v3503, %v3180
        %v3564 = vmax.f32 %v3504, %v3181
        %v3565 = vmax.f32 %v3505, %v3182
        %v3566 = vmax.f32 %v3506, %v3183
        %v3567 = vmax.f32 %v3507, %v3184
        %v3568 = vmax.f32 %v3508, %v3185
        %v3569 = vmax.f32 %v3509, %v3186
        %v3570 = vmax.f32 %v3510, %v3187
        %v3571 = vmax.f32 %v3511, %v3188
        %v3572 = vmax.f32 %v3512, %v3132
        %v3573 = vmax.f32 %v3513, %v3133
        %v3574 = vmax.f32 %v3514, %v3134
        %v3575 = vmax.f32 %v3515, %v3135
        %v3576 = vmax.f32 %v3516, %v3136
        %v3577 = vmax.f32 %v3517, %v3137
        %v3578 = vmax.f32 %v3518, %v3138
        %v3579 = vmax.f32 %v3519, %v3139
        %v3580 = vmax.f32 %v3520, %v3140
        %v3581 = vmax.f32 %v3521, %v3141
        %v3582 = vmax.f32 %v3522, %v3142
        %v3583 = vmax.f32 %v3523, %v3143
        %v3584 = vmax.f32 %v3524, %v3144
        %v3585 = vmax.f32 %v3525, %v3145
        %v3586 = vmax.f32 %v3526, %v3146
        %v3587 = vmax.f32 %v3527, %v3147
        %v3588 = vmax.f32 %v3528, %v3148
        %v3589 = vmax.f32 %v3529, %v3149
        %v3590 = vmax.f32 %v3530, %v3150
        %v3591 = vmax.f32 %v3531, %v3151
        %v3592 = vmax.f32 %v3532, %v3152
        %v3593 = vmax.f32 %v3533, %v3153
        %v3594 = vmax.f32 %v3534, %v3154
        %v3595 = vmax.f32 %v3535, %v3155
        %v3596 = vmax.f32 %v3536, %v3156
        %v3597 = vmax.f32 %v3537, %v3157
        %v3598 = vmax.f32 %v3538, %v3158
        %v3599 = vmax.f32 %v3539, %v3159
        %v3600 = vmax.f32 %v3540, %v3160
        %v3601 = vmax.f32 %v3541, %v3161
        %v3602 = vmax.f32 %v3542, %v3162
        %v3603 = vmax.f32 %v3543, %v3163
        %v3604 = vmax.f32 %v3544, %v3164
        %v3605 = vmax.f32 %v3545, %v3165
        %v3606 = vmax.f32 %v3546, %v3166
        %v3607 = vmax.f32 %v3547, %v3167
        %v3608 = vmax.f32 %v3548, %v3168
        %v3609 = vmax.f32 %v3549, %v3169
        %v3610 = vmax.f32 %v3550, %v3170
        %v3611 = vmax.f32 %v3551, %v3171
        %v3612 = vmax.f32 %v3552, %v3172
        %v3613 = vmax.f32 %v3553, %v3173
        %v3614 = vmax.f32 %v3554, %v3174
        %v3615 = vmax.f32 %v3555, %v3175
        %v3616 = vmax.f32 %v3556, %v3176
        %v3617 = vmax.f32 %v3557, %v3177
        %v3618 = vmax.f32 %v3558, %v3178
        %v3619 = vmax.f32 %v3559, %v3179
        %v3620 = vmax.f32 %v3560, %v3180
        %v3621 = vmax.f32 %v3561, %v3181
        %v3622 = vmax.f32 %v3562, %v3182
        %v3623 = vmax.f32 %v3563, %v3183
        %v3624 = vmax.f32 %v3564, %v3184
        %v3625 = vmax.f32 %v3565, %v3185
        %v3626 = vmax.f32 %v3566, %v3186
        %v3627 = vmax.f32 %v3567, %v3187
        %v3628 = vmax.f32 %v3568, %v3188
        %v3629 = vmax.f32 %v3569, %v3189
        %v3630 = vmax.f32 %v3570, %v3190
        %v3631 = vmax.f32 %v3571, %v3191
        %v3632 = vmax.f32 %v3572, %v3135
        %v3633 = vmax.f32 %v3573, %v3136
        %v3634 = vmax.f32 %v3574, %v3137
        %v3635 = vmax.f32 %v3575, %v3138
        %v3636 = vmax.f32 %v3576, %v3139
        %v3637 = vmax.f32 %v3577, %v3140
        %v3638 = vmax.f32 %v3578, %v3141
        %v3639 = vmax.f32 %v3579, %v3142
        %v3640 = vmax.f32 %v3580, %v3143
        %v3641 = vmax.f32 %v3581, %v3144
        %v3642 = vmax.f32 %v3582, %v3145
        %v3643 = vmax.f32 %v3583, %v3146
        %v3644 = vmax.f32 %v3584, %v3147
        %v3645 = vmax.f32 %v3585, %v3148
        %v3646 = vmax.f32 %v3586, %v3149
        %v3647 = vmax.f32 %v3587, %v3150
        %v3648 = vmax.f32 %v3588, %v3151
        %v3649 = vmax.f32 %v3589, %v3152
        %v3650 = vmax.f32 %v3590, %v3153
        %v3651 = vmax.f32 %v3591, %v3154
        %v3652 = vmax.f32 %v3592, %v3155
        %v3653 = vmax.f32 %v3593, %v3156
        %v3654 = vmax.f32 %v3594, %v3157
        %v3655 = vmax.f32 %v3595, %v3158
        %v3656 = vmax.f32 %v3596, %v3159
        %v3657 = vmax.f32 %v3597, %v3160
        %v3658 = vmax.f32 %v3598, %v3161
        %v3659 = vmax.f32 %v3599, %v3162
        %v3660 = vmax.f32 %v3600, %v3163
        %v3661 = vmax.f32 %v3601, %v3164
        %v3662 = vmax.f32 %v3602, %v3165
        %v3663 = vmax.f32 %v3603, %v3166
        %v3664 = vmax.f32 %v3604, %v3167
        %v3665 = vmax.f32 %v3605, %v3168
        %v3666 = vmax.f32 %v3606, %v3169
        %v3667 = vmax.f32 %v3607, %v3170
        %v3668 = vmax.f32 %v3608, %v3171
        %v3669 = vmax.f32 %v3609, %v3172
        %v3670 = vmax.f32 %v3610, %v3173
        %v3671 = vmax.f32 %v3611, %v3174
        %v3672 = vmax.f32 %v3612, %v3175
        %v3673 = vmax.f32 %v3613, %v3176
        %v3674 = vmax.f32 %v3614, %v3177
        %v3675 = vmax.f32 %v3615, %v3178
        %v3676 = vmax.f32 %v3616, %v3179
        %v3677 = vmax.f32 %v3617, %v3180
        %v3678 = vmax.f32 %v3618, %v3181
        %v3679 = vmax.f32 %v3619, %v3182
        %v3680 = vmax.f32 %v3620, %v3183
        %v3681 = vmax.f32 %v3621, %v3184
        %v3682 = vmax.f32 %v3622, %v3185
        %v3683 = vmax.f32 %v3623, %v3186
        %v3684 = vmax.f32 %v3624, %v3187
        %v3685 = vmax.f32 %v3625, %v3188
        %v3686 = vmax.f32 %v3626, %v3189
        %v3687 = vmax.f32 %v3627, %v3190
        %v3688 = vmax.f32 %v3628, %v3191
        %v3689 = vmax.f32 %v3629, %v3192
        %v3690 = vmax.f32 %v3630, %v3193
        %v3691 = vmax.f32 %v3631, %v3194
        %v3752 = vrot.slane %v3632, 1
        %v3753 = vrot.slane %v3633, 1
        %v3754 = vsel %vm1944, %v3752, %v3753
        %v3755 = vrot.slane %v3634, 1
        %v3756 = vsel %vm1944, %v3753, %v3755
        %v3757 = vrot.slane %v3635, 1
        %v3758 = vrot.slane %v3636, 1
        %v3759 = vsel %vm1944, %v3757, %v3758
        %v3760 = vrot.slane %v3637, 1
        %v3761 = vsel %vm1944, %v3758, %v3760
        %v3762 = vrot.slane %v3638, 1
        %v3763 = vrot.slane %v3639, 1
        %v3764 = vsel %vm1944, %v3762, %v3763
        %v3765 = vrot.slane %v3640, 1
        %v3766 = vsel %vm1944, %v3763, %v3765
        %v3767 = vrot.slane %v3641, 1
        %v3768 = vrot.slane %v3642, 1
        %v3769 = vsel %vm1944, %v3767, %v3768
        %v3770 = vrot.slane %v3643, 1
        %v3771 = vsel %vm1944, %v3768, %v3770
        %v3772 = vrot.slane %v3644, 1
        %v3773 = vrot.slane %v3645, 1
        %v3774 = vsel %vm1944, %v3772, %v3773
        %v3775 = vrot.slane %v3646, 1
        %v3776 = vsel %vm1944, %v3773, %v3775
        %v3777 = vrot.slane %v3647, 1
        %v3778 = vrot.slane %v3648, 1
        %v3779 = vsel %vm1944, %v3777, %v3778
        %v3780 = vrot.slane %v3649, 1
        %v3781 = vsel %vm1944, %v3778, %v3780
        %v3782 = vrot.slane %v3650, 1
        %v3783 = vrot.slane %v3651, 1
        %v3784 = vsel %vm1944, %v3782, %v3783
        %v3785 = vrot.slane %v3652, 1
        %v3786 = vsel %vm1944, %v3783, %v3785
        %v3787 = vrot.slane %v3653, 1
        %v3788 = vrot.slane %v3654, 1
        %v3789 = vsel %vm1944, %v3787, %v3788
        %v3790 = vrot.slane %v3655, 1
        %v3791 = vsel %vm1944, %v3788, %v3790
        %v3792 = vrot.slane %v3656, 1
        %v3793 = vrot.slane %v3657, 1
        %v3794 = vsel %vm1944, %v3792, %v3793
        %v3795 = vrot.slane %v3658, 1
        %v3796 = vsel %vm1944, %v3793, %v3795
        %v3797 = vrot.slane %v3659, 1
        %v3798 = vrot.slane %v3660, 1
        %v3799 = vsel %vm1944, %v3797, %v3798
        %v3800 = vrot.slane %v3661, 1
        %v3801 = vsel %vm1944, %v3798, %v3800
        %v3802 = vrot.slane %v3662, 1
        %v3803 = vrot.slane %v3663, 1
        %v3804 = vsel %vm1944, %v3802, %v3803
        %v3805 = vrot.slane %v3664, 1
        %v3806 = vsel %vm1944, %v3803, %v3805
        %v3807 = vrot.slane %v3665, 1
        %v3808 = vrot.slane %v3666, 1
        %v3809 = vsel %vm1944, %v3807, %v3808
        %v3810 = vrot.slane %v3667, 1
        %v3811 = vsel %vm1944, %v3808, %v3810
        %v3812 = vrot.slane %v3668, 1
        %v3813 = vrot.slane %v3669, 1
        %v3814 = vsel %vm1944, %v3812, %v3813
        %v3815 = vrot.slane %v3670, 1
        %v3816 = vsel %vm1944, %v3813, %v3815
        %v3817 = vrot.slane %v3671, 1
        %v3818 = vrot.slane %v3672, 1
        %v3819 = vsel %vm1944, %v3817, %v3818
        %v3820 = vrot.slane %v3673, 1
        %v3821 = vsel %vm1944, %v3818, %v3820
        %v3822 = vrot.slane %v3674, 1
        %v3823 = vrot.slane %v3675, 1
        %v3824 = vsel %vm1944, %v3822, %v3823
        %v3825 = vrot.slane %v3676, 1
        %v3826 = vsel %vm1944, %v3823, %v3825
        %v3827 = vrot.slane %v3677, 1
        %v3828 = vrot.slane %v3678, 1
        %v3829 = vsel %vm1944, %v3827, %v3828
        %v3830 = vrot.slane %v3679, 1
        %v3831 = vsel %vm1944, %v3828, %v3830
        %v3832 = vrot.slane %v3680, 1
        %v3833 = vrot.slane %v3681, 1
        %v3834 = vsel %vm1944, %v3832, %v3833
        %v3835 = vrot.slane %v3682, 1
        %v3836 = vsel %vm1944, %v3833, %v3835
        %v3837 = vrot.slane %v3683, 1
        %v3838 = vrot.slane %v3684, 1
        %v3839 = vsel %vm1944, %v3837, %v3838
        %v3840 = vrot.slane %v3685, 1
        %v3841 = vsel %vm1944, %v3838, %v3840
        %v3842 = vrot.slane %v3686, 1
        %v3843 = vrot.slane %v3687, 1
        %v3844 = vsel %vm1944, %v3842, %v3843
        %v3845 = vrot.slane %v3688, 1
        %v3846 = vsel %vm1944, %v3843, %v3845
        %v3847 = vrot.slane %v3689, 1
        %v3848 = vrot.slane %v3690, 1
        %v3849 = vsel %vm1944, %v3847, %v3848
        %v3850 = vrot.slane %v3691, 1
        %v3851 = vsel %vm1944, %v3848, %v3850
        %v3912 = vmax.f32 %v3632, %v3754
        %v3913 = vmax.f32 %v3633, %v3756
        %v3914 = vmax.f32 %v3634, %v3755
        %v3915 = vmax.f32 %v3635, %v3759
        %v3916 = vmax.f32 %v3636, %v3761
        %v3917 = vmax.f32 %v3637, %v3760
        %v3918 = vmax.f32 %v3638, %v3764
        %v3919 = vmax.f32 %v3639, %v3766
        %v3920 = vmax.f32 %v3640, %v3765
        %v3921 = vmax.f32 %v3641, %v3769
        %v3922 = vmax.f32 %v3642, %v3771
        %v3923 = vmax.f32 %v3643, %v3770
        %v3924 = vmax.f32 %v3644, %v3774
        %v3925 = vmax.f32 %v3645, %v3776
        %v3926 = vmax.f32 %v3646, %v3775
        %v3927 = vmax.f32 %v3647, %v3779
        %v3928 = vmax.f32 %v3648, %v3781
        %v3929 = vmax.f32 %v3649, %v3780
        %v3930 = vmax.f32 %v3650, %v3784
        %v3931 = vmax.f32 %v3651, %v3786
        %v3932 = vmax.f32 %v3652, %v3785
        %v3933 = vmax.f32 %v3653, %v3789
        %v3934 = vmax.f32 %v3654, %v3791
        %v3935 = vmax.f32 %v3655, %v3790
        %v3936 = vmax.f32 %v3656, %v3794
        %v3937 = vmax.f32 %v3657, %v3796
        %v3938 = vmax.f32 %v3658, %v3795
        %v3939 = vmax.f32 %v3659, %v3799
        %v3940 = vmax.f32 %v3660, %v3801
        %v3941 = vmax.f32 %v3661, %v3800
        %v3942 = vmax.f32 %v3662, %v3804
        %v3943 = vmax.f32 %v3663, %v3806
        %v3944 = vmax.f32 %v3664, %v3805
        %v3945 = vmax.f32 %v3665, %v3809
        %v3946 = vmax.f32 %v3666, %v3811
        %v3947 = vmax.f32 %v3667, %v3810
        %v3948 = vmax.f32 %v3668, %v3814
        %v3949 = vmax.f32 %v3669, %v3816
        %v3950 = vmax.f32 %v3670, %v3815
        %v3951 = vmax.f32 %v3671, %v3819
        %v3952 = vmax.f32 %v3672, %v3821
        %v3953 = vmax.f32 %v3673, %v3820
        %v3954 = vmax.f32 %v3674, %v3824
        %v3955 = vmax.f32 %v3675, %v3826
        %v3956 = vmax.f32 %v3676, %v3825
        %v3957 = vmax.f32 %v3677, %v3829
        %v3958 = vmax.f32 %v3678, %v3831
        %v3959 = vmax.f32 %v3679, %v3830
        %v3960 = vmax.f32 %v3680, %v3834
        %v3961 = vmax.f32 %v3681, %v3836
        %v3962 = vmax.f32 %v3682, %v3835
        %v3963 = vmax.f32 %v3683, %v3839
        %v3964 = vmax.f32 %v3684, %v3841
        %v3965 = vmax.f32 %v3685, %v3840
        %v3966 = vmax.f32 %v3686, %v3844
        %v3967 = vmax.f32 %v3687, %v3846
        %v3968 = vmax.f32 %v3688, %v3845
        %v3969 = vmax.f32 %v3689, %v3849
        %v3970 = vmax.f32 %v3690, %v3851
        %v3971 = vmax.f32 %v3691, %v3850
        %v3972 = vrot.slane %v3632, 2
        %v3973 = vrot.slane %v3633, 2
        %v3974 = vsel %vm2257, %v3972, %v3973
        %v3975 = vrot.slane %v3634, 2
        %v3976 = vsel %vm2257, %v3973, %v3975
        %v3977 = vrot.slane %v3635, 2
        %v3978 = vrot.slane %v3636, 2
        %v3979 = vsel %vm2257, %v3977, %v3978
        %v3980 = vrot.slane %v3637, 2
        %v3981 = vsel %vm2257, %v3978, %v3980
        %v3982 = vrot.slane %v3638, 2
        %v3983 = vrot.slane %v3639, 2
        %v3984 = vsel %vm2257, %v3982, %v3983
        %v3985 = vrot.slane %v3640, 2
        %v3986 = vsel %vm2257, %v3983, %v3985
        %v3987 = vrot.slane %v3641, 2
        %v3988 = vrot.slane %v3642, 2
        %v3989 = vsel %vm2257, %v3987, %v3988
        %v3990 = vrot.slane %v3643, 2
        %v3991 = vsel %vm2257, %v3988, %v3990
        %v3992 = vrot.slane %v3644, 2
        %v3993 = vrot.slane %v3645, 2
        %v3994 = vsel %vm2257, %v3992, %v3993
        %v3995 = vrot.slane %v3646, 2
        %v3996 = vsel %vm2257, %v3993, %v3995
        %v3997 = vrot.slane %v3647, 2
        %v3998 = vrot.slane %v3648, 2
        %v3999 = vsel %vm2257, %v3997, %v3998
        %v4000 = vrot.slane %v3649, 2
        %v4001 = vsel %vm2257, %v3998, %v4000
        %v4002 = vrot.slane %v3650, 2
        %v4003 = vrot.slane %v3651, 2
        %v4004 = vsel %vm2257, %v4002, %v4003
        %v4005 = vrot.slane %v3652, 2
        %v4006 = vsel %vm2257, %v4003, %v4005
        %v4007 = vrot.slane %v3653, 2
        %v4008 = vrot.slane %v3654, 2
        %v4009 = vsel %vm2257, %v4007, %v4008
        %v4010 = vrot.slane %v3655, 2
        %v4011 = vsel %vm2257, %v4008, %v4010
        %v4012 = vrot.slane %v3656, 2
        %v4013 = vrot.slane %v3657, 2
        %v4014 = vsel %vm2257, %v4012, %v4013
        %v4015 = vrot.slane %v3658, 2
        %v4016 = vsel %vm2257, %v4013, %v4015
        %v4017 = vrot.slane %v3659, 2
        %v4018 = vrot.slane %v3660, 2
        %v4019 = vsel %vm2257, %v4017, %v4018
        %v4020 = vrot.slane %v3661, 2
        %v4021 = vsel %vm2257, %v4018, %v4020
        %v4022 = vrot.slane %v3662, 2
        %v4023 = vrot.slane %v3663, 2
        %v4024 = vsel %vm2257, %v4022, %v4023
        %v4025 = vrot.slane %v3664, 2
        %v4026 = vsel %vm2257, %v4023, %v4025
        %v4027 = vrot.slane %v3665, 2
        %v4028 = vrot.slane %v3666, 2
        %v4029 = vsel %vm2257, %v4027, %v4028
        %v4030 = vrot.slane %v3667, 2
        %v4031 = vsel %vm2257, %v4028, %v4030
        %v4032 = vrot.slane %v3668, 2
        %v4033 = vrot.slane %v3669, 2
        %v4034 = vsel %vm2257, %v4032, %v4033
        %v4035 = vrot.slane %v3670, 2
        %v4036 = vsel %vm2257, %v4033, %v4035
        %v4037 = vrot.slane %v3671, 2
        %v4038 = vrot.slane %v3672, 2
        %v4039 = vsel %vm2257, %v4037, %v4038
        %v4040 = vrot.slane %v3673, 2
        %v4041 = vsel %vm2257, %v4038, %v4040
        %v4042 = vrot.slane %v3674, 2
        %v4043 = vrot.slane %v3675, 2
        %v4044 = vsel %vm2257, %v4042, %v4043
        %v4045 = vrot.slane %v3676, 2
        %v4046 = vsel %vm2257, %v4043, %v4045
        %v4047 = vrot.slane %v3677, 2
        %v4048 = vrot.slane %v3678, 2
        %v4049 = vsel %vm2257, %v4047, %v4048
        %v4050 = vrot.slane %v3679, 2
        %v4051 = vsel %vm2257, %v4048, %v4050
        %v4052 = vrot.slane %v3680, 2
        %v4053 = vrot.slane %v3681, 2
        %v4054 = vsel %vm2257, %v4052, %v4053
        %v4055 = vrot.slane %v3682, 2
        %v4056 = vsel %vm2257, %v4053, %v4055
        %v4057 = vrot.slane %v3683, 2
        %v4058 = vrot.slane %v3684, 2
        %v4059 = vsel %vm2257, %v4057, %v4058
        %v4060 = vrot.slane %v3685, 2
        %v4061 = vsel %vm2257, %v4058, %v4060
        %v4062 = vrot.slane %v3686, 2
        %v4063 = vrot.slane %v3687, 2
        %v4064 = vsel %vm2257, %v4062, %v4063
        %v4065 = vrot.slane %v3688, 2
        %v4066 = vsel %vm2257, %v4063, %v4065
        %v4067 = vrot.slane %v3689, 2
        %v4068 = vrot.slane %v3690, 2
        %v4069 = vsel %vm2257, %v4067, %v4068
        %v4070 = vrot.slane %v3691, 2
        %v4071 = vsel %vm2257, %v4068, %v4070
        %v4132 = vmax.f32 %v3912, %v3974
        %v4133 = vmax.f32 %v3913, %v3976
        %v4134 = vmax.f32 %v3914, %v3975
        %v4135 = vmax.f32 %v3915, %v3979
        %v4136 = vmax.f32 %v3916, %v3981
        %v4137 = vmax.f32 %v3917, %v3980
        %v4138 = vmax.f32 %v3918, %v3984
        %v4139 = vmax.f32 %v3919, %v3986
        %v4140 = vmax.f32 %v3920, %v3985
        %v4141 = vmax.f32 %v3921, %v3989
        %v4142 = vmax.f32 %v3922, %v3991
        %v4143 = vmax.f32 %v3923, %v3990
        %v4144 = vmax.f32 %v3924, %v3994
        %v4145 = vmax.f32 %v3925, %v3996
        %v4146 = vmax.f32 %v3926, %v3995
        %v4147 = vmax.f32 %v3927, %v3999
        %v4148 = vmax.f32 %v3928, %v4001
        %v4149 = vmax.f32 %v3929, %v4000
        %v4150 = vmax.f32 %v3930, %v4004
        %v4151 = vmax.f32 %v3931, %v4006
        %v4152 = vmax.f32 %v3932, %v4005
        %v4153 = vmax.f32 %v3933, %v4009
        %v4154 = vmax.f32 %v3934, %v4011
        %v4155 = vmax.f32 %v3935, %v4010
        %v4156 = vmax.f32 %v3936, %v4014
        %v4157 = vmax.f32 %v3937, %v4016
        %v4158 = vmax.f32 %v3938, %v4015
        %v4159 = vmax.f32 %v3939, %v4019
        %v4160 = vmax.f32 %v3940, %v4021
        %v4161 = vmax.f32 %v3941, %v4020
        %v4162 = vmax.f32 %v3942, %v4024
        %v4163 = vmax.f32 %v3943, %v4026
        %v4164 = vmax.f32 %v3944, %v4025
        %v4165 = vmax.f32 %v3945, %v4029
        %v4166 = vmax.f32 %v3946, %v4031
        %v4167 = vmax.f32 %v3947, %v4030
        %v4168 = vmax.f32 %v3948, %v4034
        %v4169 = vmax.f32 %v3949, %v4036
        %v4170 = vmax.f32 %v3950, %v4035
        %v4171 = vmax.f32 %v3951, %v4039
        %v4172 = vmax.f32 %v3952, %v4041
        %v4173 = vmax.f32 %v3953, %v4040
        %v4174 = vmax.f32 %v3954, %v4044
        %v4175 = vmax.f32 %v3955, %v4046
        %v4176 = vmax.f32 %v3956, %v4045
        %v4177 = vmax.f32 %v3957, %v4049
        %v4178 = vmax.f32 %v3958, %v4051
        %v4179 = vmax.f32 %v3959, %v4050
        %v4180 = vmax.f32 %v3960, %v4054
        %v4181 = vmax.f32 %v3961, %v4056
        %v4182 = vmax.f32 %v3962, %v4055
        %v4183 = vmax.f32 %v3963, %v4059
        %v4184 = vmax.f32 %v3964, %v4061
        %v4185 = vmax.f32 %v3965, %v4060
        %v4186 = vmax.f32 %v3966, %v4064
        %v4187 = vmax.f32 %v3967, %v4066
        %v4188 = vmax.f32 %v3968, %v4065
        %v4189 = vmax.f32 %v3969, %v4069
        %v4190 = vmax.f32 %v3970, %v4071
        %v4191 = vmax.f32 %v3971, %v4070
        %v4192 = vrot.slane %v3632, 3
        %v4193 = vrot.slane %v3633, 3
        %v4194 = vsel %vm2570, %v4192, %v4193
        %v4195 = vrot.slane %v3634, 3
        %v4196 = vsel %vm2570, %v4193, %v4195
        %v4197 = vrot.slane %v3635, 3
        %v4198 = vrot.slane %v3636, 3
        %v4199 = vsel %vm2570, %v4197, %v4198
        %v4200 = vrot.slane %v3637, 3
        %v4201 = vsel %vm2570, %v4198, %v4200
        %v4202 = vrot.slane %v3638, 3
        %v4203 = vrot.slane %v3639, 3
        %v4204 = vsel %vm2570, %v4202, %v4203
        %v4205 = vrot.slane %v3640, 3
        %v4206 = vsel %vm2570, %v4203, %v4205
        %v4207 = vrot.slane %v3641, 3
        %v4208 = vrot.slane %v3642, 3
        %v4209 = vsel %vm2570, %v4207, %v4208
        %v4210 = vrot.slane %v3643, 3
        %v4211 = vsel %vm2570, %v4208, %v4210
        %v4212 = vrot.slane %v3644, 3
        %v4213 = vrot.slane %v3645, 3
        %v4214 = vsel %vm2570, %v4212, %v4213
        %v4215 = vrot.slane %v3646, 3
        %v4216 = vsel %vm2570, %v4213, %v4215
        %v4217 = vrot.slane %v3647, 3
        %v4218 = vrot.slane %v3648, 3
        %v4219 = vsel %vm2570, %v4217, %v4218
        %v4220 = vrot.slane %v3649, 3
        %v4221 = vsel %vm2570, %v4218, %v4220
        %v4222 = vrot.slane %v3650, 3
        %v4223 = vrot.slane %v3651, 3
        %v4224 = vsel %vm2570, %v4222, %v4223
        %v4225 = vrot.slane %v3652, 3
        %v4226 = vsel %vm2570, %v4223, %v4225
        %v4227 = vrot.slane %v3653, 3
        %v4228 = vrot.slane %v3654, 3
        %v4229 = vsel %vm2570, %v4227, %v4228
        %v4230 = vrot.slane %v3655, 3
        %v4231 = vsel %vm2570, %v4228, %v4230
        %v4232 = vrot.slane %v3656, 3
        %v4233 = vrot.slane %v3657, 3
        %v4234 = vsel %vm2570, %v4232, %v4233
        %v4235 = vrot.slane %v3658, 3
        %v4236 = vsel %vm2570, %v4233, %v4235
        %v4237 = vrot.slane %v3659, 3
        %v4238 = vrot.slane %v3660, 3
        %v4239 = vsel %vm2570, %v4237, %v4238
        %v4240 = vrot.slane %v3661, 3
        %v4241 = vsel %vm2570, %v4238, %v4240
        %v4242 = vrot.slane %v3662, 3
        %v4243 = vrot.slane %v3663, 3
        %v4244 = vsel %vm2570, %v4242, %v4243
        %v4245 = vrot.slane %v3664, 3
        %v4246 = vsel %vm2570, %v4243, %v4245
        %v4247 = vrot.slane %v3665, 3
        %v4248 = vrot.slane %v3666, 3
        %v4249 = vsel %vm2570, %v4247, %v4248
        %v4250 = vrot.slane %v3667, 3
        %v4251 = vsel %vm2570, %v4248, %v4250
        %v4252 = vrot.slane %v3668, 3
        %v4253 = vrot.slane %v3669, 3
        %v4254 = vsel %vm2570, %v4252, %v4253
        %v4255 = vrot.slane %v3670, 3
        %v4256 = vsel %vm2570, %v4253, %v4255
        %v4257 = vrot.slane %v3671, 3
        %v4258 = vrot.slane %v3672, 3
        %v4259 = vsel %vm2570, %v4257, %v4258
        %v4260 = vrot.slane %v3673, 3
        %v4261 = vsel %vm2570, %v4258, %v4260
        %v4262 = vrot.slane %v3674, 3
        %v4263 = vrot.slane %v3675, 3
        %v4264 = vsel %vm2570, %v4262, %v4263
        %v4265 = vrot.slane %v3676, 3
        %v4266 = vsel %vm2570, %v4263, %v4265
        %v4267 = vrot.slane %v3677, 3
        %v4268 = vrot.slane %v3678, 3
        %v4269 = vsel %vm2570, %v4267, %v4268
        %v4270 = vrot.slane %v3679, 3
        %v4271 = vsel %vm2570, %v4268, %v4270
        %v4272 = vrot.slane %v3680, 3
        %v4273 = vrot.slane %v3681, 3
        %v4274 = vsel %vm2570, %v4272, %v4273
        %v4275 = vrot.slane %v3682, 3
        %v4276 = vsel %vm2570, %v4273, %v4275
        %v4277 = vrot.slane %v3683, 3
        %v4278 = vrot.slane %v3684, 3
        %v4279 = vsel %vm2570, %v4277, %v4278
        %v4280 = vrot.slane %v3685, 3
        %v4281 = vsel %vm2570, %v4278, %v4280
        %v4282 = vrot.slane %v3686, 3
        %v4283 = vrot.slane %v3687, 3
        %v4284 = vsel %vm2570, %v4282, %v4283
        %v4285 = vrot.slane %v3688, 3
        %v4286 = vsel %vm2570, %v4283, %v4285
        %v4287 = vrot.slane %v3689, 3
        %v4288 = vrot.slane %v3690, 3
        %v4289 = vsel %vm2570, %v4287, %v4288
        %v4290 = vrot.slane %v3691, 3
        %v4291 = vsel %vm2570, %v4288, %v4290
        %v4352 = vmax.f32 %v4132, %v4194
        %v4353 = vmax.f32 %v4133, %v4196
        %v4354 = vmax.f32 %v4134, %v4195
        %v4355 = vmax.f32 %v4135, %v4199
        %v4356 = vmax.f32 %v4136, %v4201
        %v4357 = vmax.f32 %v4137, %v4200
        %v4358 = vmax.f32 %v4138, %v4204
        %v4359 = vmax.f32 %v4139, %v4206
        %v4360 = vmax.f32 %v4140, %v4205
        %v4361 = vmax.f32 %v4141, %v4209
        %v4362 = vmax.f32 %v4142, %v4211
        %v4363 = vmax.f32 %v4143, %v4210
        %v4364 = vmax.f32 %v4144, %v4214
        %v4365 = vmax.f32 %v4145, %v4216
        %v4366 = vmax.f32 %v4146, %v4215
        %v4367 = vmax.f32 %v4147, %v4219
        %v4368 = vmax.f32 %v4148, %v4221
        %v4369 = vmax.f32 %v4149, %v4220
        %v4370 = vmax.f32 %v4150, %v4224
        %v4371 = vmax.f32 %v4151, %v4226
        %v4372 = vmax.f32 %v4152, %v4225
        %v4373 = vmax.f32 %v4153, %v4229
        %v4374 = vmax.f32 %v4154, %v4231
        %v4375 = vmax.f32 %v4155, %v4230
        %v4376 = vmax.f32 %v4156, %v4234
        %v4377 = vmax.f32 %v4157, %v4236
        %v4378 = vmax.f32 %v4158, %v4235
        %v4379 = vmax.f32 %v4159, %v4239
        %v4380 = vmax.f32 %v4160, %v4241
        %v4381 = vmax.f32 %v4161, %v4240
        %v4382 = vmax.f32 %v4162, %v4244
        %v4383 = vmax.f32 %v4163, %v4246
        %v4384 = vmax.f32 %v4164, %v4245
        %v4385 = vmax.f32 %v4165, %v4249
        %v4386 = vmax.f32 %v4166, %v4251
        %v4387 = vmax.f32 %v4167, %v4250
        %v4388 = vmax.f32 %v4168, %v4254
        %v4389 = vmax.f32 %v4169, %v4256
        %v4390 = vmax.f32 %v4170, %v4255
        %v4391 = vmax.f32 %v4171, %v4259
        %v4392 = vmax.f32 %v4172, %v4261
        %v4393 = vmax.f32 %v4173, %v4260
        %v4394 = vmax.f32 %v4174, %v4264
        %v4395 = vmax.f32 %v4175, %v4266
        %v4396 = vmax.f32 %v4176, %v4265
        %v4397 = vmax.f32 %v4177, %v4269
        %v4398 = vmax.f32 %v4178, %v4271
        %v4399 = vmax.f32 %v4179, %v4270
        %v4400 = vmax.f32 %v4180, %v4274
        %v4401 = vmax.f32 %v4181, %v4276
        %v4402 = vmax.f32 %v4182, %v4275
        %v4403 = vmax.f32 %v4183, %v4279
        %v4404 = vmax.f32 %v4184, %v4281
        %v4405 = vmax.f32 %v4185, %v4280
        %v4406 = vmax.f32 %v4186, %v4284
        %v4407 = vmax.f32 %v4187, %v4286
        %v4408 = vmax.f32 %v4188, %v4285
        %v4409 = vmax.f32 %v4189, %v4289
        %v4410 = vmax.f32 %v4190, %v4291
        %v4411 = vmax.f32 %v4191, %v4290
        %v4412 = vrot.slane %v3632, 4
        %v4413 = vrot.slane %v3633, 4
        %v4414 = vsel %vm416, %v4412, %v4413
        %v4415 = vrot.slane %v3634, 4
        %v4416 = vsel %vm416, %v4413, %v4415
        %v4417 = vrot.slane %v3635, 4
        %v4418 = vrot.slane %v3636, 4
        %v4419 = vsel %vm416, %v4417, %v4418
        %v4420 = vrot.slane %v3637, 4
        %v4421 = vsel %vm416, %v4418, %v4420
        %v4422 = vrot.slane %v3638, 4
        %v4423 = vrot.slane %v3639, 4
        %v4424 = vsel %vm416, %v4422, %v4423
        %v4425 = vrot.slane %v3640, 4
        %v4426 = vsel %vm416, %v4423, %v4425
        %v4427 = vrot.slane %v3641, 4
        %v4428 = vrot.slane %v3642, 4
        %v4429 = vsel %vm416, %v4427, %v4428
        %v4430 = vrot.slane %v3643, 4
        %v4431 = vsel %vm416, %v4428, %v4430
        %v4432 = vrot.slane %v3644, 4
        %v4433 = vrot.slane %v3645, 4
        %v4434 = vsel %vm416, %v4432, %v4433
        %v4435 = vrot.slane %v3646, 4
        %v4436 = vsel %vm416, %v4433, %v4435
        %v4437 = vrot.slane %v3647, 4
        %v4438 = vrot.slane %v3648, 4
        %v4439 = vsel %vm416, %v4437, %v4438
        %v4440 = vrot.slane %v3649, 4
        %v4441 = vsel %vm416, %v4438, %v4440
        %v4442 = vrot.slane %v3650, 4
        %v4443 = vrot.slane %v3651, 4
        %v4444 = vsel %vm416, %v4442, %v4443
        %v4445 = vrot.slane %v3652, 4
        %v4446 = vsel %vm416, %v4443, %v4445
        %v4447 = vrot.slane %v3653, 4
        %v4448 = vrot.slane %v3654, 4
        %v4449 = vsel %vm416, %v4447, %v4448
        %v4450 = vrot.slane %v3655, 4
        %v4451 = vsel %vm416, %v4448, %v4450
        %v4452 = vrot.slane %v3656, 4
        %v4453 = vrot.slane %v3657, 4
        %v4454 = vsel %vm416, %v4452, %v4453
        %v4455 = vrot.slane %v3658, 4
        %v4456 = vsel %vm416, %v4453, %v4455
        %v4457 = vrot.slane %v3659, 4
        %v4458 = vrot.slane %v3660, 4
        %v4459 = vsel %vm416, %v4457, %v4458
        %v4460 = vrot.slane %v3661, 4
        %v4461 = vsel %vm416, %v4458, %v4460
        %v4462 = vrot.slane %v3662, 4
        %v4463 = vrot.slane %v3663, 4
        %v4464 = vsel %vm416, %v4462, %v4463
        %v4465 = vrot.slane %v3664, 4
        %v4466 = vsel %vm416, %v4463, %v4465
        %v4467 = vrot.slane %v3665, 4
        %v4468 = vrot.slane %v3666, 4
        %v4469 = vsel %vm416, %v4467, %v4468
        %v4470 = vrot.slane %v3667, 4
        %v4471 = vsel %vm416, %v4468, %v4470
        %v4472 = vrot.slane %v3668, 4
        %v4473 = vrot.slane %v3669, 4
        %v4474 = vsel %vm416, %v4472, %v4473
        %v4475 = vrot.slane %v3670, 4
        %v4476 = vsel %vm416, %v4473, %v4475
        %v4477 = vrot.slane %v3671, 4
        %v4478 = vrot.slane %v3672, 4
        %v4479 = vsel %vm416, %v4477, %v4478
        %v4480 = vrot.slane %v3673, 4
        %v4481 = vsel %vm416, %v4478, %v4480
        %v4482 = vrot.slane %v3674, 4
        %v4483 = vrot.slane %v3675, 4
        %v4484 = vsel %vm416, %v4482, %v4483
        %v4485 = vrot.slane %v3676, 4
        %v4486 = vsel %vm416, %v4483, %v4485
        %v4487 = vrot.slane %v3677, 4
        %v4488 = vrot.slane %v3678, 4
        %v4489 = vsel %vm416, %v4487, %v4488
        %v4490 = vrot.slane %v3679, 4
        %v4491 = vsel %vm416, %v4488, %v4490
        %v4492 = vrot.slane %v3680, 4
        %v4493 = vrot.slane %v3681, 4
        %v4494 = vsel %vm416, %v4492, %v4493
        %v4495 = vrot.slane %v3682, 4
        %v4496 = vsel %vm416, %v4493, %v4495
        %v4497 = vrot.slane %v3683, 4
        %v4498 = vrot.slane %v3684, 4
        %v4499 = vsel %vm416, %v4497, %v4498
        %v4500 = vrot.slane %v3685, 4
        %v4501 = vsel %vm416, %v4498, %v4500
        %v4502 = vrot.slane %v3686, 4
        %v4503 = vrot.slane %v3687, 4
        %v4504 = vsel %vm416, %v4502, %v4503
        %v4505 = vrot.slane %v3688, 4
        %v4506 = vsel %vm416, %v4503, %v4505
        %v4507 = vrot.slane %v3689, 4
        %v4508 = vrot.slane %v3690, 4
        %v4509 = vsel %vm416, %v4507, %v4508
        %v4510 = vrot.slane %v3691, 4
        %v4511 = vsel %vm416, %v4508, %v4510
        %v4572 = vmax.f32 %v4352, %v4414
        %v4573 = vmax.f32 %v4353, %v4416
        %v4574 = vmax.f32 %v4354, %v4415
        %v4575 = vmax.f32 %v4355, %v4419
        %v4576 = vmax.f32 %v4356, %v4421
        %v4577 = vmax.f32 %v4357, %v4420
        %v4578 = vmax.f32 %v4358, %v4424
        %v4579 = vmax.f32 %v4359, %v4426
        %v4580 = vmax.f32 %v4360, %v4425
        %v4581 = vmax.f32 %v4361, %v4429
        %v4582 = vmax.f32 %v4362, %v4431
        %v4583 = vmax.f32 %v4363, %v4430
        %v4584 = vmax.f32 %v4364, %v4434
        %v4585 = vmax.f32 %v4365, %v4436
        %v4586 = vmax.f32 %v4366, %v4435
        %v4587 = vmax.f32 %v4367, %v4439
        %v4588 = vmax.f32 %v4368, %v4441
        %v4589 = vmax.f32 %v4369, %v4440
        %v4590 = vmax.f32 %v4370, %v4444
        %v4591 = vmax.f32 %v4371, %v4446
        %v4592 = vmax.f32 %v4372, %v4445
        %v4593 = vmax.f32 %v4373, %v4449
        %v4594 = vmax.f32 %v4374, %v4451
        %v4595 = vmax.f32 %v4375, %v4450
        %v4596 = vmax.f32 %v4376, %v4454
        %v4597 = vmax.f32 %v4377, %v4456
        %v4598 = vmax.f32 %v4378, %v4455
        %v4599 = vmax.f32 %v4379, %v4459
        %v4600 = vmax.f32 %v4380, %v4461
        %v4601 = vmax.f32 %v4381, %v4460
        %v4602 = vmax.f32 %v4382, %v4464
        %v4603 = vmax.f32 %v4383, %v4466
        %v4604 = vmax.f32 %v4384, %v4465
        %v4605 = vmax.f32 %v4385, %v4469
        %v4606 = vmax.f32 %v4386, %v4471
        %v4607 = vmax.f32 %v4387, %v4470
        %v4608 = vmax.f32 %v4388, %v4474
        %v4609 = vmax.f32 %v4389, %v4476
        %v4610 = vmax.f32 %v4390, %v4475
        %v4611 = vmax.f32 %v4391, %v4479
        %v4612 = vmax.f32 %v4392, %v4481
        %v4613 = vmax.f32 %v4393, %v4480
        %v4614 = vmax.f32 %v4394, %v4484
        %v4615 = vmax.f32 %v4395, %v4486
        %v4616 = vmax.f32 %v4396, %v4485
        %v4617 = vmax.f32 %v4397, %v4489
        %v4618 = vmax.f32 %v4398, %v4491
        %v4619 = vmax.f32 %v4399, %v4490
        %v4620 = vmax.f32 %v4400, %v4494
        %v4621 = vmax.f32 %v4401, %v4496
        %v4622 = vmax.f32 %v4402, %v4495
        %v4623 = vmax.f32 %v4403, %v4499
        %v4624 = vmax.f32 %v4404, %v4501
        %v4625 = vmax.f32 %v4405, %v4500
        %v4626 = vmax.f32 %v4406, %v4504
        %v4627 = vmax.f32 %v4407, %v4506
        %v4628 = vmax.f32 %v4408, %v4505
        %v4629 = vmax.f32 %v4409, %v4509
        %v4630 = vmax.f32 %v4410, %v4511
        %v4631 = vmax.f32 %v4411, %v4510
        %v4680 = vrot.slane %v4578, 2
        %v4681 = vrot.slane %v4579, 2
        %v4682 = vsel %vm2257, %v4680, %v4681
        %v4683 = vrot.slane %v4580, 2
        %v4684 = vsel %vm2257, %v4681, %v4683
        %v4685 = vrot.slane %v4581, 2
        %v4686 = vrot.slane %v4582, 2
        %v4687 = vsel %vm2257, %v4685, %v4686
        %v4688 = vrot.slane %v4583, 2
        %v4689 = vsel %vm2257, %v4686, %v4688
        %v4690 = vrot.slane %v4584, 2
        %v4691 = vrot.slane %v4585, 2
        %v4692 = vsel %vm2257, %v4690, %v4691
        %v4693 = vrot.slane %v4586, 2
        %v4694 = vsel %vm2257, %v4691, %v4693
        %v4695 = vrot.slane %v4587, 2
        %v4696 = vrot.slane %v4588, 2
        %v4697 = vsel %vm2257, %v4695, %v4696
        %v4698 = vrot.slane %v4589, 2
        %v4699 = vsel %vm2257, %v4696, %v4698
        %v4700 = vrot.slane %v4590, 2
        %v4701 = vrot.slane %v4591, 2
        %v4702 = vsel %vm2257, %v4700, %v4701
        %v4703 = vrot.slane %v4592, 2
        %v4704 = vsel %vm2257, %v4701, %v4703
        %v4705 = vrot.slane %v4593, 2
        %v4706 = vrot.slane %v4594, 2
        %v4707 = vsel %vm2257, %v4705, %v4706
        %v4708 = vrot.slane %v4595, 2
        %v4709 = vsel %vm2257, %v4706, %v4708
        %v4710 = vrot.slane %v4596, 2
        %v4711 = vrot.slane %v4597, 2
        %v4712 = vsel %vm2257, %v4710, %v4711
        %v4713 = vrot.slane %v4598, 2
        %v4714 = vsel %vm2257, %v4711, %v4713
        %v4715 = vrot.slane %v4599, 2
        %v4716 = vrot.slane %v4600, 2
        %v4717 = vsel %vm2257, %v4715, %v4716
        %v4718 = vrot.slane %v4601, 2
        %v4719 = vsel %vm2257, %v4716, %v4718
        %v4720 = vrot.slane %v4602, 2
        %v4721 = vrot.slane %v4603, 2
        %v4722 = vsel %vm2257, %v4720, %v4721
        %v4723 = vrot.slane %v4604, 2
        %v4724 = vsel %vm2257, %v4721, %v4723
        %v4725 = vrot.slane %v4605, 2
        %v4726 = vrot.slane %v4606, 2
        %v4727 = vsel %vm2257, %v4725, %v4726
        %v4728 = vrot.slane %v4607, 2
        %v4729 = vsel %vm2257, %v4726, %v4728
        %v4730 = vrot.slane %v4608, 2
        %v4731 = vrot.slane %v4609, 2
        %v4732 = vsel %vm2257, %v4730, %v4731
        %v4733 = vrot.slane %v4610, 2
        %v4734 = vsel %vm2257, %v4731, %v4733
        %v4735 = vrot.slane %v4611, 2
        %v4736 = vrot.slane %v4612, 2
        %v4737 = vsel %vm2257, %v4735, %v4736
        %v4738 = vrot.slane %v4613, 2
        %v4739 = vsel %vm2257, %v4736, %v4738
        %v4740 = vrot.slane %v4614, 2
        %v4741 = vrot.slane %v4615, 2
        %v4742 = vsel %vm2257, %v4740, %v4741
        %v4743 = vrot.slane %v4616, 2
        %v4744 = vsel %vm2257, %v4741, %v4743
        %v4745 = vrot.slane %v4617, 2
        %v4746 = vrot.slane %v4618, 2
        %v4747 = vsel %vm2257, %v4745, %v4746
        %v4748 = vrot.slane %v4619, 2
        %v4749 = vsel %vm2257, %v4746, %v4748
        %v4750 = vrot.slane %v4620, 2
        %v4751 = vrot.slane %v4621, 2
        %v4752 = vsel %vm2257, %v4750, %v4751
        %v4753 = vrot.slane %v4622, 2
        %v4754 = vsel %vm2257, %v4751, %v4753
        %v4755 = vrot.slane %v4623, 2
        %v4756 = vrot.slane %v4624, 2
        %v4757 = vsel %vm2257, %v4755, %v4756
        %v4758 = vrot.slane %v4625, 2
        %v4759 = vsel %vm2257, %v4756, %v4758
        %4760 = vrot.lane.b32.xlu0 %v4682, 4
        %v4761 = vpop.permute.xlu0 %4760
        %4762 = vrot.lane.b32.xlu0 %v4684, 4
        %v4763 = vpop.permute.xlu0 %4762
        %4764 = vrot.lane.b32.xlu0 %v4687, 4
        %v4765 = vpop.permute.xlu0 %4764
        %4766 = vrot.lane.b32.xlu0 %v4689, 4
        %v4767 = vpop.permute.xlu0 %4766
        %4768 = vrot.lane.b32.xlu0 %v4692, 4
        %v4769 = vpop.permute.xlu0 %4768
        %4770 = vrot.lane.b32.xlu0 %v4694, 4
        %v4771 = vpop.permute.xlu0 %4770
        %4772 = vrot.lane.b32.xlu0 %v4697, 4
        %v4773 = vpop.permute.xlu0 %4772
        %4774 = vrot.lane.b32.xlu0 %v4699, 4
        %v4775 = vpop.permute.xlu0 %4774
        %4776 = vrot.lane.b32.xlu0 %v4702, 4
        %v4777 = vpop.permute.xlu0 %4776
        %4778 = vrot.lane.b32.xlu0 %v4704, 4
        %v4779 = vpop.permute.xlu0 %4778
        %4780 = vrot.lane.b32.xlu0 %v4707, 4
        %v4781 = vpop.permute.xlu0 %4780
        %4782 = vrot.lane.b32.xlu0 %v4709, 4
        %v4783 = vpop.permute.xlu0 %4782
        %4784 = vrot.lane.b32.xlu0 %v4712, 4
        %v4785 = vpop.permute.xlu0 %4784
        %4786 = vrot.lane.b32.xlu0 %v4714, 4
        %v4787 = vpop.permute.xlu0 %4786
        %4788 = vrot.lane.b32.xlu0 %v4717, 4
        %v4789 = vpop.permute.xlu0 %4788
        %4790 = vrot.lane.b32.xlu0 %v4719, 4
        %v4791 = vpop.permute.xlu0 %4790
        %4792 = vrot.lane.b32.xlu0 %v4722, 4
        %v4793 = vpop.permute.xlu0 %4792
        %4794 = vrot.lane.b32.xlu0 %v4724, 4
        %v4795 = vpop.permute.xlu0 %4794
        %4796 = vrot.lane.b32.xlu0 %v4727, 4
        %v4797 = vpop.permute.xlu0 %4796
        %4798 = vrot.lane.b32.xlu0 %v4729, 4
        %v4799 = vpop.permute.xlu0 %4798
        %4800 = vrot.lane.b32.xlu0 %v4732, 4
        %v4801 = vpop.permute.xlu0 %4800
        %4802 = vrot.lane.b32.xlu0 %v4734, 4
        %v4803 = vpop.permute.xlu0 %4802
        %4804 = vrot.lane.b32.xlu0 %v4737, 4
        %v4805 = vpop.permute.xlu0 %4804
        %4806 = vrot.lane.b32.xlu0 %v4739, 4
        %v4807 = vpop.permute.xlu0 %4806
        %4808 = vrot.lane.b32.xlu0 %v4742, 4
        %v4809 = vpop.permute.xlu0 %4808
        %4810 = vrot.lane.b32.xlu0 %v4744, 4
        %v4811 = vpop.permute.xlu0 %4810
        %4812 = vrot.lane.b32.xlu0 %v4747, 4
        %v4813 = vpop.permute.xlu0 %4812
        %4814 = vrot.lane.b32.xlu0 %v4749, 4
        %v4815 = vpop.permute.xlu0 %4814
        %4816 = vrot.lane.b32.xlu0 %v4752, 4
        %v4817 = vpop.permute.xlu0 %4816
        %4818 = vrot.lane.b32.xlu0 %v4754, 4
        %v4819 = vpop.permute.xlu0 %4818
        %4820 = vrot.lane.b32.xlu0 %v4757, 4
        %v4821 = vpop.permute.xlu0 %4820
        %4822 = vrot.lane.b32.xlu0 %v4759, 4
        %v4823 = vpop.permute.xlu0 %4822
        %vm4856 = vcmask 48160
        %4857 = vst.msk [vmem:[#allocation3] sm:$0xff] %vm4856, %v4761
        %4858 = vst.msk [vmem:[#allocation3 + $0x8] sm:$0xff] %vm4856, %v4763
        %4859 = vst.msk [vmem:[#allocation3 + $0x10] sm:$0xff] %vm4856, %v4765
        %4860 = vst.msk [vmem:[#allocation3 + $0x18] sm:$0xff] %vm4856, %v4767
        %4861 = vst.msk [vmem:[#allocation3 + $0x20] sm:$0xff] %vm4856, %v4769
        %4862 = vst.msk [vmem:[#allocation3 + $0x28] sm:$0xff] %vm4856, %v4771
        %4863 = vst.msk [vmem:[#allocation3 + $0x30] sm:$0xff] %vm4856, %v4773
        %4864 = vst.msk [vmem:[#allocation3 + $0x38] sm:$0xff] %vm4856, %v4775
        %4865 = vst.msk [vmem:[#allocation3 + $0x40] sm:$0xff] %vm4856, %v4777
        %4866 = vst.msk [vmem:[#allocation3 + $0x48] sm:$0xff] %vm4856, %v4779
        %4867 = vst.msk [vmem:[#allocation3 + $0x50] sm:$0xff] %vm4856, %v4781
        %4868 = vst.msk [vmem:[#allocation3 + $0x58] sm:$0xff] %vm4856, %v4783
        %4869 = vst.msk [vmem:[#allocation3 + $0x60] sm:$0xff] %vm4856, %v4785
        %4870 = vst.msk [vmem:[#allocation3 + $0x68] sm:$0xff] %vm4856, %v4787
        %4871 = vst.msk [vmem:[#allocation3 + $0x70] sm:$0xff] %vm4856, %v4789
        %4872 = vst.msk [vmem:[#allocation3 + $0x78] sm:$0xff] %vm4856, %v4791
        %4873 = vst.msk [vmem:[#allocation3 + $0x80] sm:$0xff] %vm4856, %v4793
        %4874 = vst.msk [vmem:[#allocation3 + $0x88] sm:$0xff] %vm4856, %v4795
        %4875 = vst.msk [vmem:[#allocation3 + $0x90] sm:$0xff] %vm4856, %v4797
        %4876 = vst.msk [vmem:[#allocation3 + $0x98] sm:$0xff] %vm4856, %v4799
        %4877 = vst.msk [vmem:[#allocation3 + $0xa0] sm:$0xff] %vm4856, %v4801
        %4878 = vst.msk [vmem:[#allocation3 + $0xa8] sm:$0xff] %vm4856, %v4803
        %4879 = vst.msk [vmem:[#allocation3 + $0xb0] sm:$0xff] %vm4856, %v4805
        %4880 = vst.msk [vmem:[#allocation3 + $0xb8] sm:$0xff] %vm4856, %v4807
        %4881 = vst.msk [vmem:[#allocation3 + $0xc0] sm:$0xff] %vm4856, %v4809
        %4882 = vst.msk [vmem:[#allocation3 + $0xc8] sm:$0xff] %vm4856, %v4811
        %4883 = vst.msk [vmem:[#allocation3 + $0xd0] sm:$0xff] %vm4856, %v4813
        %4884 = vst.msk [vmem:[#allocation3 + $0xd8] sm:$0xff] %vm4856, %v4815
        %4885 = vst.msk [vmem:[#allocation3 + $0xe0] sm:$0xff] %vm4856, %v4817
        %4886 = vst.msk [vmem:[#allocation3 + $0xe8] sm:$0xff] %vm4856, %v4819
        %4887 = vst.msk [vmem:[#allocation3 + $0xf0] sm:$0xff] %vm4856, %v4821
        %4888 = vst.msk [vmem:[#allocation3 + $0xf8] sm:$0xff] %vm4856, %v4823
        %v4889 = vmax.f32 %v4572, %v4575
        %v4890 = vmax.f32 %v4573, %v4576
        %v4891 = vmax.f32 %v4574, %v4577
        %v4892 = vmax.f32 %v4575, %v4578
        %v4893 = vmax.f32 %v4576, %v4579
        %v4894 = vmax.f32 %v4577, %v4580
        %v4895 = vmax.f32 %v4578, %v4581
        %v4896 = vmax.f32 %v4579, %v4582
        %v4897 = vmax.f32 %v4580, %v4583
        %v4898 = vmax.f32 %v4581, %v4584
        %v4899 = vmax.f32 %v4582, %v4585
        %v4900 = vmax.f32 %v4583, %v4586
        %v4901 = vmax.f32 %v4584, %v4587
        %v4902 = vmax.f32 %v4585, %v4588
        %v4903 = vmax.f32 %v4586, %v4589
        %v4904 = vmax.f32 %v4587, %v4590
        %v4905 = vmax.f32 %v4588, %v4591
        %v4906 = vmax.f32 %v4589, %v4592
        %v4907 = vmax.f32 %v4590, %v4593
        %v4908 = vmax.f32 %v4591, %v4594
        %v4909 = vmax.f32 %v4592, %v4595
        %v4910 = vmax.f32 %v4593, %v4596
        %v4911 = vmax.f32 %v4594, %v4597
        %v4912 = vmax.f32 %v4595, %v4598
        %v4913 = vmax.f32 %v4596, %v4599
        %v4914 = vmax.f32 %v4597, %v4600
        %v4915 = vmax.f32 %v4598, %v4601
        %v4916 = vmax.f32 %v4599, %v4602
        %v4917 = vmax.f32 %v4600, %v4603
        %v4918 = vmax.f32 %v4601, %v4604
        %v4919 = vmax.f32 %v4602, %v4605
        %v4920 = vmax.f32 %v4603, %v4606
        %v4921 = vmax.f32 %v4604, %v4607
        %v4922 = vmax.f32 %v4605, %v4608
        %v4923 = vmax.f32 %v4606, %v4609
        %v4924 = vmax.f32 %v4607, %v4610
        %v4925 = vmax.f32 %v4608, %v4611
        %v4926 = vmax.f32 %v4609, %v4612
        %v4927 = vmax.f32 %v4610, %v4613
        %v4928 = vmax.f32 %v4611, %v4614
        %v4929 = vmax.f32 %v4612, %v4615
        %v4930 = vmax.f32 %v4613, %v4616
        %v4931 = vmax.f32 %v4614, %v4617
        %v4932 = vmax.f32 %v4615, %v4618
        %v4933 = vmax.f32 %v4616, %v4619
        %v4934 = vmax.f32 %v4617, %v4620
        %v4935 = vmax.f32 %v4618, %v4621
        %v4936 = vmax.f32 %v4619, %v4622
        %v4937 = vmax.f32 %v4889, %v4578
        %v4938 = vmax.f32 %v4890, %v4579
        %v4939 = vmax.f32 %v4891, %v4580
        %v4940 = vmax.f32 %v4892, %v4581
        %v4941 = vmax.f32 %v4893, %v4582
        %v4942 = vmax.f32 %v4894, %v4583
        %v4943 = vmax.f32 %v4895, %v4584
        %v4944 = vmax.f32 %v4896, %v4585
        %v4945 = vmax.f32 %v4897, %v4586
        %v4946 = vmax.f32 %v4898, %v4587
        %v4947 = vmax.f32 %v4899, %v4588
        %v4948 = vmax.f32 %v4900, %v4589
        %v4949 = vmax.f32 %v4901, %v4590
        %v4950 = vmax.f32 %v4902, %v4591
        %v4951 = vmax.f32 %v4903, %v4592
        %v4952 = vmax.f32 %v4904, %v4593
        %v4953 = vmax.f32 %v4905, %v4594
        %v4954 = vmax.f32 %v4906, %v4595
        %v4955 = vmax.f32 %v4907, %v4596
        %v4956 = vmax.f32 %v4908, %v4597
        %v4957 = vmax.f32 %v4909, %v4598
        %v4958 = vmax.f32 %v4910, %v4599
        %v4959 = vmax.f32 %v4911, %v4600
        %v4960 = vmax.f32 %v4912, %v4601
        %v4961 = vmax.f32 %v4913, %v4602
        %v4962 = vmax.f32 %v4914, %v4603
        %v4963 = vmax.f32 %v4915, %v4604
        %v4964 = vmax.f32 %v4916, %v4605
        %v4965 = vmax.f32 %v4917, %v4606
        %v4966 = vmax.f32 %v4918, %v4607
        %v4967 = vmax.f32 %v4919, %v4608
        %v4968 = vmax.f32 %v4920, %v4609
        %v4969 = vmax.f32 %v4921, %v4610
        %v4970 = vmax.f32 %v4922, %v4611
        %v4971 = vmax.f32 %v4923, %v4612
        %v4972 = vmax.f32 %v4924, %v4613
        %v4973 = vmax.f32 %v4925, %v4614
        %v4974 = vmax.f32 %v4926, %v4615
        %v4975 = vmax.f32 %v4927, %v4616
        %v4976 = vmax.f32 %v4928, %v4617
        %v4977 = vmax.f32 %v4929, %v4618
        %v4978 = vmax.f32 %v4930, %v4619
        %v4979 = vmax.f32 %v4931, %v4620
        %v4980 = vmax.f32 %v4932, %v4621
        %v4981 = vmax.f32 %v4933, %v4622
        %v4982 = vmax.f32 %v4934, %v4623
        %v4983 = vmax.f32 %v4935, %v4624
        %v4984 = vmax.f32 %v4936, %v4625
        %v4985 = vmax.f32 %v4937, %v4581
        %v4986 = vmax.f32 %v4938, %v4582
        %v4987 = vmax.f32 %v4939, %v4583
        %v4988 = vmax.f32 %v4940, %v4584
        %v4989 = vmax.f32 %v4941, %v4585
        %v4990 = vmax.f32 %v4942, %v4586
        %v4991 = vmax.f32 %v4943, %v4587
        %v4992 = vmax.f32 %v4944, %v4588
        %v4993 = vmax.f32 %v4945, %v4589
        %v4994 = vmax.f32 %v4946, %v4590
        %v4995 = vmax.f32 %v4947, %v4591
        %v4996 = vmax.f32 %v4948, %v4592
        %v4997 = vmax.f32 %v4949, %v4593
        %v4998 = vmax.f32 %v4950, %v4594
        %v4999 = vmax.f32 %v4951, %v4595
        %v5000 = vmax.f32 %v4952, %v4596
        %v5001 = vmax.f32 %v4953, %v4597
        %v5002 = vmax.f32 %v4954, %v4598
        %v5003 = vmax.f32 %v4955, %v4599
        %v5004 = vmax.f32 %v4956, %v4600
        %v5005 = vmax.f32 %v4957, %v4601
        %v5006 = vmax.f32 %v4958, %v4602
        %v5007 = vmax.f32 %v4959, %v4603
        %v5008 = vmax.f32 %v4960, %v4604
        %v5009 = vmax.f32 %v4961, %v4605
        %v5010 = vmax.f32 %v4962, %v4606
        %v5011 = vmax.f32 %v4963, %v4607
        %v5012 = vmax.f32 %v4964, %v4608
        %v5013 = vmax.f32 %v4965, %v4609
        %v5014 = vmax.f32 %v4966, %v4610
        %v5015 = vmax.f32 %v4967, %v4611
        %v5016 = vmax.f32 %v4968, %v4612
        %v5017 = vmax.f32 %v4969, %v4613
        %v5018 = vmax.f32 %v4970, %v4614
        %v5019 = vmax.f32 %v4971, %v4615
        %v5020 = vmax.f32 %v4972, %v4616
        %v5021 = vmax.f32 %v4973, %v4617
        %v5022 = vmax.f32 %v4974, %v4618
        %v5023 = vmax.f32 %v4975, %v4619
        %v5024 = vmax.f32 %v4976, %v4620
        %v5025 = vmax.f32 %v4977, %v4621
        %v5026 = vmax.f32 %v4978, %v4622
        %v5027 = vmax.f32 %v4979, %v4623
        %v5028 = vmax.f32 %v4980, %v4624
        %v5029 = vmax.f32 %v4981, %v4625
        %v5030 = vmax.f32 %v4982, %v4626
        %v5031 = vmax.f32 %v4983, %v4627
        %v5032 = vmax.f32 %v4984, %v4628
        %v5033 = vmax.f32 %v4985, %v4584
        %v5034 = vmax.f32 %v4986, %v4585
        %v5035 = vmax.f32 %v4987, %v4586
        %v5036 = vmax.f32 %v4988, %v4587
        %v5037 = vmax.f32 %v4989, %v4588
        %v5038 = vmax.f32 %v4990, %v4589
        %v5039 = vmax.f32 %v4991, %v4590
        %v5040 = vmax.f32 %v4992, %v4591
        %v5041 = vmax.f32 %v4993, %v4592
        %v5042 = vmax.f32 %v4994, %v4593
        %v5043 = vmax.f32 %v4995, %v4594
        %v5044 = vmax.f32 %v4996, %v4595
        %v5045 = vmax.f32 %v4997, %v4596
        %v5046 = vmax.f32 %v4998, %v4597
        %v5047 = vmax.f32 %v4999, %v4598
        %v5048 = vmax.f32 %v5000, %v4599
        %v5049 = vmax.f32 %v5001, %v4600
        %v5050 = vmax.f32 %v5002, %v4601
        %v5051 = vmax.f32 %v5003, %v4602
        %v5052 = vmax.f32 %v5004, %v4603
        %v5053 = vmax.f32 %v5005, %v4604
        %v5054 = vmax.f32 %v5006, %v4605
        %v5055 = vmax.f32 %v5007, %v4606
        %v5056 = vmax.f32 %v5008, %v4607
        %v5057 = vmax.f32 %v5009, %v4608
        %v5058 = vmax.f32 %v5010, %v4609
        %v5059 = vmax.f32 %v5011, %v4610
        %v5060 = vmax.f32 %v5012, %v4611
        %v5061 = vmax.f32 %v5013, %v4612
        %v5062 = vmax.f32 %v5014, %v4613
        %v5063 = vmax.f32 %v5015, %v4614
        %v5064 = vmax.f32 %v5016, %v4615
        %v5065 = vmax.f32 %v5017, %v4616
        %v5066 = vmax.f32 %v5018, %v4617
        %v5067 = vmax.f32 %v5019, %v4618
        %v5068 = vmax.f32 %v5020, %v4619
        %v5069 = vmax.f32 %v5021, %v4620
        %v5070 = vmax.f32 %v5022, %v4621
        %v5071 = vmax.f32 %v5023, %v4622
        %v5072 = vmax.f32 %v5024, %v4623
        %v5073 = vmax.f32 %v5025, %v4624
        %v5074 = vmax.f32 %v5026, %v4625
        %v5075 = vmax.f32 %v5027, %v4626
        %v5076 = vmax.f32 %v5028, %v4627
        %v5077 = vmax.f32 %v5029, %v4628
        %v5078 = vmax.f32 %v5030, %v4629
        %v5079 = vmax.f32 %v5031, %v4630
        %v5080 = vmax.f32 %v5032, %v4631
        %v5129 = vrot.slane %v5033, 1
        %v5130 = vrot.slane %v5034, 1
        %v5131 = vsel %vm1944, %v5129, %v5130
        %v5132 = vrot.slane %v5035, 1
        %v5133 = vsel %vm1944, %v5130, %v5132
        %v5134 = vrot.slane %v5036, 1
        %v5135 = vrot.slane %v5037, 1
        %v5136 = vsel %vm1944, %v5134, %v5135
        %v5137 = vrot.slane %v5038, 1
        %v5138 = vsel %vm1944, %v5135, %v5137
        %v5139 = vrot.slane %v5039, 1
        %v5140 = vrot.slane %v5040, 1
        %v5141 = vsel %vm1944, %v5139, %v5140
        %v5142 = vrot.slane %v5041, 1
        %v5143 = vsel %vm1944, %v5140, %v5142
        %v5144 = vrot.slane %v5042, 1
        %v5145 = vrot.slane %v5043, 1
        %v5146 = vsel %vm1944, %v5144, %v5145
        %v5147 = vrot.slane %v5044, 1
        %v5148 = vsel %vm1944, %v5145, %v5147
        %v5149 = vrot.slane %v5045, 1
        %v5150 = vrot.slane %v5046, 1
        %v5151 = vsel %vm1944, %v5149, %v5150
        %v5152 = vrot.slane %v5047, 1
        %v5153 = vsel %vm1944, %v5150, %v5152
        %v5154 = vrot.slane %v5048, 1
        %v5155 = vrot.slane %v5049, 1
        %v5156 = vsel %vm1944, %v5154, %v5155
        %v5157 = vrot.slane %v5050, 1
        %v5158 = vsel %vm1944, %v5155, %v5157
        %v5159 = vrot.slane %v5051, 1
        %v5160 = vrot.slane %v5052, 1
        %v5161 = vsel %vm1944, %v5159, %v5160
        %v5162 = vrot.slane %v5053, 1
        %v5163 = vsel %vm1944, %v5160, %v5162
        %v5164 = vrot.slane %v5054, 1
        %v5165 = vrot.slane %v5055, 1
        %v5166 = vsel %vm1944, %v5164, %v5165
        %v5167 = vrot.slane %v5056, 1
        %v5168 = vsel %vm1944, %v5165, %v5167
        %v5169 = vrot.slane %v5057, 1
        %v5170 = vrot.slane %v5058, 1
        %v5171 = vsel %vm1944, %v5169, %v5170
        %v5172 = vrot.slane %v5059, 1
        %v5173 = vsel %vm1944, %v5170, %v5172
        %v5174 = vrot.slane %v5060, 1
        %v5175 = vrot.slane %v5061, 1
        %v5176 = vsel %vm1944, %v5174, %v5175
        %v5177 = vrot.slane %v5062, 1
        %v5178 = vsel %vm1944, %v5175, %v5177
        %v5179 = vrot.slane %v5063, 1
        %v5180 = vrot.slane %v5064, 1
        %v5181 = vsel %vm1944, %v5179, %v5180
        %v5182 = vrot.slane %v5065, 1
        %v5183 = vsel %vm1944, %v5180, %v5182
        %v5184 = vrot.slane %v5066, 1
        %v5185 = vrot.slane %v5067, 1
        %v5186 = vsel %vm1944, %v5184, %v5185
        %v5187 = vrot.slane %v5068, 1
        %v5188 = vsel %vm1944, %v5185, %v5187
        %v5189 = vrot.slane %v5069, 1
        %v5190 = vrot.slane %v5070, 1
        %v5191 = vsel %vm1944, %v5189, %v5190
        %v5192 = vrot.slane %v5071, 1
        %v5193 = vsel %vm1944, %v5190, %v5192
        %v5194 = vrot.slane %v5072, 1
        %v5195 = vrot.slane %v5073, 1
        %v5196 = vsel %vm1944, %v5194, %v5195
        %v5197 = vrot.slane %v5074, 1
        %v5198 = vsel %vm1944, %v5195, %v5197
        %v5199 = vrot.slane %v5075, 1
        %v5200 = vrot.slane %v5076, 1
        %v5201 = vsel %vm1944, %v5199, %v5200
        %v5202 = vrot.slane %v5077, 1
        %v5203 = vsel %vm1944, %v5200, %v5202
        %v5204 = vrot.slane %v5078, 1
        %v5205 = vrot.slane %v5079, 1
        %v5206 = vsel %vm1944, %v5204, %v5205
        %v5207 = vrot.slane %v5080, 1
        %v5208 = vsel %vm1944, %v5205, %v5207
        %v5241 = vmax.f32 %v5033, %v5131
        %v5242 = vmax.f32 %v5034, %v5133
        %v5243 = vmax.f32 %v5036, %v5136
        %v5244 = vmax.f32 %v5037, %v5138
        %v5245 = vmax.f32 %v5039, %v5141
        %v5246 = vmax.f32 %v5040, %v5143
        %v5247 = vmax.f32 %v5042, %v5146
        %v5248 = vmax.f32 %v5043, %v5148
        %v5249 = vmax.f32 %v5045, %v5151
        %v5250 = vmax.f32 %v5046, %v5153
        %v5251 = vmax.f32 %v5048, %v5156
        %v5252 = vmax.f32 %v5049, %v5158
        %v5253 = vmax.f32 %v5051, %v5161
        %v5254 = vmax.f32 %v5052, %v5163
        %v5255 = vmax.f32 %v5054, %v5166
        %v5256 = vmax.f32 %v5055, %v5168
        %v5257 = vmax.f32 %v5057, %v5171
        %v5258 = vmax.f32 %v5058, %v5173
        %v5259 = vmax.f32 %v5060, %v5176
        %v5260 = vmax.f32 %v5061, %v5178
        %v5261 = vmax.f32 %v5063, %v5181
        %v5262 = vmax.f32 %v5064, %v5183
        %v5263 = vmax.f32 %v5066, %v5186
        %v5264 = vmax.f32 %v5067, %v5188
        %v5265 = vmax.f32 %v5069, %v5191
        %v5266 = vmax.f32 %v5070, %v5193
        %v5267 = vmax.f32 %v5072, %v5196
        %v5268 = vmax.f32 %v5073, %v5198
        %v5269 = vmax.f32 %v5075, %v5201
        %v5270 = vmax.f32 %v5076, %v5203
        %v5271 = vmax.f32 %v5078, %v5206
        %v5272 = vmax.f32 %v5079, %v5208
        %v5273 = vrot.slane %v5033, 2
        %v5274 = vrot.slane %v5034, 2
        %v5275 = vsel %vm2257, %v5273, %v5274
        %v5276 = vrot.slane %v5035, 2
        %v5277 = vsel %vm2257, %v5274, %v5276
        %v5278 = vrot.slane %v5036, 2
        %v5279 = vrot.slane %v5037, 2
        %v5280 = vsel %vm2257, %v5278, %v5279
        %v5281 = vrot.slane %v5038, 2
        %v5282 = vsel %vm2257, %v5279, %v5281
        %v5283 = vrot.slane %v5039, 2
        %v5284 = vrot.slane %v5040, 2
        %v5285 = vsel %vm2257, %v5283, %v5284
        %v5286 = vrot.slane %v5041, 2
        %v5287 = vsel %vm2257, %v5284, %v5286
        %v5288 = vrot.slane %v5042, 2
        %v5289 = vrot.slane %v5043, 2
        %v5290 = vsel %vm2257, %v5288, %v5289
        %v5291 = vrot.slane %v5044, 2
        %v5292 = vsel %vm2257, %v5289, %v5291
        %v5293 = vrot.slane %v5045, 2
        %v5294 = vrot.slane %v5046, 2
        %v5295 = vsel %vm2257, %v5293, %v5294
        %v5296 = vrot.slane %v5047, 2
        %v5297 = vsel %vm2257, %v5294, %v5296
        %v5298 = vrot.slane %v5048, 2
        %v5299 = vrot.slane %v5049, 2
        %v5300 = vsel %vm2257, %v5298, %v5299
        %v5301 = vrot.slane %v5050, 2
        %v5302 = vsel %vm2257, %v5299, %v5301
        %v5303 = vrot.slane %v5051, 2
        %v5304 = vrot.slane %v5052, 2
        %v5305 = vsel %vm2257, %v5303, %v5304
        %v5306 = vrot.slane %v5053, 2
        %v5307 = vsel %vm2257, %v5304, %v5306
        %v5308 = vrot.slane %v5054, 2
        %v5309 = vrot.slane %v5055, 2
        %v5310 = vsel %vm2257, %v5308, %v5309
        %v5311 = vrot.slane %v5056, 2
        %v5312 = vsel %vm2257, %v5309, %v5311
        %v5313 = vrot.slane %v5057, 2
        %v5314 = vrot.slane %v5058, 2
        %v5315 = vsel %vm2257, %v5313, %v5314
        %v5316 = vrot.slane %v5059, 2
        %v5317 = vsel %vm2257, %v5314, %v5316
        %v5318 = vrot.slane %v5060, 2
        %v5319 = vrot.slane %v5061, 2
        %v5320 = vsel %vm2257, %v5318, %v5319
        %v5321 = vrot.slane %v5062, 2
        %v5322 = vsel %vm2257, %v5319, %v5321
        %v5323 = vrot.slane %v5063, 2
        %v5324 = vrot.slane %v5064, 2
        %v5325 = vsel %vm2257, %v5323, %v5324
        %v5326 = vrot.slane %v5065, 2
        %v5327 = vsel %vm2257, %v5324, %v5326
        %v5328 = vrot.slane %v5066, 2
        %v5329 = vrot.slane %v5067, 2
        %v5330 = vsel %vm2257, %v5328, %v5329
        %v5331 = vrot.slane %v5068, 2
        %v5332 = vsel %vm2257, %v5329, %v5331
        %v5333 = vrot.slane %v5069, 2
        %v5334 = vrot.slane %v5070, 2
        %v5335 = vsel %vm2257, %v5333, %v5334
        %v5336 = vrot.slane %v5071, 2
        %v5337 = vsel %vm2257, %v5334, %v5336
        %v5338 = vrot.slane %v5072, 2
        %v5339 = vrot.slane %v5073, 2
        %v5340 = vsel %vm2257, %v5338, %v5339
        %v5341 = vrot.slane %v5074, 2
        %v5342 = vsel %vm2257, %v5339, %v5341
        %v5343 = vrot.slane %v5075, 2
        %v5344 = vrot.slane %v5076, 2
        %v5345 = vsel %vm2257, %v5343, %v5344
        %v5346 = vrot.slane %v5077, 2
        %v5347 = vsel %vm2257, %v5344, %v5346
        %v5348 = vrot.slane %v5078, 2
        %v5349 = vrot.slane %v5079, 2
        %v5350 = vsel %vm2257, %v5348, %v5349
        %v5351 = vrot.slane %v5080, 2
        %v5352 = vsel %vm2257, %v5349, %v5351
        %v5385 = vmax.f32 %v5241, %v5275
        %v5386 = vmax.f32 %v5242, %v5277
        %v5387 = vmax.f32 %v5243, %v5280
        %v5388 = vmax.f32 %v5244, %v5282
        %v5389 = vmax.f32 %v5245, %v5285
        %v5390 = vmax.f32 %v5246, %v5287
        %v5391 = vmax.f32 %v5247, %v5290
        %v5392 = vmax.f32 %v5248, %v5292
        %v5393 = vmax.f32 %v5249, %v5295
        %v5394 = vmax.f32 %v5250, %v5297
        %v5395 = vmax.f32 %v5251, %v5300
        %v5396 = vmax.f32 %v5252, %v5302
        %v5397 = vmax.f32 %v5253, %v5305
        %v5398 = vmax.f32 %v5254, %v5307
        %v5399 = vmax.f32 %v5255, %v5310
        %v5400 = vmax.f32 %v5256, %v5312
        %v5401 = vmax.f32 %v5257, %v5315
        %v5402 = vmax.f32 %v5258, %v5317
        %v5403 = vmax.f32 %v5259, %v5320
        %v5404 = vmax.f32 %v5260, %v5322
        %v5405 = vmax.f32 %v5261, %v5325
        %v5406 = vmax.f32 %v5262, %v5327
        %v5407 = vmax.f32 %v5263, %v5330
        %v5408 = vmax.f32 %v5264, %v5332
        %v5409 = vmax.f32 %v5265, %v5335
        %v5410 = vmax.f32 %v5266, %v5337
        %v5411 = vmax.f32 %v5267, %v5340
        %v5412 = vmax.f32 %v5268, %v5342
        %v5413 = vmax.f32 %v5269, %v5345
        %v5414 = vmax.f32 %v5270, %v5347
        %v5415 = vmax.f32 %v5271, %v5350
        %v5416 = vmax.f32 %v5272, %v5352
        %v5417 = vrot.slane %v5033, 3
        %v5418 = vrot.slane %v5034, 3
        %v5419 = vsel %vm2570, %v5417, %v5418
        %v5420 = vrot.slane %v5035, 3
        %v5421 = vsel %vm2570, %v5418, %v5420
        %v5422 = vrot.slane %v5036, 3
        %v5423 = vrot.slane %v5037, 3
        %v5424 = vsel %vm2570, %v5422, %v5423
        %v5425 = vrot.slane %v5038, 3
        %v5426 = vsel %vm2570, %v5423, %v5425
        %v5427 = vrot.slane %v5039, 3
        %v5428 = vrot.slane %v5040, 3
        %v5429 = vsel %vm2570, %v5427, %v5428
        %v5430 = vrot.slane %v5041, 3
        %v5431 = vsel %vm2570, %v5428, %v5430
        %v5432 = vrot.slane %v5042, 3
        %v5433 = vrot.slane %v5043, 3
        %v5434 = vsel %vm2570, %v5432, %v5433
        %v5435 = vrot.slane %v5044, 3
        %v5436 = vsel %vm2570, %v5433, %v5435
        %v5437 = vrot.slane %v5045, 3
        %v5438 = vrot.slane %v5046, 3
        %v5439 = vsel %vm2570, %v5437, %v5438
        %v5440 = vrot.slane %v5047, 3
        %v5441 = vsel %vm2570, %v5438, %v5440
        %v5442 = vrot.slane %v5048, 3
        %v5443 = vrot.slane %v5049, 3
        %v5444 = vsel %vm2570, %v5442, %v5443
        %v5445 = vrot.slane %v5050, 3
        %v5446 = vsel %vm2570, %v5443, %v5445
        %v5447 = vrot.slane %v5051, 3
        %v5448 = vrot.slane %v5052, 3
        %v5449 = vsel %vm2570, %v5447, %v5448
        %v5450 = vrot.slane %v5053, 3
        %v5451 = vsel %vm2570, %v5448, %v5450
        %v5452 = vrot.slane %v5054, 3
        %v5453 = vrot.slane %v5055, 3
        %v5454 = vsel %vm2570, %v5452, %v5453
        %v5455 = vrot.slane %v5056, 3
        %v5456 = vsel %vm2570, %v5453, %v5455
        %v5457 = vrot.slane %v5057, 3
        %v5458 = vrot.slane %v5058, 3
        %v5459 = vsel %vm2570, %v5457, %v5458
        %v5460 = vrot.slane %v5059, 3
        %v5461 = vsel %vm2570, %v5458, %v5460
        %v5462 = vrot.slane %v5060, 3
        %v5463 = vrot.slane %v5061, 3
        %v5464 = vsel %vm2570, %v5462, %v5463
        %v5465 = vrot.slane %v5062, 3
        %v5466 = vsel %vm2570, %v5463, %v5465
        %v5467 = vrot.slane %v5063, 3
        %v5468 = vrot.slane %v5064, 3
        %v5469 = vsel %vm2570, %v5467, %v5468
        %v5470 = vrot.slane %v5065, 3
        %v5471 = vsel %vm2570, %v5468, %v5470
        %v5472 = vrot.slane %v5066, 3
        %v5473 = vrot.slane %v5067, 3
        %v5474 = vsel %vm2570, %v5472, %v5473
        %v5475 = vrot.slane %v5068, 3
        %v5476 = vsel %vm2570, %v5473, %v5475
        %v5477 = vrot.slane %v5069, 3
        %v5478 = vrot.slane %v5070, 3
        %v5479 = vsel %vm2570, %v5477, %v5478
        %v5480 = vrot.slane %v5071, 3
        %v5481 = vsel %vm2570, %v5478, %v5480
        %v5482 = vrot.slane %v5072, 3
        %v5483 = vrot.slane %v5073, 3
        %v5484 = vsel %vm2570, %v5482, %v5483
        %v5485 = vrot.slane %v5074, 3
        %v5486 = vsel %vm2570, %v5483, %v5485
        %v5487 = vrot.slane %v5075, 3
        %v5488 = vrot.slane %v5076, 3
        %v5489 = vsel %vm2570, %v5487, %v5488
        %v5490 = vrot.slane %v5077, 3
        %v5491 = vsel %vm2570, %v5488, %v5490
        %v5492 = vrot.slane %v5078, 3
        %v5493 = vrot.slane %v5079, 3
        %v5494 = vsel %vm2570, %v5492, %v5493
        %v5495 = vrot.slane %v5080, 3
        %v5496 = vsel %vm2570, %v5493, %v5495
        %v5529 = vmax.f32 %v5385, %v5419
        %v5530 = vmax.f32 %v5386, %v5421
        %v5531 = vmax.f32 %v5387, %v5424
        %v5532 = vmax.f32 %v5388, %v5426
        %v5533 = vmax.f32 %v5389, %v5429
        %v5534 = vmax.f32 %v5390, %v5431
        %v5535 = vmax.f32 %v5391, %v5434
        %v5536 = vmax.f32 %v5392, %v5436
        %v5537 = vmax.f32 %v5393, %v5439
        %v5538 = vmax.f32 %v5394, %v5441
        %v5539 = vmax.f32 %v5395, %v5444
        %v5540 = vmax.f32 %v5396, %v5446
        %v5541 = vmax.f32 %v5397, %v5449
        %v5542 = vmax.f32 %v5398, %v5451
        %v5543 = vmax.f32 %v5399, %v5454
        %v5544 = vmax.f32 %v5400, %v5456
        %v5545 = vmax.f32 %v5401, %v5459
        %v5546 = vmax.f32 %v5402, %v5461
        %v5547 = vmax.f32 %v5403, %v5464
        %v5548 = vmax.f32 %v5404, %v5466
        %v5549 = vmax.f32 %v5405, %v5469
        %v5550 = vmax.f32 %v5406, %v5471
        %v5551 = vmax.f32 %v5407, %v5474
        %v5552 = vmax.f32 %v5408, %v5476
        %v5553 = vmax.f32 %v5409, %v5479
        %v5554 = vmax.f32 %v5410, %v5481
        %v5555 = vmax.f32 %v5411, %v5484
        %v5556 = vmax.f32 %v5412, %v5486
        %v5557 = vmax.f32 %v5413, %v5489
        %v5558 = vmax.f32 %v5414, %v5491
        %v5559 = vmax.f32 %v5415, %v5494
        %v5560 = vmax.f32 %v5416, %v5496
        %v5561 = vrot.slane %v5033, 4
        %v5562 = vrot.slane %v5034, 4
        %v5563 = vsel %vm416, %v5561, %v5562
        %v5564 = vrot.slane %v5035, 4
        %v5565 = vsel %vm416, %v5562, %v5564
        %v5566 = vrot.slane %v5036, 4
        %v5567 = vrot.slane %v5037, 4
        %v5568 = vsel %vm416, %v5566, %v5567
        %v5569 = vrot.slane %v5038, 4
        %v5570 = vsel %vm416, %v5567, %v5569
        %v5571 = vrot.slane %v5039, 4
        %v5572 = vrot.slane %v5040, 4
        %v5573 = vsel %vm416, %v5571, %v5572
        %v5574 = vrot.slane %v5041, 4
        %v5575 = vsel %vm416, %v5572, %v5574
        %v5576 = vrot.slane %v5042, 4
        %v5577 = vrot.slane %v5043, 4
        %v5578 = vsel %vm416, %v5576, %v5577
        %v5579 = vrot.slane %v5044, 4
        %v5580 = vsel %vm416, %v5577, %v5579
        %v5581 = vrot.slane %v5045, 4
        %v5582 = vrot.slane %v5046, 4
        %v5583 = vsel %vm416, %v5581, %v5582
        %v5584 = vrot.slane %v5047, 4
        %v5585 = vsel %vm416, %v5582, %v5584
        %v5586 = vrot.slane %v5048, 4
        %v5587 = vrot.slane %v5049, 4
        %v5588 = vsel %vm416, %v5586, %v5587
        %v5589 = vrot.slane %v5050, 4
        %v5590 = vsel %vm416, %v5587, %v5589
        %v5591 = vrot.slane %v5051, 4
        %v5592 = vrot.slane %v5052, 4
        %v5593 = vsel %vm416, %v5591, %v5592
        %v5594 = vrot.slane %v5053, 4
        %v5595 = vsel %vm416, %v5592, %v5594
        %v5596 = vrot.slane %v5054, 4
        %v5597 = vrot.slane %v5055, 4
        %v5598 = vsel %vm416, %v5596, %v5597
        %v5599 = vrot.slane %v5056, 4
        %v5600 = vsel %vm416, %v5597, %v5599
        %v5601 = vrot.slane %v5057, 4
        %v5602 = vrot.slane %v5058, 4
        %v5603 = vsel %vm416, %v5601, %v5602
        %v5604 = vrot.slane %v5059, 4
        %v5605 = vsel %vm416, %v5602, %v5604
        %v5606 = vrot.slane %v5060, 4
        %v5607 = vrot.slane %v5061, 4
        %v5608 = vsel %vm416, %v5606, %v5607
        %v5609 = vrot.slane %v5062, 4
        %v5610 = vsel %vm416, %v5607, %v5609
        %v5611 = vrot.slane %v5063, 4
        %v5612 = vrot.slane %v5064, 4
        %v5613 = vsel %vm416, %v5611, %v5612
        %v5614 = vrot.slane %v5065, 4
        %v5615 = vsel %vm416, %v5612, %v5614
        %v5616 = vrot.slane %v5066, 4
        %v5617 = vrot.slane %v5067, 4
        %v5618 = vsel %vm416, %v5616, %v5617
        %v5619 = vrot.slane %v5068, 4
        %v5620 = vsel %vm416, %v5617, %v5619
        %v5621 = vrot.slane %v5069, 4
        %v5622 = vrot.slane %v5070, 4
        %v5623 = vsel %vm416, %v5621, %v5622
        %v5624 = vrot.slane %v5071, 4
        %v5625 = vsel %vm416, %v5622, %v5624
        %v5626 = vrot.slane %v5072, 4
        %v5627 = vrot.slane %v5073, 4
        %v5628 = vsel %vm416, %v5626, %v5627
        %v5629 = vrot.slane %v5074, 4
        %v5630 = vsel %vm416, %v5627, %v5629
        %v5631 = vrot.slane %v5075, 4
        %v5632 = vrot.slane %v5076, 4
        %v5633 = vsel %vm416, %v5631, %v5632
        %v5634 = vrot.slane %v5077, 4
        %v5635 = vsel %vm416, %v5632, %v5634
        %v5636 = vrot.slane %v5078, 4
        %v5637 = vrot.slane %v5079, 4
        %v5638 = vsel %vm416, %v5636, %v5637
        %v5639 = vrot.slane %v5080, 4
        %v5640 = vsel %vm416, %v5637, %v5639
        %v5673 = vmax.f32 %v5529, %v5563
        %v5674 = vmax.f32 %v5530, %v5565
        %v5675 = vmax.f32 %v5531, %v5568
        %v5676 = vmax.f32 %v5532, %v5570
        %v5677 = vmax.f32 %v5533, %v5573
        %v5678 = vmax.f32 %v5534, %v5575
        %v5679 = vmax.f32 %v5535, %v5578
        %v5680 = vmax.f32 %v5536, %v5580
        %v5681 = vmax.f32 %v5537, %v5583
        %v5682 = vmax.f32 %v5538, %v5585
        %v5683 = vmax.f32 %v5539, %v5588
        %v5684 = vmax.f32 %v5540, %v5590
        %v5685 = vmax.f32 %v5541, %v5593
        %v5686 = vmax.f32 %v5542, %v5595
        %v5687 = vmax.f32 %v5543, %v5598
        %v5688 = vmax.f32 %v5544, %v5600
        %v5689 = vmax.f32 %v5545, %v5603
        %v5690 = vmax.f32 %v5546, %v5605
        %v5691 = vmax.f32 %v5547, %v5608
        %v5692 = vmax.f32 %v5548, %v5610
        %v5693 = vmax.f32 %v5549, %v5613
        %v5694 = vmax.f32 %v5550, %v5615
        %v5695 = vmax.f32 %v5551, %v5618
        %v5696 = vmax.f32 %v5552, %v5620
        %v5697 = vmax.f32 %v5553, %v5623
        %v5698 = vmax.f32 %v5554, %v5625
        %v5699 = vmax.f32 %v5555, %v5628
        %v5700 = vmax.f32 %v5556, %v5630
        %v5701 = vmax.f32 %v5557, %v5633
        %v5702 = vmax.f32 %v5558, %v5635
        %v5703 = vmax.f32 %v5559, %v5638
        %v5704 = vmax.f32 %v5560, %v5640
        %5737 = vrot.lane.b32.xlu0 %v5673, 6
        %v5738 = vpop.permute.xlu0 %5737
        %5739 = vrot.lane.b32.xlu0 %v5674, 6
        %v5740 = vpop.permute.xlu0 %5739
        %5741 = vrot.lane.b32.xlu0 %v5675, 6
        %v5742 = vpop.permute.xlu0 %5741
        %5743 = vrot.lane.b32.xlu0 %v5676, 6
        %v5744 = vpop.permute.xlu0 %5743
        %5745 = vrot.lane.b32.xlu0 %v5677, 6
        %v5746 = vpop.permute.xlu0 %5745
        %5747 = vrot.lane.b32.xlu0 %v5678, 6
        %v5748 = vpop.permute.xlu0 %5747
        %5749 = vrot.lane.b32.xlu0 %v5679, 6
        %v5750 = vpop.permute.xlu0 %5749
        %5751 = vrot.lane.b32.xlu0 %v5680, 6
        %v5752 = vpop.permute.xlu0 %5751
        %5753 = vrot.lane.b32.xlu0 %v5681, 6
        %v5754 = vpop.permute.xlu0 %5753
        %5755 = vrot.lane.b32.xlu0 %v5682, 6
        %v5756 = vpop.permute.xlu0 %5755
        %5757 = vrot.lane.b32.xlu0 %v5683, 6
        %v5758 = vpop.permute.xlu0 %5757
        %5759 = vrot.lane.b32.xlu0 %v5684, 6
        %v5760 = vpop.permute.xlu0 %5759
        %5761 = vrot.lane.b32.xlu0 %v5685, 6
        %v5762 = vpop.permute.xlu0 %5761
        %5763 = vrot.lane.b32.xlu0 %v5686, 6
        %v5764 = vpop.permute.xlu0 %5763
        %5765 = vrot.lane.b32.xlu0 %v5687, 6
        %v5766 = vpop.permute.xlu0 %5765
        %5767 = vrot.lane.b32.xlu0 %v5688, 6
        %v5768 = vpop.permute.xlu0 %5767
        %5769 = vrot.lane.b32.xlu0 %v5689, 6
        %v5770 = vpop.permute.xlu0 %5769
        %5771 = vrot.lane.b32.xlu0 %v5690, 6
        %v5772 = vpop.permute.xlu0 %5771
        %5773 = vrot.lane.b32.xlu0 %v5691, 6
        %v5774 = vpop.permute.xlu0 %5773
        %5775 = vrot.lane.b32.xlu0 %v5692, 6
        %v5776 = vpop.permute.xlu0 %5775
        %5777 = vrot.lane.b32.xlu0 %v5693, 6
        %v5778 = vpop.permute.xlu0 %5777
        %5779 = vrot.lane.b32.xlu0 %v5694, 6
        %v5780 = vpop.permute.xlu0 %5779
        %5781 = vrot.lane.b32.xlu0 %v5695, 6
        %v5782 = vpop.permute.xlu0 %5781
        %5783 = vrot.lane.b32.xlu0 %v5696, 6
        %v5784 = vpop.permute.xlu0 %5783
        %5785 = vrot.lane.b32.xlu0 %v5697, 6
        %v5786 = vpop.permute.xlu0 %5785
        %5787 = vrot.lane.b32.xlu0 %v5698, 6
        %v5788 = vpop.permute.xlu0 %5787
        %5789 = vrot.lane.b32.xlu0 %v5699, 6
        %v5790 = vpop.permute.xlu0 %5789
        %5791 = vrot.lane.b32.xlu0 %v5700, 6
        %v5792 = vpop.permute.xlu0 %5791
        %5793 = vrot.lane.b32.xlu0 %v5701, 6
        %v5794 = vpop.permute.xlu0 %5793
        %5795 = vrot.lane.b32.xlu0 %v5702, 6
        %v5796 = vpop.permute.xlu0 %5795
        %5797 = vrot.lane.b32.xlu0 %v5703, 6
        %v5798 = vpop.permute.xlu0 %5797
        %5799 = vrot.lane.b32.xlu0 %v5704, 6
        %v5800 = vpop.permute.xlu0 %5799
        %vm5833 = vcmask 64560
        %5834 = vst.msk [vmem:[#allocation3] sm:$0xff] %vm5833, %v5738
        %5835 = vst.msk [vmem:[#allocation3 + $0x8] sm:$0xff] %vm5833, %v5740
        %5836 = vst.msk [vmem:[#allocation3 + $0x10] sm:$0xff] %vm5833, %v5742
        %5837 = vst.msk [vmem:[#allocation3 + $0x18] sm:$0xff] %vm5833, %v5744
        %5838 = vst.msk [vmem:[#allocation3 + $0x20] sm:$0xff] %vm5833, %v5746
        %5839 = vst.msk [vmem:[#allocation3 + $0x28] sm:$0xff] %vm5833, %v5748
        %5840 = vst.msk [vmem:[#allocation3 + $0x30] sm:$0xff] %vm5833, %v5750
        %5841 = vst.msk [vmem:[#allocation3 + $0x38] sm:$0xff] %vm5833, %v5752
        %5842 = vst.msk [vmem:[#allocation3 + $0x40] sm:$0xff] %vm5833, %v5754
        %5843 = vst.msk [vmem:[#allocation3 + $0x48] sm:$0xff] %vm5833, %v5756
        %5844 = vst.msk [vmem:[#allocation3 + $0x50] sm:$0xff] %vm5833, %v5758
        %5845 = vst.msk [vmem:[#allocation3 + $0x58] sm:$0xff] %vm5833, %v5760
        %5846 = vst.msk [vmem:[#allocation3 + $0x60] sm:$0xff] %vm5833, %v5762
        %5847 = vst.msk [vmem:[#allocation3 + $0x68] sm:$0xff] %vm5833, %v5764
        %5848 = vst.msk [vmem:[#allocation3 + $0x70] sm:$0xff] %vm5833, %v5766
        %5849 = vst.msk [vmem:[#allocation3 + $0x78] sm:$0xff] %vm5833, %v5768
        %5850 = vst.msk [vmem:[#allocation3 + $0x80] sm:$0xff] %vm5833, %v5770
        %5851 = vst.msk [vmem:[#allocation3 + $0x88] sm:$0xff] %vm5833, %v5772
        %5852 = vst.msk [vmem:[#allocation3 + $0x90] sm:$0xff] %vm5833, %v5774
        %5853 = vst.msk [vmem:[#allocation3 + $0x98] sm:$0xff] %vm5833, %v5776
        %5854 = vst.msk [vmem:[#allocation3 + $0xa0] sm:$0xff] %vm5833, %v5778
        %5855 = vst.msk [vmem:[#allocation3 + $0xa8] sm:$0xff] %vm5833, %v5780
        %5856 = vst.msk [vmem:[#allocation3 + $0xb0] sm:$0xff] %vm5833, %v5782
        %5857 = vst.msk [vmem:[#allocation3 + $0xb8] sm:$0xff] %vm5833, %v5784
        %5858 = vst.msk [vmem:[#allocation3 + $0xc0] sm:$0xff] %vm5833, %v5786
        %5859 = vst.msk [vmem:[#allocation3 + $0xc8] sm:$0xff] %vm5833, %v5788
        %5860 = vst.msk [vmem:[#allocation3 + $0xd0] sm:$0xff] %vm5833, %v5790
        %5861 = vst.msk [vmem:[#allocation3 + $0xd8] sm:$0xff] %vm5833, %v5792
        %5862 = vst.msk [vmem:[#allocation3 + $0xe0] sm:$0xff] %vm5833, %v5794
        %5863 = vst.msk [vmem:[#allocation3 + $0xe8] sm:$0xff] %vm5833, %v5796
        %5864 = vst.msk [vmem:[#allocation3 + $0xf0] sm:$0xff] %vm5833, %v5798
        %5865 = vst.msk [vmem:[#allocation3 + $0xf8] sm:$0xff] %vm5833, %v5800
        %v5866 = vld [vmem:[%s3] sm:$0xff]
        %v5867 = vld [vmem:[#allocation3] sm:$0xff]
        %v5868 = vld [vmem:[#allocation3 + $0x8] sm:$0xff]
        %v5869 = vld [vmem:[#allocation3 + $0x10] sm:$0xff]
        %v5870 = vld [vmem:[#allocation3 + $0x18] sm:$0xff]
        %v5871 = vld [vmem:[#allocation3 + $0x20] sm:$0xff]
        %v5872 = vld [vmem:[#allocation3 + $0x28] sm:$0xff]
        %v5873 = vld [vmem:[#allocation3 + $0x30] sm:$0xff]
        %v5874 = vld [vmem:[#allocation3 + $0x38] sm:$0xff]
        %v5875 = vld [vmem:[#allocation3 + $0x40] sm:$0xff]
        %v5876 = vld [vmem:[#allocation3 + $0x48] sm:$0xff]
        %v5877 = vld [vmem:[#allocation3 + $0x50] sm:$0xff]
        %v5878 = vld [vmem:[#allocation3 + $0x58] sm:$0xff]
        %v5879 = vld [vmem:[#allocation3 + $0x60] sm:$0xff]
        %v5880 = vld [vmem:[#allocation3 + $0x68] sm:$0xff]
        %v5881 = vld [vmem:[#allocation3 + $0x70] sm:$0xff]
        %v5882 = vld [vmem:[#allocation3 + $0x78] sm:$0xff]
        %v5883 = vld [vmem:[#allocation3 + $0x80] sm:$0xff]
        %v5884 = vld [vmem:[#allocation3 + $0x88] sm:$0xff]
        %v5885 = vld [vmem:[#allocation3 + $0x90] sm:$0xff]
        %v5886 = vld [vmem:[#allocation3 + $0x98] sm:$0xff]
        %v5887 = vld [vmem:[#allocation3 + $0xa0] sm:$0xff]
        %v5888 = vld [vmem:[#allocation3 + $0xa8] sm:$0xff]
        %v5889 = vld [vmem:[#allocation3 + $0xb0] sm:$0xff]
        %v5890 = vld [vmem:[#allocation3 + $0xb8] sm:$0xff]
        %v5891 = vld [vmem:[#allocation3 + $0xc0] sm:$0xff]
        %v5892 = vld [vmem:[#allocation3 + $0xc8] sm:$0xff]
        %v5893 = vld [vmem:[#allocation3 + $0xd0] sm:$0xff]
        %v5894 = vld [vmem:[#allocation3 + $0xd8] sm:$0xff]
        %v5895 = vld [vmem:[#allocation3 + $0xe0] sm:$0xff]
        %v5896 = vld [vmem:[#allocation3 + $0xe8] sm:$0xff]
        %v5897 = vld [vmem:[#allocation3 + $0xf0] sm:$0xff]
        %v5898 = vld [vmem:[#allocation3 + $0xf8] sm:$0xff]
        %v5899 = vld [vmem:[%s4] sm:$0xff]
        %5901 = vset.pattern.permute.xlu0 0
        %5902 = vperm.xlu0 %5901, %v5899
        %v5903 = vpop.permute.xlu0 %5902
        %vm5905 = vcmask 64512
        %v5907 = vsel %vm5905, %v5866, 0
        %v5910 = vsel %vm5905, %v5867, 0
        %v5913 = vsel %vm5905, %v5868, 0
        %v5916 = vsel %vm5905, %v5869, 0
        %v5919 = vsel %vm5905, %v5870, 0
        %v5922 = vsel %vm5905, %v5871, 0
        %v5925 = vsel %vm5905, %v5872, 0
        %v5928 = vsel %vm5905, %v5873, 0
        %v5931 = vsel %vm5905, %v5874, 0
        %v5934 = vsel %vm5905, %v5875, 0
        %v5937 = vsel %vm5905, %v5876, 0
        %v5940 = vsel %vm5905, %v5877, 0
        %v5943 = vsel %vm5905, %v5878, 0
        %v5946 = vsel %vm5905, %v5879, 0
        %v5949 = vsel %vm5905, %v5880, 0
        %v5952 = vsel %vm5905, %v5881, 0
        %v5955 = vsel %vm5905, %v5882, 0
        %v5958 = vsel %vm5905, %v5883, 0
        %v5961 = vsel %vm5905, %v5884, 0
        %v5964 = vsel %vm5905, %v5885, 0
        %v5967 = vsel %vm5905, %v5886, 0
        %v5970 = vsel %vm5905, %v5887, 0
        %v5973 = vsel %vm5905, %v5888, 0
        %v5976 = vsel %vm5905, %v5889, 0
        %v5979 = vsel %vm5905, %v5890, 0
        %v5982 = vsel %vm5905, %v5891, 0
        %v5985 = vsel %vm5905, %v5892, 0
        %v5988 = vsel %vm5905, %v5893, 0
        %v5991 = vsel %vm5905, %v5894, 0
        %v5994 = vsel %vm5905, %v5895, 0
        %v5997 = vsel %vm5905, %v5896, 0
        %v6000 = vsel %vm5905, %v5897, 0
        %v6003 = vsel %vm5905, %v5898, 0
        %6005 = vmatpush.xpose.msra.mxu0 %v5955
        %6006 = vmatpush.xpose.msra.mxu0 %v5952
        %6007 = vmatpush.xpose.msra.mxu0 %v5949
        %6008 = vmatpush.xpose.msra.mxu0 %v5946
        %6009 = vmatpush.xpose.msra.mxu0 %v5943
        %6010 = vmatpush.xpose.msra.mxu0 %v5940
        %6011 = vmatpush.xpose.msra.mxu0 %v5937
        %6012 = vmatpush.xpose.msra.mxu0 %v5934
        %6013 = vmatpush.xpose.msra.mxu0 %v5931
        %6014 = vmatpush.xpose.msra.mxu0 %v5928
        %6015 = vmatpush.xpose.msra.mxu0 %v5925
        %6016 = vmatpush.xpose.msra.mxu0 %v5922
        %6017 = vmatpush.xpose.msra.mxu0 %v5919
        %6018 = vmatpush.xpose.msra.mxu0 %v5916
        %6019 = vmatpush.xpose.msra.mxu0 %v5913
        %6020 = vmatpush.xpose.msra.mxu0 %v5910
        %6021 = vmatmul.f32.gmra.mxu0 %v5907
        %v6022 = vpop.f32.mrf.mxu0
        %v6023 = vadd.f32 %v5903, %v6022
        %6024 = vdwg.mxu0
        %6025 = vmatpush.xpose.msra.mxu0 %v6003
        %6026 = vmatpush.xpose.msra.mxu0 %v6000
        %6027 = vmatpush.xpose.msra.mxu0 %v5997
        %6028 = vmatpush.xpose.msra.mxu0 %v5994
        %6029 = vmatpush.xpose.msra.mxu0 %v5991
        %6030 = vmatpush.xpose.msra.mxu0 %v5988
        %6031 = vmatpush.xpose.msra.mxu0 %v5985
        %6032 = vmatpush.xpose.msra.mxu0 %v5982
        %6033 = vmatpush.xpose.msra.mxu0 %v5979
        %6034 = vmatpush.xpose.msra.mxu0 %v5976
        %6035 = vmatpush.xpose.msra.mxu0 %v5973
        %6036 = vmatpush.xpose.msra.mxu0 %v5970
        %6037 = vmatpush.xpose.msra.mxu0 %v5967
        %6038 = vmatpush.xpose.msra.mxu0 %v5964
        %6039 = vmatpush.xpose.msra.mxu0 %v5961
        %6040 = vmatpush.xpose.msra.mxu0 %v5958
        %6041 = vmatmul.f32.gmra.mxu0 %v5907
        %v6042 = vpop.f32.mrf.mxu0
        %v6043 = vadd.f32 %v5903, %v6042
        %6044 = vdwg.mxu0
        %v6045 = vxor.u32 %v6023, 2147483648
        %v6046 = vxor.u32 %v6043, 2147483648
        %v6047 = vmul.f32 %v6045, 1.442695
        %v6048 = vpow.pop %v6047
        %v6049 = vmul.f32 %v6046, 1.442695
        %v6050 = vpow.pop %v6049
        %v6051 = vadd.f32 %v6048, 1.0
        %v6052 = vadd.f32 %v6050, 1.0
        %v6053 = vrcp.pop %v6051
        %v6054 = vmul.f32 %v6051, %v6053
        %v6055 = vsub.f32 1.0, %v6054
        %v6056 = vmul.f32 %v6053, %v6055
        %v6057 = vadd.f32 %v6053, %v6056
        %vm6058 = vweird.f32 %v6051
        %vm6059 = vweird.f32 %v6053
        %vm6060 = vmor %vm6058, %vm6059
        %v6061 = vsel %vm6060, %v6053, %v6057
        %v6062 = vand.u32 2147483647, %v6051
        %vm6063 = vcmp.eq.f32.partialorder %v6062, 8.507059e+37
        %v6064 = vand.u32 %v6051, 2147483648
        %v6065 = vor.u32 1.1754944e-38, %v6064
        %v6066 = vsel %vm6063, %v6065, %v6061
        %v6067 = vmul.f32 1.0, %v6066
        %v6068 = vrcp.pop %v6052
        %v6069 = vmul.f32 %v6052, %v6068
        %v6070 = vsub.f32 1.0, %v6069
        %v6071 = vmul.f32 %v6068, %v6070
        %v6072 = vadd.f32 %v6068, %v6071
        %vm6073 = vweird.f32 %v6052
        %vm6074 = vweird.f32 %v6068
        %vm6075 = vmor %vm6073, %vm6074
        %v6076 = vsel %vm6075, %v6068, %v6072
        %v6077 = vand.u32 2147483647, %v6052
        %vm6078 = vcmp.eq.f32.partialorder %v6077, 8.507059e+37
        %v6079 = vand.u32 %v6052, 2147483648
        %v6080 = vor.u32 1.1754944e-38, %v6079
        %v6081 = vsel %vm6078, %v6080, %v6076
        %v6082 = vmul.f32 1.0, %v6081
        %v6083 = vmul.f32 %v6023, %v6067
        %v6084 = vmul.f32 %v6043, %v6082
        %6085 = vst [vmem:[%s242] sm:$0xff] %v6083
        %6086 = vst [vmem:[%s242 + $0x8] sm:$0xff] %v6084
        %s6087 = sand.u32 %s140, 1
        %s6088 = scalar_lea.sflag [#allocation6], %s6087
        %s6089 = sand.u32 %s140, 1
        %s6090 = smul.addr %s6089, 16
        %s6091 = scalar_lea.vmem [#allocation7], %s6090
        // Predicated region
        $region45: #{tpu_custom_call.1} parent=39 // pred_check
          %p6092 = pneg %p150
        $region46: #{tpu_custom_call.1} parent=39 // pred_check_branch
          %6094 = sbr.rel (%p6092) target = $region48
        $region47: #{tpu_custom_call.1} parent=39 // pred_region
          %6096 = vsyncadd %s6088, 0
          %s6097 = smul.addr %s22, 2
          %s6098 = smul.addr %s6097, 8
          %s6099 = scalar_lea.hbm %s5, %s6098
          %s6101 = sshll.u32 %s6091, 4
          %s6102 = int_to_ptr.vmem [resolvable:$true] %s6101
          %s6103 = sshll.u32 %s6099, 4
          %s6104 = int_to_ptr.hbm [resolvable:$true] %s6103
          %6106 = dma.vmem_to_hbm [thread:$0]  %s6102, 256, %s6104, %s6088
        $region48: #{tpu_custom_call.1} parent=39 // pred_fallthru
          _
      $region40: #{tpu_custom_call.1} parent=5 // pred_fallthru
        _
      %p6107 = scmp.le.s32.totalorder 2, %s17
      // Predicated region
      $region49: #{tpu_custom_call.1} parent=5 // pred_check
        %p6108 = pneg %p6107
      $region50: #{tpu_custom_call.1} parent=5 // pred_check_branch
        %6110 = sbr.rel (%p6108) target = $region52
      $region51: #{tpu_custom_call.1} parent=5 // pred_region
        %s6111 = ssub.s32 %s17, 2
        // Predicated region
        $region53: #{tpu_custom_call.1} parent=51 // pred_check
          %p6112 = pneg %p156
        $region54: #{tpu_custom_call.1} parent=51 // pred_check_branch
          %6114 = sbr.rel (%p6112) target = $region56
        $region55: #{tpu_custom_call.1} parent=51 // pred_region
          %s6115 = sand.u32 %s141, 1
          %s6116 = scalar_lea.sflag [#allocation6], %s6115
          %s6117 = sand.u32 %s141, 1
          %s6118 = smul.addr %s6117, 16
          %s6119 = scalar_lea.vmem [#allocation7], %s6118
          %6121 = dma.done %s6116, 256
        $region56: #{tpu_custom_call.1} parent=51 // pred_fallthru
          _
      $region52: #{tpu_custom_call.1} parent=5 // pred_fallthru
        _
    $region6: #{tpu_custom_call.1} parent=1 // loop_footer
      %s21 = sadd.s32 1, %s17
    $region7: #{tpu_custom_call.1} parent=1 // loop_footer_branch
      %16 = sbr.rel target = $region3
    $region8: #{tpu_custom_call.1} parent=1 // loop_exit
      _
    %6122 = vsyncpa [#allocation5], 1
    %s6123 = scalar_lea.sflag [#allocation5], 1
    %6124 = vsyncpa %s6123, 1
    %6125 = vsyncpa [#allocation6], 1
    %s6126 = scalar_lea.sflag [#allocation6], 1
    %6127 = vsyncpa %s6126, 1

</llo_original>
